<compile_context>
chip_gen: v7x
topology: tpu7x:2x2x1
jax: 0.10.0
libtpu: 0.0.40
codegen_flags: <defaults>
</compile_context>

<pallas_src>
import math

import jax
import jax.numpy as jnp
from jax import lax
from jax.experimental import pallas as pl
from jax.experimental.pallas import tpu as pltpu

# ----------------------------- config (small) -------------------------------
B = 2                       # batch
T = 8                       # sequence length
VOCAB = 100
TYPE_VOCAB = 2
MAX_POS = 32
HIDDEN = 32                 # bert hidden_size
NUM_HEADS = 4
HEAD_DIM = HIDDEN // NUM_HEADS
FFN = 64                    # bert intermediate_size
N_LAYERS = 2                # bert encoder layers
LSTM_HIDDEN_DIM = 32        # lstm_hidden_dim
LSTM_H = LSTM_HIDDEN_DIM // 2   # per-direction hidden (bidirectional)
NUM_LABELS = 5
LPAD = 8                    # labels padded to 8 lanes for the CRF kernel
LN_EPS = 1e-12
NEG = -1e9
ATT_SCALE = 1.0 / math.sqrt(HEAD_DIM)


# --------------------------- in-kernel helpers -------------------------------

def _layer_norm(x, g, b):
    mu = jnp.mean(x, axis=-1, keepdims=True)
    var = jnp.mean(jnp.square(x - mu), axis=-1, keepdims=True)
    return (x - mu) * lax.rsqrt(var + LN_EPS) * g + b


def _gelu(y):
    # tanh-approximate GELU
    # TODO(synk): HF BERT default uses erf-based gelu; tanh approx differs slightly.
    return 0.5 * y * (1.0 + jnp.tanh(0.7978845608028654 * (y + 0.044715 * y * y * y)))


def _sigmoid(x):
    # divide moved onto the EUP via approximate reciprocal
    return pl.reciprocal(1.0 + jnp.exp(-x), approx=True)


def _lstm_cell(gates, c):
    # gate order (i, f, g, o) like torch.nn.LSTM
    i_g = _sigmoid(gates[:, 0:LSTM_H])
    f_g = _sigmoid(gates[:, LSTM_H:2 * LSTM_H])
    g_g = jnp.tanh(gates[:, 2 * LSTM_H:3 * LSTM_H])
    o_g = _sigmoid(gates[:, 3 * LSTM_H:4 * LSTM_H])
    c_new = f_g * c + i_g * g_g
    h_new = o_g * jnp.tanh(c_new)
    return h_new, c_new


# ------------------------- fused whole-model kernel ---------------------------
#
# One grid step == one batch element (sequence).  Everything for that sequence
# (encoder -> BiLSTM -> emission -> CRF logZ) stays in VMEM.

def _fused_kernel(
        # scalar prefetch
        mask_ref,                                           # SMEM (B, T) int32
        # VMEM inputs
        emb_ref, bias_ref, eg_ref, eb_ref,
        wqkv_ref, bqkv_ref, wo_ref, bo_ref, ln1g_ref, ln1b_ref,
        wi_ref, bi_ref, wo2_ref, bo2_ref, ln2g_ref, ln2b_ref,
        wih_ref, whhf_ref, whhb_ref, lb_ref,
        wlin_ref, blin_ref, trans_ref, start_ref, end_ref,
        # outputs
        emis_ref, logz_ref,
        # scratch
        g1_ref, g2_ref, h1f_ref, h1b_ref, h2f_ref, h2b_ref):
    bidx = pl.program_id(0)

    # ---------------- synthetic BERT encoder (one sequence, (T, H) slab) -----
    x = _layer_norm(emb_ref[...], eg_ref[...], eb_ref[...])     # (T, H)
    bias = bias_ref[...]                                        # (1, T) additive mask

    for l in range(N_LAYERS):
        # fused QKV projection: one (T,H) x (H,3H) matmul
        qkv = jnp.dot(x, wqkv_ref[l], preferred_element_type=jnp.float32) + bqkv_ref[l]
        q = qkv[:, 0:HIDDEN] * ATT_SCALE
        k = qkv[:, HIDDEN:2 * HIDDEN]
        v = qkv[:, 2 * HIDDEN:3 * HIDDEN]

        heads = []
        for h in range(NUM_HEADS):
            sl = slice(h * HEAD_DIM, (h + 1) * HEAD_DIM)
            s = jnp.einsum("qd,kd->qk", q[:, sl], k[:, sl],
                           preferred_element_type=jnp.float32)   # (T, T)
            s = s + bias
            m = jnp.max(s, axis=-1, keepdims=True)
            p = jnp.exp(s - m)
            p = p * pl.reciprocal(jnp.sum(p, axis=-1, keepdims=True), approx=True)
            heads.append(jnp.dot(p, v[:, sl], preferred_element_type=jnp.float32))
        ctx = jnp.concatenate(heads, axis=-1)                    # (T, H)

        attn = jnp.dot(ctx, wo_ref[l], preferred_element_type=jnp.float32) + bo_ref[l]
        x = _layer_norm(attn + x, ln1g_ref[l], ln1b_ref[l])
        inter = _gelu(jnp.dot(x, wi_ref[l], preferred_element_type=jnp.float32) + bi_ref[l])
        ffn = jnp.dot(inter, wo2_ref[l], preferred_element_type=jnp.float32) + bo2_ref[l]
        x = _layer_norm(ffn + x, ln2g_ref[l], ln2b_ref[l])

    # ---------------- 2-layer bidirectional LSTM -----------------------------
    # Input projection (X @ W_ih for BOTH directions) hoisted out of the
    # recurrence; backward direction uses reversed indexing inside the kernel.
    G4 = 4 * LSTM_H

    def run_lstm_layer(x_in, l, g_ref, hf_ref, hb_ref):
        g_ref[...] = (jnp.dot(x_in, wih_ref[l], preferred_element_type=jnp.float32)
                      + lb_ref[l])                               # (T, 8*LSTM_H)
        whf = whhf_ref[l]                                        # (LSTM_H, 4*LSTM_H)
        whb = whhb_ref[l]

        def step(t, carry):
            hf, cf, hb, cb = carry
            # forward direction, time t
            row_f = g_ref[pl.ds(t, 1), :]                        # (1, 8*LSTM_H)
            gates_f = row_f[:, 0:G4] + jnp.dot(hf, whf, preferred_element_type=jnp.float32)
            hf, cf = _lstm_cell(gates_f, cf)
            hf_ref[pl.ds(t, 1), :] = hf
            # backward direction, time T-1-t (in-kernel reversal)
            rt = T - 1 - t
            row_b = g_ref[pl.ds(rt, 1), :]
            gates_b = row_b[:, G4:2 * G4] + jnp.dot(hb, whb, preferred_element_type=jnp.float32)
            hb, cb = _lstm_cell(gates_b, cb)
            hb_ref[pl.ds(rt, 1), :] = hb
            return (hf, cf, hb, cb)

        z = jnp.zeros((1, LSTM_H), jnp.float32)
        lax.fori_loop(0, T, step, (z, z, z, z))
        return jnp.concatenate([hf_ref[...], hb_ref[...]], axis=-1)   # (T, 2*LSTM_H)

    h1 = run_lstm_layer(x, 0, g1_ref, h1f_ref, h1b_ref)
    h2 = run_lstm_layer(h1, 1, g2_ref, h2f_ref, h2b_ref)
    # inter-layer dropout(0.1) = identity (inference semantics)

    # ---------------- emission linear (labels padded to LPAD lanes) ----------
    emis = jnp.dot(h2, wlin_ref[...], preferred_element_type=jnp.float32) + blin_ref[...]
    emis_ref[...] = emis                                         # (T, LPAD)

    # ---------------- CRF log-partition (forward algorithm) ------------------
    trans = trans_ref[...]                                       # (LPAD, LPAD), pads = -1e9
    rows = lax.broadcasted_iota(jnp.int32, (LPAD, LPAD), 0)
    cols = lax.broadcasted_iota(jnp.int32, (LPAD, LPAD), 1)
    eye = (rows == cols).astype(jnp.float32)

    alpha0 = start_ref[...] + emis[0:1, :]                       # (1, LPAD)

    def crf_step(t, alpha):
        # row -> column via lane reduce against identity (tiny; L=8)
        alpha_col = jnp.sum(eye * alpha, axis=1, keepdims=True)  # (LPAD, 1)
        scores = alpha_col + trans                               # (LPAD, LPAD)
        m = jnp.max(scores, axis=0, keepdims=True)               # (1, LPAD)
        new = m + jnp.log(jnp.sum(jnp.exp(scores - m), axis=0, keepdims=True))
        new = new + emis_ref[pl.ds(t, 1), :]
        keep = mask_ref[bidx, t] > 0
        return jnp.where(keep, new, alpha)

    alpha = lax.fori_loop(1, T, crf_step, alpha0)
    final = alpha + end_ref[...]
    m = jnp.max(final)
    logz = m + jnp.log(jnp.sum(jnp.exp(final - m)))

    lane = lax.broadcasted_iota(jnp.int32, (1, LPAD), 1)
    logz_ref[...] = jnp.where(lane == 0, logz, 0.0)


def fused_model(mask_i32, emb, attn_bias, p):
    enc = p["enc"]
    lstm = p["lstm"]
    NL = N_LAYERS

    in_specs = [
        pl.BlockSpec((None, T, HIDDEN), lambda b, m: (b, 0, 0)),          # emb
        pl.BlockSpec((None, 1, T), lambda b, m: (b, 0, 0)),               # attn bias
        pl.BlockSpec((1, HIDDEN), lambda b, m: (0, 0)),                   # emb ln g
        pl.BlockSpec((1, HIDDEN), lambda b, m: (0, 0)),                   # emb ln b
        pl.BlockSpec((NL, HIDDEN, 3 * HIDDEN), lambda b, m: (0, 0, 0)),   # wqkv
        pl.BlockSpec((NL, 1, 3 * HIDDEN), lambda b, m: (0, 0, 0)),        # bqkv
        pl.BlockSpec((NL, HIDDEN, HIDDEN), lambda b, m: (0, 0, 0)),       # wo
        pl.BlockSpec((NL, 1, HIDDEN), lambda b, m: (0, 0, 0)),            # bo
        pl.BlockSpec((NL, 1, HIDDEN), lambda b, m: (0, 0, 0)),            # ln1_g
        pl.BlockSpec((NL, 1, HIDDEN), lambda b, m: (0, 0, 0)),            # ln1_b
        pl.BlockSpec((NL, HIDDEN, FFN), lambda b, m: (0, 0, 0)),          # wi
        pl.BlockSpec((NL, 1, FFN), lambda b, m: (0, 0, 0)),               # bi
        pl.BlockSpec((NL, FFN, HIDDEN), lambda b, m: (0, 0, 0)),          # wo2
        pl.BlockSpec((NL, 1, HIDDEN), lambda b, m: (0, 0, 0)),            # bo2
        pl.BlockSpec((NL, 1, HIDDEN), lambda b, m: (0, 0, 0)),            # ln2_g
        pl.BlockSpec((NL, 1, HIDDEN), lambda b, m: (0, 0, 0)),            # ln2_b
        pl.BlockSpec((2, HIDDEN, 8 * LSTM_H), lambda b, m: (0, 0, 0)),    # lstm wih (fwd|bwd)
        pl.BlockSpec((2, LSTM_H, 4 * LSTM_H), lambda b, m: (0, 0, 0)),    # lstm whh fwd
        pl.BlockSpec((2, LSTM_H, 4 * LSTM_H), lambda b, m: (0, 0, 0)),    # lstm whh bwd
        pl.BlockSpec((2, 1, 8 * LSTM_H), lambda b, m: (0, 0, 0)),         # lstm bias
        pl.BlockSpec((LSTM_HIDDEN_DIM, LPAD), lambda b, m: (0, 0)),       # linear1 w (padded)
        pl.BlockSpec((1, LPAD), lambda b, m: (0, 0)),                     # linear1 b (padded)
        pl.BlockSpec((LPAD, LPAD), lambda b, m: (0, 0)),                  # crf trans (padded)
        pl.BlockSpec((1, LPAD), lambda b, m: (0, 0)),                     # crf start (padded)
        pl.BlockSpec((1, LPAD), lambda b, m: (0, 0)),                     # crf end (padded)
    ]
    out_specs = [
        pl.BlockSpec((None, T, LPAD), lambda b, m: (b, 0, 0)),            # emissions
        pl.BlockSpec((None, 1, LPAD), lambda b, m: (b, 0, 0)),            # logZ (lane 0)
    ]
    grid_spec = pltpu.PrefetchScalarGridSpec(
        num_scalar_prefetch=1,
        grid=(B,),
        in_specs=in_specs,
        out_specs=out_specs,
        scratch_shapes=[
            pltpu.VMEM((T, 8 * LSTM_H), jnp.float32),   # layer-1 precomputed gates
            pltpu.VMEM((T, 8 * LSTM_H), jnp.float32),   # layer-2 precomputed gates
            pltpu.VMEM((T, LSTM_H), jnp.float32),       # layer-1 fwd hidden
            pltpu.VMEM((T, LSTM_H), jnp.float32),       # layer-1 bwd hidden
            pltpu.VMEM((T, LSTM_H), jnp.float32),       # layer-2 fwd hidden
            pltpu.VMEM((T, LSTM_H), jnp.float32),       # layer-2 bwd hidden
        ],
    )
    emis_pad, logz3 = pl.pallas_call(
        _fused_kernel,
        grid_spec=grid_spec,
        out_shape=(jax.ShapeDtypeStruct((B, T, LPAD), jnp.float32),
                   jax.ShapeDtypeStruct((B, 1, LPAD), jnp.float32)),
        compiler_params=pltpu.CompilerParams(
            dimension_semantics=("parallel",)),           # 2 sequences -> 2 TCs on v7x
    )(mask_i32, emb, attn_bias,
      p["emb_ln_g"], p["emb_ln_b"],
      enc["wqkv"], enc["bqkv"], enc["wo"], enc["bo"], enc["ln1_g"], enc["ln1_b"],
      enc["wi"], enc["bi"], enc["wo2"], enc["bo2"], enc["ln2_g"], enc["ln2_b"],
      lstm["wih"], lstm["whhf"], lstm["whhb"], lstm["b"],
      p["lin_w_pad"], p["lin_b_pad"],
      p["crf_trans_pad"], p["crf_start_pad"], p["crf_end_pad"])
    return emis_pad, logz3[:, 0, 0]


# ------------------------------- JAX glue ------------------------------------

def crf_gold_score(emissions, tags, maskf, trans, start, end):
    emit = jnp.take_along_axis(emissions, tags[..., None], axis=-1)[..., 0]   # (B, T)
    emit_sc = jnp.sum(emit * maskf, axis=1)
    trans_sc = jnp.sum(trans[tags[:, :-1], tags[:, 1:]] * maskf[:, 1:], axis=1)
    start_sc = start[tags[:, 0]]
    last_idx = jnp.sum(maskf, axis=1).astype(jnp.int32) - 1
    last_tag = jnp.take_along_axis(tags, last_idx[:, None], axis=1)[:, 0]
    end_sc = end[last_tag]
    return emit_sc + trans_sc + start_sc + end_sc


def crf_viterbi_decode(emissions, mask, trans, start, end):
    Bb, Tt, L = emissions.shape
    score0 = start[None, :] + emissions[:, 0]                     # (B, L)

    def step(score, inp):
        emit_t, m_t = inp
        cand = score[:, :, None] + trans[None, :, :]              # (B, Lprev, Lnext)
        best_prev = jnp.argmax(cand, axis=1).astype(jnp.int32)    # (B, L)
        best = jnp.max(cand, axis=1) + emit_t
        new_score = jnp.where(m_t[:, None] > 0, best, score)
        keep_bp = jnp.broadcast_to(jnp.arange(L, dtype=jnp.int32)[None, :], (Bb, L))
        bp = jnp.where(m_t[:, None] > 0, best_prev, keep_bp)
        return new_score, bp

    xs = (jnp.transpose(emissions[:, 1:], (1, 0, 2)),
          jnp.transpose(mask[:, 1:], (1, 0)))
    final, bps = lax.scan(step, score0, xs)                       # bps: (T-1, B, L)
    final = final + end[None, :]
    last_tag = jnp.argmax(final, axis=1).astype(jnp.int32)        # (B,)

    def back(tag_next, bp_t):
        tag_here = jnp.take_along_axis(bp_t, tag_next[:, None], axis=1)[:, 0]
        return tag_here, tag_here

    _, prev_tags = lax.scan(back, last_tag, bps, reverse=True)    # (T-1, B)
    tags = jnp.concatenate([jnp.transpose(prev_tags, (1, 0)), last_tag[:, None]], axis=1)
    return tags


@jax.jit
def forward(params, ids, masks, token_type_ids, target_tags):
    # embedding gathers stay in glue (data-dependent gather)
    positions = jnp.arange(T, dtype=jnp.int32)[None, :]
    emb = (params["word_emb"][ids]
           + params["pos_emb"][positions]
           + params["type_emb"][token_type_ids])                  # (B, T, H)
    maskf = masks.astype(jnp.float32)
    attn_bias = ((1.0 - maskf) * NEG).reshape(B, 1, T)

    emis_pad, logz = fused_model(masks.astype(jnp.int32), emb, attn_bias, params)
    emissions = emis_pad[:, :, :NUM_LABELS]                       # (B, T, NUM_LABELS)

    gold = crf_gold_score(emissions, target_tags, maskf,
                          params["crf_trans"], params["crf_start"], params["crf_end"])
    loss = jnp.sum(logz - gold)                                   # sum of per-sequence NLL
    tags = crf_viterbi_decode(emissions, masks, params["crf_trans"],
                              params["crf_start"], params["crf_end"])
    return tags, loss


# ------------------------------- params --------------------------------------

def init_params(key):
    def nrm(k, shape, scale=0.02):
        return scale * jax.random.normal(k, shape, dtype=jnp.float32)

    keys = iter(jax.random.split(key, 64))
    p = {
        "word_emb": nrm(next(keys), (VOCAB, HIDDEN)),
        "pos_emb": nrm(next(keys), (MAX_POS, HIDDEN)),
        "type_emb": nrm(next(keys), (TYPE_VOCAB, HIDDEN)),
        "emb_ln_g": jnp.ones((1, HIDDEN), jnp.float32),
        "emb_ln_b": jnp.zeros((1, HIDDEN), jnp.float32),
    }
    p["enc"] = {
        "wqkv": nrm(next(keys), (N_LAYERS, HIDDEN, 3 * HIDDEN)),   # [..., :H]=Q, [H:2H]=K, [2H:]=V
        "bqkv": jnp.zeros((N_LAYERS, 1, 3 * HIDDEN), jnp.float32),
        "wo": nrm(next(keys), (N_LAYERS, HIDDEN, HIDDEN)),
        "bo": jnp.zeros((N_LAYERS, 1, HIDDEN), jnp.float32),
        "ln1_g": jnp.ones((N_LAYERS, 1, HIDDEN), jnp.float32),
        "ln1_b": jnp.zeros((N_LAYERS, 1, HIDDEN), jnp.float32),
        "wi": nrm(next(keys), (N_LAYERS, HIDDEN, FFN)),
        "bi": jnp.zeros((N_LAYERS, 1, FFN), jnp.float32),
        "wo2": nrm(next(keys), (N_LAYERS, FFN, HIDDEN)),
        "bo2": jnp.zeros((N_LAYERS, 1, HIDDEN), jnp.float32),
        "ln2_g": jnp.ones((N_LAYERS, 1, HIDDEN), jnp.float32),
        "ln2_b": jnp.zeros((N_LAYERS, 1, HIDDEN), jnp.float32),
    }
    # 2-layer bidirectional LSTM.  Both layers have a 32-dim input here
    # (HIDDEN == 2*LSTM_H), so the layers stack on a leading axis.
    # Gate layout per direction: (i, f, g, o); columns [0:4H]=fwd, [4H:8H]=bwd.
    p["lstm"] = {
        "wih": nrm(next(keys), (2, HIDDEN, 8 * LSTM_H), 0.1),
        "whhf": nrm(next(keys), (2, LSTM_H, 4 * LSTM_H), 0.1),
        "whhb": nrm(next(keys), (2, LSTM_H, 4 * LSTM_H), 0.1),
        "b": nrm(next(keys), (2, 1, 8 * LSTM_H), 0.1),            # b_ih + b_hh combined
    }
    lin_w = nrm(next(keys), (LSTM_HIDDEN_DIM, NUM_LABELS))
    p["lin_w_pad"] = (jnp.zeros((LSTM_HIDDEN_DIM, LPAD), jnp.float32)
                      .at[:, :NUM_LABELS].set(lin_w))
    p["lin_b_pad"] = jnp.zeros((1, LPAD), jnp.float32)

    trans = nrm(next(keys), (NUM_LABELS, NUM_LABELS), 0.1)
    start = nrm(next(keys), (NUM_LABELS,), 0.1)
    end = nrm(next(keys), (NUM_LABELS,), 0.1)
    p["crf_trans"] = trans
    p["crf_start"] = start
    p["crf_end"] = end
    # padded copies for the in-kernel logZ: padded labels unreachable (-1e9)
    p["crf_trans_pad"] = (jnp.full((LPAD, LPAD), NEG, jnp.float32)
                          .at[:NUM_LABELS, :NUM_LABELS].set(trans))
    p["crf_start_pad"] = jnp.full((1, LPAD), NEG, jnp.float32).at[0, :NUM_LABELS].set(start)
    p["crf_end_pad"] = jnp.full((1, LPAD), NEG, jnp.float32).at[0, :NUM_LABELS].set(end)
    return p


# --------------------------------- main ---------------------------------------

if __name__ == "__main__":
    key = jax.random.PRNGKey(0)
    kp, kd = jax.random.split(key)
    params = init_params(kp)

    ids = jax.random.randint(jax.random.fold_in(kd, 0), (B, T), 0, VOCAB, dtype=jnp.int32)
    masks = jnp.ones((B, T), dtype=jnp.int32)
    token_type_ids = jnp.zeros((B, T), dtype=jnp.int32)
    target_tags = jax.random.randint(jax.random.fold_in(kd, 1), (B, T), 0, NUM_LABELS,
                                     dtype=jnp.int32)

    tags, loss = forward(params, ids, masks, token_type_ids, target_tags)
    jax.block_until_ready((tags, loss))
    assert tags.shape == (B, T) and bool(jnp.isfinite(loss))
    print("KERNEL_OK")
</pallas_src>

<mosaic_0001>
module attributes {stable_mosaic.version = 11 : i64} {
  func.func @_fused_kernel(%arg0: i32, %arg1: memref<2x8xi32, #tpu.memory_space<smem>>, %arg2: memref<1x8x32xf32, #tpu.memory_space<vmem>>, %arg3: memref<1x1x8xf32, #tpu.memory_space<vmem>>, %arg4: memref<1x32xf32, #tpu.memory_space<vmem>>, %arg5: memref<1x32xf32, #tpu.memory_space<vmem>>, %arg6: memref<2x32x96xf32, #tpu.memory_space<vmem>>, %arg7: memref<2x1x96xf32, #tpu.memory_space<vmem>>, %arg8: memref<2x32x32xf32, #tpu.memory_space<vmem>>, %arg9: memref<2x1x32xf32, #tpu.memory_space<vmem>>, %arg10: memref<2x1x32xf32, #tpu.memory_space<vmem>>, %arg11: memref<2x1x32xf32, #tpu.memory_space<vmem>>, %arg12: memref<2x32x64xf32, #tpu.memory_space<vmem>>, %arg13: memref<2x1x64xf32, #tpu.memory_space<vmem>>, %arg14: memref<2x64x32xf32, #tpu.memory_space<vmem>>, %arg15: memref<2x1x32xf32, #tpu.memory_space<vmem>>, %arg16: memref<2x1x32xf32, #tpu.memory_space<vmem>>, %arg17: memref<2x1x32xf32, #tpu.memory_space<vmem>>, %arg18: memref<2x32x128xf32, #tpu.memory_space<vmem>>, %arg19: memref<2x16x64xf32, #tpu.memory_space<vmem>>, %arg20: memref<2x16x64xf32, #tpu.memory_space<vmem>>, %arg21: memref<2x1x128xf32, #tpu.memory_space<vmem>>, %arg22: memref<32x8xf32, #tpu.memory_space<vmem>>, %arg23: memref<1x8xf32, #tpu.memory_space<vmem>>, %arg24: memref<8x8xf32, #tpu.memory_space<vmem>>, %arg25: memref<1x8xf32, #tpu.memory_space<vmem>>, %arg26: memref<1x8xf32, #tpu.memory_space<vmem>>, %arg27: memref<1x8x8xf32, #tpu.memory_space<vmem>>, %arg28: memref<1x1x8xf32, #tpu.memory_space<vmem>>, %arg29: memref<8x128xf32, #tpu.memory_space<vmem>>, %arg30: memref<8x128xf32, #tpu.memory_space<vmem>>, %arg31: memref<8x16xf32, #tpu.memory_space<vmem>>, %arg32: memref<8x16xf32, #tpu.memory_space<vmem>>, %arg33: memref<8x16xf32, #tpu.memory_space<vmem>>, %arg34: memref<8x16xf32, #tpu.memory_space<vmem>>) attributes {dimension_semantics = [#tpu.dimension_semantics<parallel>], iteration_bounds = array<i64: 2>, scalar_prefetch = 1 : i64, scratch_operands = 6 : i64, tpu.core_type = #tpu.core_type<tc>, window_params = [{transform_indices = @transform_0, window_bounds = array<i64: 1, 8, 32>}, {transform_indices = @transform_1, window_bounds = array<i64: 1, 1, 8>}, {pipeline_mode = #tpu.pipeline_mode<synchronous>, transform_indices = @transform_2, window_bounds = array<i64: 1, 32>}, {pipeline_mode = #tpu.pipeline_mode<synchronous>, transform_indices = @transform_3, window_bounds = array<i64: 1, 32>}, {pipeline_mode = #tpu.pipeline_mode<synchronous>, transform_indices = @transform_4, window_bounds = array<i64: 2, 32, 96>}, {pipeline_mode = #tpu.pipeline_mode<synchronous>, transform_indices = @transform_5, window_bounds = array<i64: 2, 1, 96>}, {pipeline_mode = #tpu.pipeline_mode<synchronous>, transform_indices = @transform_6, window_bounds = array<i64: 2, 32, 32>}, {pipeline_mode = #tpu.pipeline_mode<synchronous>, transform_indices = @transform_7, window_bounds = array<i64: 2, 1, 32>}, {pipeline_mode = #tpu.pipeline_mode<synchronous>, transform_indices = @transform_8, window_bounds = array<i64: 2, 1, 32>}, {pipeline_mode = #tpu.pipeline_mode<synchronous>, transform_indices = @transform_9, window_bounds = array<i64: 2, 1, 32>}, {pipeline_mode = #tpu.pipeline_mode<synchronous>, transform_indices = @transform_10, window_bounds = array<i64: 2, 32, 64>}, {pipeline_mode = #tpu.pipeline_mode<synchronous>, transform_indices = @transform_11, window_bounds = array<i64: 2, 1, 64>}, {pipeline_mode = #tpu.pipeline_mode<synchronous>, transform_indices = @transform_12, window_bounds = array<i64: 2, 64, 32>}, {pipeline_mode = #tpu.pipeline_mode<synchronous>, transform_indices = @transform_13, window_bounds = array<i64: 2, 1, 32>}, {pipeline_mode = #tpu.pipeline_mode<synchronous>, transform_indices = @transform_14, window_bounds = array<i64: 2, 1, 32>}, {pipeline_mode = #tpu.pipeline_mode<synchronous>, transform_indices = @transform_15, window_bounds = array<i64: 2, 1, 32>}, {pipeline_mode = #tpu.pipeline_mode<synchronous>, transform_indices = @transform_16, window_bounds = array<i64: 2, 32, 128>}, {pipeline_mode = #tpu.pipeline_mode<synchronous>, transform_indices = @transform_17, window_bounds = array<i64: 2, 16, 64>}, {pipeline_mode = #tpu.pipeline_mode<synchronous>, transform_indices = @transform_18, window_bounds = array<i64: 2, 16, 64>}, {pipeline_mode = #tpu.pipeline_mode<synchronous>, transform_indices = @transform_19, window_bounds = array<i64: 2, 1, 128>}, {pipeline_mode = #tpu.pipeline_mode<synchronous>, transform_indices = @transform_20, window_bounds = array<i64: 32, 8>}, {pipeline_mode = #tpu.pipeline_mode<synchronous>, transform_indices = @transform_21, window_bounds = array<i64: 1, 8>}, {pipeline_mode = #tpu.pipeline_mode<synchronous>, transform_indices = @transform_22, window_bounds = array<i64: 8, 8>}, {pipeline_mode = #tpu.pipeline_mode<synchronous>, transform_indices = @transform_23, window_bounds = array<i64: 1, 8>}, {pipeline_mode = #tpu.pipeline_mode<synchronous>, transform_indices = @transform_24, window_bounds = array<i64: 1, 8>}, {transform_indices = @transform_25, window_bounds = array<i64: 1, 8, 8>}, {transform_indices = @transform_26, window_bounds = array<i64: 1, 1, 8>}]} {
    %c0 = arith.constant 0 : index
    %c0_0 = arith.constant 0 : index
    %c0_1 = arith.constant 0 : index
    %0 = vector.load %arg2[%c0, %c0_0, %c0_1] : memref<1x8x32xf32, #tpu.memory_space<vmem>>, vector<1x8x32xf32>
    %1 = vector.shape_cast %0 : vector<1x8x32xf32> to vector<8x32xf32>
    %c0_2 = arith.constant 0 : index
    %c0_3 = arith.constant 0 : index
    %2 = vector.load %arg4[%c0_2, %c0_3] : memref<1x32xf32, #tpu.memory_space<vmem>>, vector<1x32xf32>
    %c0_4 = arith.constant 0 : index
    %c0_5 = arith.constant 0 : index
    %3 = vector.load %arg5[%c0_4, %c0_5] : memref<1x32xf32, #tpu.memory_space<vmem>>, vector<1x32xf32>
    %cst = arith.constant dense<0.000000e+00> : vector<8xf32>
    %4 = vector.multi_reduction <add>, %1, %cst [1] : vector<8x32xf32> to vector<8xf32>
    %5 = vector.shape_cast %4 : vector<8xf32> to vector<8x1xf32>
    %cst_6 = arith.constant 3.200000e+01 : f32
    %6 = vector.broadcast %cst_6 : f32 to vector<8x1xf32>
    %7 = arith.divf %5, %6 : vector<8x1xf32>
    %8 = vector.broadcast %7 : vector<8x1xf32> to vector<8x32xf32>
    %9 = arith.subf %1, %8 : vector<8x32xf32>
    %10 = arith.mulf %9, %9 : vector<8x32xf32>
    %cst_7 = arith.constant dense<0.000000e+00> : vector<8xf32>
    %11 = vector.multi_reduction <add>, %10, %cst_7 [1] : vector<8x32xf32> to vector<8xf32>
    %12 = vector.shape_cast %11 : vector<8xf32> to vector<8x1xf32>
    %cst_8 = arith.constant 3.200000e+01 : f32
    %13 = vector.broadcast %cst_8 : f32 to vector<8x1xf32>
    %14 = arith.divf %12, %13 : vector<8x1xf32>
    %15 = vector.broadcast %7 : vector<8x1xf32> to vector<8x32xf32>
    %16 = arith.subf %1, %15 : vector<8x32xf32>
    %cst_9 = arith.constant 9.99999996E-13 : f32
    %17 = vector.broadcast %cst_9 : f32 to vector<8x1xf32>
    %18 = arith.addf %14, %17 : vector<8x1xf32>
    %19 = math.rsqrt %18 : vector<8x1xf32>
    %20 = vector.broadcast %19 : vector<8x1xf32> to vector<8x32xf32>
    %21 = arith.mulf %16, %20 : vector<8x32xf32>
    %22 = vector.broadcast %2 : vector<1x32xf32> to vector<8x32xf32>
    %23 = arith.mulf %21, %22 : vector<8x32xf32>
    %24 = vector.broadcast %3 : vector<1x32xf32> to vector<8x32xf32>
    %25 = arith.addf %23, %24 : vector<8x32xf32>
    %c0_10 = arith.constant 0 : index
    %c0_11 = arith.constant 0 : index
    %c0_12 = arith.constant 0 : index
    %26 = vector.load %arg3[%c0_10, %c0_11, %c0_12] : memref<1x1x8xf32, #tpu.memory_space<vmem>>, vector<1x1x8xf32>
    %27 = vector.shape_cast %26 : vector<1x1x8xf32> to vector<1x8xf32>
    %c0_13 = arith.constant 0 : index
    %c0_14 = arith.constant 0 : index
    %c0_15 = arith.constant 0 : index
    %28 = vector.load %arg6[%c0_13, %c0_14, %c0_15] : memref<2x32x96xf32, #tpu.memory_space<vmem>>, vector<1x32x96xf32>
    %29 = vector.shape_cast %28 : vector<1x32x96xf32> to vector<32x96xf32>
    %cst_16 = arith.constant dense<0.000000e+00> : vector<8x96xf32>
    %30 = tpu.matmul %25, %29, %cst_16 {dimension_numbers = #tpu.dot_dimension_numbers<[1], [0], [0], [1], [0, 0, 1, 1], [], []>} : vector<8x32xf32>, vector<32x96xf32>, vector<8x96xf32> -> vector<8x96xf32>
    %c0_17 = arith.constant 0 : index
    %c0_18 = arith.constant 0 : index
    %c0_19 = arith.constant 0 : index
    %31 = vector.load %arg7[%c0_17, %c0_18, %c0_19] : memref<2x1x96xf32, #tpu.memory_space<vmem>>, vector<1x1x96xf32>
    %32 = vector.shape_cast %31 : vector<1x1x96xf32> to vector<1x96xf32>
    %33 = vector.broadcast %32 : vector<1x96xf32> to vector<8x96xf32>
    %34 = arith.addf %30, %33 : vector<8x96xf32>
    %35 = vector.extract_strided_slice %34 {offsets = [0, 0], sizes = [8, 32], strides = [1, 1]} : vector<8x96xf32> to vector<8x32xf32>
    %cst_20 = arith.constant 0.353553385 : f32
    %36 = vector.broadcast %cst_20 : f32 to vector<8x32xf32>
    %37 = arith.mulf %35, %36 : vector<8x32xf32>
    %38 = vector.extract_strided_slice %34 {offsets = [0, 32], sizes = [8, 32], strides = [1, 1]} : vector<8x96xf32> to vector<8x32xf32>
    %39 = vector.extract_strided_slice %34 {offsets = [0, 64], sizes = [8, 32], strides = [1, 1]} : vector<8x96xf32> to vector<8x32xf32>
    %40 = vector.extract_strided_slice %37 {offsets = [0, 0], sizes = [8, 8], strides = [1, 1]} : vector<8x32xf32> to vector<8x8xf32>
    %41 = vector.extract_strided_slice %38 {offsets = [0, 0], sizes = [8, 8], strides = [1, 1]} : vector<8x32xf32> to vector<8x8xf32>
    "tpu.trace_start"() <{level = 10 : i32, message = "qd,kd->qk"}> : () -> ()
    %cst_21 = arith.constant dense<0.000000e+00> : vector<8x8xf32>
    %42 = tpu.matmul %40, %41, %cst_21 {dimension_numbers = #tpu.dot_dimension_numbers<[1], [1], [0], [0], [0, 0, 1, 0], [], []>} : vector<8x8xf32>, vector<8x8xf32>, vector<8x8xf32> -> vector<8x8xf32>
    "tpu.trace_stop"() : () -> ()
    %43 = vector.broadcast %27 : vector<1x8xf32> to vector<8x8xf32>
    %44 = arith.addf %42, %43 : vector<8x8xf32>
    %cst_22 = arith.constant dense<0xFF800000> : vector<8xf32>
    %45 = vector.multi_reduction <maximumf>, %44, %cst_22 [1] : vector<8x8xf32> to vector<8xf32>
    %46 = vector.shape_cast %45 : vector<8xf32> to vector<8x1xf32>
    %47 = vector.broadcast %46 : vector<8x1xf32> to vector<8x8xf32>
    %48 = arith.subf %44, %47 : vector<8x8xf32>
    %49 = math.exp %48 : vector<8x8xf32>
    %cst_23 = arith.constant dense<0.000000e+00> : vector<8xf32>
    %50 = vector.multi_reduction <add>, %49, %cst_23 [1] : vector<8x8xf32> to vector<8xf32>
    %51 = vector.shape_cast %50 : vector<8xf32> to vector<8x1xf32>
    %52 = tpu.reciprocal %51 {approx = true} : vector<8x1xf32> -> vector<8x1xf32>
    %53 = vector.broadcast %52 : vector<8x1xf32> to vector<8x8xf32>
    %54 = arith.mulf %49, %53 : vector<8x8xf32>
    %55 = vector.extract_strided_slice %39 {offsets = [0, 0], sizes = [8, 8], strides = [1, 1]} : vector<8x32xf32> to vector<8x8xf32>
    %cst_24 = arith.constant dense<0.000000e+00> : vector<8x8xf32>
    %56 = tpu.matmul %54, %55, %cst_24 {dimension_numbers = #tpu.dot_dimension_numbers<[1], [0], [0], [1], [0, 0, 1, 1], [], []>} : vector<8x8xf32>, vector<8x8xf32>, vector<8x8xf32> -> vector<8x8xf32>
    %57 = vector.extract_strided_slice %37 {offsets = [0, 8], sizes = [8, 8], strides = [1, 1]} : vector<8x32xf32> to vector<8x8xf32>
    %58 = vector.extract_strided_slice %38 {offsets = [0, 8], sizes = [8, 8], strides = [1, 1]} : vector<8x32xf32> to vector<8x8xf32>
    "tpu.trace_start"() <{level = 10 : i32, message = "qd,kd->qk"}> : () -> ()
    %cst_25 = arith.constant dense<0.000000e+00> : vector<8x8xf32>
    %59 = tpu.matmul %57, %58, %cst_25 {dimension_numbers = #tpu.dot_dimension_numbers<[1], [1], [0], [0], [0, 0, 1, 0], [], []>} : vector<8x8xf32>, vector<8x8xf32>, vector<8x8xf32> -> vector<8x8xf32>
    "tpu.trace_stop"() : () -> ()
    %60 = vector.broadcast %27 : vector<1x8xf32> to vector<8x8xf32>
    %61 = arith.addf %59, %60 : vector<8x8xf32>
    %cst_26 = arith.constant dense<0xFF800000> : vector<8xf32>
    %62 = vector.multi_reduction <maximumf>, %61, %cst_26 [1] : vector<8x8xf32> to vector<8xf32>
    %63 = vector.shape_cast %62 : vector<8xf32> to vector<8x1xf32>
    %64 = vector.broadcast %63 : vector<8x1xf32> to vector<8x8xf32>
    %65 = arith.subf %61, %64 : vector<8x8xf32>
    %66 = math.exp %65 : vector<8x8xf32>
    %cst_27 = arith.constant dense<0.000000e+00> : vector<8xf32>
    %67 = vector.multi_reduction <add>, %66, %cst_27 [1] : vector<8x8xf32> to vector<8xf32>
    %68 = vector.shape_cast %67 : vector<8xf32> to vector<8x1xf32>
    %69 = tpu.reciprocal %68 {approx = true} : vector<8x1xf32> -> vector<8x1xf32>
    %70 = vector.broadcast %69 : vector<8x1xf32> to vector<8x8xf32>
    %71 = arith.mulf %66, %70 : vector<8x8xf32>
    %72 = vector.extract_strided_slice %39 {offsets = [0, 8], sizes = [8, 8], strides = [1, 1]} : vector<8x32xf32> to vector<8x8xf32>
    %cst_28 = arith.constant dense<0.000000e+00> : vector<8x8xf32>
    %73 = tpu.matmul %71, %72, %cst_28 {dimension_numbers = #tpu.dot_dimension_numbers<[1], [0], [0], [1], [0, 0, 1, 1], [], []>} : vector<8x8xf32>, vector<8x8xf32>, vector<8x8xf32> -> vector<8x8xf32>
    %74 = vector.extract_strided_slice %37 {offsets = [0, 16], sizes = [8, 8], strides = [1, 1]} : vector<8x32xf32> to vector<8x8xf32>
    %75 = vector.extract_strided_slice %38 {offsets = [0, 16], sizes = [8, 8], strides = [1, 1]} : vector<8x32xf32> to vector<8x8xf32>
    "tpu.trace_start"() <{level = 10 : i32, message = "qd,kd->qk"}> : () -> ()
    %cst_29 = arith.constant dense<0.000000e+00> : vector<8x8xf32>
    %76 = tpu.matmul %74, %75, %cst_29 {dimension_numbers = #tpu.dot_dimension_numbers<[1], [1], [0], [0], [0, 0, 1, 0], [], []>} : vector<8x8xf32>, vector<8x8xf32>, vector<8x8xf32> -> vector<8x8xf32>
    "tpu.trace_stop"() : () -> ()
    %77 = vector.broadcast %27 : vector<1x8xf32> to vector<8x8xf32>
    %78 = arith.addf %76, %77 : vector<8x8xf32>
    %cst_30 = arith.constant dense<0xFF800000> : vector<8xf32>
    %79 = vector.multi_reduction <maximumf>, %78, %cst_30 [1] : vector<8x8xf32> to vector<8xf32>
    %80 = vector.shape_cast %79 : vector<8xf32> to vector<8x1xf32>
    %81 = vector.broadcast %80 : vector<8x1xf32> to vector<8x8xf32>
    %82 = arith.subf %78, %81 : vector<8x8xf32>
    %83 = math.exp %82 : vector<8x8xf32>
    %cst_31 = arith.constant dense<0.000000e+00> : vector<8xf32>
    %84 = vector.multi_reduction <add>, %83, %cst_31 [1] : vector<8x8xf32> to vector<8xf32>
    %85 = vector.shape_cast %84 : vector<8xf32> to vector<8x1xf32>
    %86 = tpu.reciprocal %85 {approx = true} : vector<8x1xf32> -> vector<8x1xf32>
    %87 = vector.broadcast %86 : vector<8x1xf32> to vector<8x8xf32>
    %88 = arith.mulf %83, %87 : vector<8x8xf32>
    %89 = vector.extract_strided_slice %39 {offsets = [0, 16], sizes = [8, 8], strides = [1, 1]} : vector<8x32xf32> to vector<8x8xf32>
    %cst_32 = arith.constant dense<0.000000e+00> : vector<8x8xf32>
    %90 = tpu.matmul %88, %89, %cst_32 {dimension_numbers = #tpu.dot_dimension_numbers<[1], [0], [0], [1], [0, 0, 1, 1], [], []>} : vector<8x8xf32>, vector<8x8xf32>, vector<8x8xf32> -> vector<8x8xf32>
    %91 = vector.extract_strided_slice %37 {offsets = [0, 24], sizes = [8, 8], strides = [1, 1]} : vector<8x32xf32> to vector<8x8xf32>
    %92 = vector.extract_strided_slice %38 {offsets = [0, 24], sizes = [8, 8], strides = [1, 1]} : vector<8x32xf32> to vector<8x8xf32>
    "tpu.trace_start"() <{level = 10 : i32, message = "qd,kd->qk"}> : () -> ()
    %cst_33 = arith.constant dense<0.000000e+00> : vector<8x8xf32>
    %93 = tpu.matmul %91, %92, %cst_33 {dimension_numbers = #tpu.dot_dimension_numbers<[1], [1], [0], [0], [0, 0, 1, 0], [], []>} : vector<8x8xf32>, vector<8x8xf32>, vector<8x8xf32> -> vector<8x8xf32>
    "tpu.trace_stop"() : () -> ()
    %94 = vector.broadcast %27 : vector<1x8xf32> to vector<8x8xf32>
    %95 = arith.addf %93, %94 : vector<8x8xf32>
    %cst_34 = arith.constant dense<0xFF800000> : vector<8xf32>
    %96 = vector.multi_reduction <maximumf>, %95, %cst_34 [1] : vector<8x8xf32> to vector<8xf32>
    %97 = vector.shape_cast %96 : vector<8xf32> to vector<8x1xf32>
    %98 = vector.broadcast %97 : vector<8x1xf32> to vector<8x8xf32>
    %99 = arith.subf %95, %98 : vector<8x8xf32>
    %100 = math.exp %99 : vector<8x8xf32>
    %cst_35 = arith.constant dense<0.000000e+00> : vector<8xf32>
    %101 = vector.multi_reduction <add>, %100, %cst_35 [1] : vector<8x8xf32> to vector<8xf32>
    %102 = vector.shape_cast %101 : vector<8xf32> to vector<8x1xf32>
    %103 = tpu.reciprocal %102 {approx = true} : vector<8x1xf32> -> vector<8x1xf32>
    %104 = vector.broadcast %103 : vector<8x1xf32> to vector<8x8xf32>
    %105 = arith.mulf %100, %104 : vector<8x8xf32>
    %106 = vector.extract_strided_slice %39 {offsets = [0, 24], sizes = [8, 8], strides = [1, 1]} : vector<8x32xf32> to vector<8x8xf32>
    %cst_36 = arith.constant dense<0.000000e+00> : vector<8x8xf32>
    %107 = tpu.matmul %105, %106, %cst_36 {dimension_numbers = #tpu.dot_dimension_numbers<[1], [0], [0], [1], [0, 0, 1, 1], [], []>} : vector<8x8xf32>, vector<8x8xf32>, vector<8x8xf32> -> vector<8x8xf32>
    %108 = tpu.concatenate %56, %73, %90, %107 in 1 : vector<8x8xf32>, vector<8x8xf32>, vector<8x8xf32>, vector<8x8xf32> -> vector<8x32xf32>
    %c0_37 = arith.constant 0 : index
    %c0_38 = arith.constant 0 : index
    %c0_39 = arith.constant 0 : index
    %109 = vector.load %arg8[%c0_37, %c0_38, %c0_39] : memref<2x32x32xf32, #tpu.memory_space<vmem>>, vector<1x32x32xf32>
    %110 = vector.shape_cast %109 : vector<1x32x32xf32> to vector<32x32xf32>
    %cst_40 = arith.constant dense<0.000000e+00> : vector<8x32xf32>
    %111 = tpu.matmul %108, %110, %cst_40 {dimension_numbers = #tpu.dot_dimension_numbers<[1], [0], [0], [1], [0, 0, 1, 1], [], []>} : vector<8x32xf32>, vector<32x32xf32>, vector<8x32xf32> -> vector<8x32xf32>
    %c0_41 = arith.constant 0 : index
    %c0_42 = arith.constant 0 : index
    %c0_43 = arith.constant 0 : index
    %112 = vector.load %arg9[%c0_41, %c0_42, %c0_43] : memref<2x1x32xf32, #tpu.memory_space<vmem>>, vector<1x1x32xf32>
    %113 = vector.shape_cast %112 : vector<1x1x32xf32> to vector<1x32xf32>
    %114 = vector.broadcast %113 : vector<1x32xf32> to vector<8x32xf32>
    %115 = arith.addf %111, %114 : vector<8x32xf32>
    %116 = arith.addf %115, %25 : vector<8x32xf32>
    %c0_44 = arith.constant 0 : index
    %c0_45 = arith.constant 0 : index
    %c0_46 = arith.constant 0 : index
    %117 = vector.load %arg10[%c0_44, %c0_45, %c0_46] : memref<2x1x32xf32, #tpu.memory_space<vmem>>, vector<1x1x32xf32>
    %118 = vector.shape_cast %117 : vector<1x1x32xf32> to vector<1x32xf32>
    %c0_47 = arith.constant 0 : index
    %c0_48 = arith.constant 0 : index
    %c0_49 = arith.constant 0 : index
    %119 = vector.load %arg11[%c0_47, %c0_48, %c0_49] : memref<2x1x32xf32, #tpu.memory_space<vmem>>, vector<1x1x32xf32>
    %120 = vector.shape_cast %119 : vector<1x1x32xf32> to vector<1x32xf32>
    %cst_50 = arith.constant dense<0.000000e+00> : vector<8xf32>
    %121 = vector.multi_reduction <add>, %116, %cst_50 [1] : vector<8x32xf32> to vector<8xf32>
    %122 = vector.shape_cast %121 : vector<8xf32> to vector<8x1xf32>
    %cst_51 = arith.constant 3.200000e+01 : f32
    %123 = vector.broadcast %cst_51 : f32 to vector<8x1xf32>
    %124 = arith.divf %122, %123 : vector<8x1xf32>
    %125 = vector.broadcast %124 : vector<8x1xf32> to vector<8x32xf32>
    %126 = arith.subf %116, %125 : vector<8x32xf32>
    %127 = arith.mulf %126, %126 : vector<8x32xf32>
    %cst_52 = arith.constant dense<0.000000e+00> : vector<8xf32>
    %128 = vector.multi_reduction <add>, %127, %cst_52 [1] : vector<8x32xf32> to vector<8xf32>
    %129 = vector.shape_cast %128 : vector<8xf32> to vector<8x1xf32>
    %cst_53 = arith.constant 3.200000e+01 : f32
    %130 = vector.broadcast %cst_53 : f32 to vector<8x1xf32>
    %131 = arith.divf %129, %130 : vector<8x1xf32>
    %132 = vector.broadcast %124 : vector<8x1xf32> to vector<8x32xf32>
    %133 = arith.subf %116, %132 : vector<8x32xf32>
    %cst_54 = arith.constant 9.99999996E-13 : f32
    %134 = vector.broadcast %cst_54 : f32 to vector<8x1xf32>
    %135 = arith.addf %131, %134 : vector<8x1xf32>
    %136 = math.rsqrt %135 : vector<8x1xf32>
    %137 = vector.broadcast %136 : vector<8x1xf32> to vector<8x32xf32>
    %138 = arith.mulf %133, %137 : vector<8x32xf32>
    %139 = vector.broadcast %118 : vector<1x32xf32> to vector<8x32xf32>
    %140 = arith.mulf %138, %139 : vector<8x32xf32>
    %141 = vector.broadcast %120 : vector<1x32xf32> to vector<8x32xf32>
    %142 = arith.addf %140, %141 : vector<8x32xf32>
    %c0_55 = arith.constant 0 : index
    %c0_56 = arith.constant 0 : index
    %c0_57 = arith.constant 0 : index
    %143 = vector.load %arg12[%c0_55, %c0_56, %c0_57] : memref<2x32x64xf32, #tpu.memory_space<vmem>>, vector<1x32x64xf32>
    %144 = vector.shape_cast %143 : vector<1x32x64xf32> to vector<32x64xf32>
    %cst_58 = arith.constant dense<0.000000e+00> : vector<8x64xf32>
    %145 = tpu.matmul %142, %144, %cst_58 {dimension_numbers = #tpu.dot_dimension_numbers<[1], [0], [0], [1], [0, 0, 1, 1], [], []>} : vector<8x32xf32>, vector<32x64xf32>, vector<8x64xf32> -> vector<8x64xf32>
    %c0_59 = arith.constant 0 : index
    %c0_60 = arith.constant 0 : index
    %c0_61 = arith.constant 0 : index
    %146 = vector.load %arg13[%c0_59, %c0_60, %c0_61] : memref<2x1x64xf32, #tpu.memory_space<vmem>>, vector<1x1x64xf32>
    %147 = vector.shape_cast %146 : vector<1x1x64xf32> to vector<1x64xf32>
    %148 = vector.broadcast %147 : vector<1x64xf32> to vector<8x64xf32>
    %149 = arith.addf %145, %148 : vector<8x64xf32>
    %cst_62 = arith.constant 5.000000e-01 : f32
    %150 = vector.broadcast %cst_62 : f32 to vector<8x64xf32>
    %151 = arith.mulf %150, %149 : vector<8x64xf32>
    %cst_63 = arith.constant 4.471500e-02 : f32
    %152 = vector.broadcast %cst_63 : f32 to vector<8x64xf32>
    %153 = arith.mulf %152, %149 : vector<8x64xf32>
    %154 = arith.mulf %153, %149 : vector<8x64xf32>
    %155 = arith.mulf %154, %149 : vector<8x64xf32>
    %156 = arith.addf %149, %155 : vector<8x64xf32>
    %cst_64 = arith.constant 0.797884583 : f32
    %157 = vector.broadcast %cst_64 : f32 to vector<8x64xf32>
    %158 = arith.mulf %157, %156 : vector<8x64xf32>
    %159 = math.tanh %158 : vector<8x64xf32>
    %cst_65 = arith.constant 1.000000e+00 : f32
    %160 = vector.broadcast %cst_65 : f32 to vector<8x64xf32>
    %161 = arith.addf %160, %159 : vector<8x64xf32>
    %162 = arith.mulf %151, %161 : vector<8x64xf32>
    %c0_66 = arith.constant 0 : index
    %c0_67 = arith.constant 0 : index
    %c0_68 = arith.constant 0 : index
    %163 = vector.load %arg14[%c0_66, %c0_67, %c0_68] : memref<2x64x32xf32, #tpu.memory_space<vmem>>, vector<1x64x32xf32>
    %164 = vector.shape_cast %163 : vector<1x64x32xf32> to vector<64x32xf32>
    %cst_69 = arith.constant dense<0.000000e+00> : vector<8x32xf32>
    %165 = tpu.matmul %162, %164, %cst_69 {dimension_numbers = #tpu.dot_dimension_numbers<[1], [0], [0], [1], [0, 0, 1, 1], [], []>} : vector<8x64xf32>, vector<64x32xf32>, vector<8x32xf32> -> vector<8x32xf32>
    %c0_70 = arith.constant 0 : index
    %c0_71 = arith.constant 0 : index
    %c0_72 = arith.constant 0 : index
    %166 = vector.load %arg15[%c0_70, %c0_71, %c0_72] : memref<2x1x32xf32, #tpu.memory_space<vmem>>, vector<1x1x32xf32>
    %167 = vector.shape_cast %166 : vector<1x1x32xf32> to vector<1x32xf32>
    %168 = vector.broadcast %167 : vector<1x32xf32> to vector<8x32xf32>
    %169 = arith.addf %165, %168 : vector<8x32xf32>
    %170 = arith.addf %169, %142 : vector<8x32xf32>
    %c0_73 = arith.constant 0 : index
    %c0_74 = arith.constant 0 : index
    %c0_75 = arith.constant 0 : index
    %171 = vector.load %arg16[%c0_73, %c0_74, %c0_75] : memref<2x1x32xf32, #tpu.memory_space<vmem>>, vector<1x1x32xf32>
    %172 = vector.shape_cast %171 : vector<1x1x32xf32> to vector<1x32xf32>
    %c0_76 = arith.constant 0 : index
    %c0_77 = arith.constant 0 : index
    %c0_78 = arith.constant 0 : index
    %173 = vector.load %arg17[%c0_76, %c0_77, %c0_78] : memref<2x1x32xf32, #tpu.memory_space<vmem>>, vector<1x1x32xf32>
    %174 = vector.shape_cast %173 : vector<1x1x32xf32> to vector<1x32xf32>
    %cst_79 = arith.constant dense<0.000000e+00> : vector<8xf32>
    %175 = vector.multi_reduction <add>, %170, %cst_79 [1] : vector<8x32xf32> to vector<8xf32>
    %176 = vector.shape_cast %175 : vector<8xf32> to vector<8x1xf32>
    %cst_80 = arith.constant 3.200000e+01 : f32
    %177 = vector.broadcast %cst_80 : f32 to vector<8x1xf32>
    %178 = arith.divf %176, %177 : vector<8x1xf32>
    %179 = vector.broadcast %178 : vector<8x1xf32> to vector<8x32xf32>
    %180 = arith.subf %170, %179 : vector<8x32xf32>
    %181 = arith.mulf %180, %180 : vector<8x32xf32>
    %cst_81 = arith.constant dense<0.000000e+00> : vector<8xf32>
    %182 = vector.multi_reduction <add>, %181, %cst_81 [1] : vector<8x32xf32> to vector<8xf32>
    %183 = vector.shape_cast %182 : vector<8xf32> to vector<8x1xf32>
    %cst_82 = arith.constant 3.200000e+01 : f32
    %184 = vector.broadcast %cst_82 : f32 to vector<8x1xf32>
    %185 = arith.divf %183, %184 : vector<8x1xf32>
    %186 = vector.broadcast %178 : vector<8x1xf32> to vector<8x32xf32>
    %187 = arith.subf %170, %186 : vector<8x32xf32>
    %cst_83 = arith.constant 9.99999996E-13 : f32
    %188 = vector.broadcast %cst_83 : f32 to vector<8x1xf32>
    %189 = arith.addf %185, %188 : vector<8x1xf32>
    %190 = math.rsqrt %189 : vector<8x1xf32>
    %191 = vector.broadcast %190 : vector<8x1xf32> to vector<8x32xf32>
    %192 = arith.mulf %187, %191 : vector<8x32xf32>
    %193 = vector.broadcast %172 : vector<1x32xf32> to vector<8x32xf32>
    %194 = arith.mulf %192, %193 : vector<8x32xf32>
    %195 = vector.broadcast %174 : vector<1x32xf32> to vector<8x32xf32>
    %196 = arith.addf %194, %195 : vector<8x32xf32>
    %c1 = arith.constant 1 : index
    %c0_84 = arith.constant 0 : index
    %c0_85 = arith.constant 0 : index
    %197 = vector.load %arg6[%c1, %c0_84, %c0_85] : memref<2x32x96xf32, #tpu.memory_space<vmem>>, vector<1x32x96xf32>
    %198 = vector.shape_cast %197 : vector<1x32x96xf32> to vector<32x96xf32>
    %cst_86 = arith.constant dense<0.000000e+00> : vector<8x96xf32>
    %199 = tpu.matmul %196, %198, %cst_86 {dimension_numbers = #tpu.dot_dimension_numbers<[1], [0], [0], [1], [0, 0, 1, 1], [], []>} : vector<8x32xf32>, vector<32x96xf32>, vector<8x96xf32> -> vector<8x96xf32>
    %c1_87 = arith.constant 1 : index
    %c0_88 = arith.constant 0 : index
    %c0_89 = arith.constant 0 : index
    %200 = vector.load %arg7[%c1_87, %c0_88, %c0_89] : memref<2x1x96xf32, #tpu.memory_space<vmem>>, vector<1x1x96xf32>
    %201 = vector.shape_cast %200 : vector<1x1x96xf32> to vector<1x96xf32>
    %202 = vector.broadcast %201 : vector<1x96xf32> to vector<8x96xf32>
    %203 = arith.addf %199, %202 : vector<8x96xf32>
    %204 = vector.extract_strided_slice %203 {offsets = [0, 0], sizes = [8, 32], strides = [1, 1]} : vector<8x96xf32> to vector<8x32xf32>
    %cst_90 = arith.constant 0.353553385 : f32
    %205 = vector.broadcast %cst_90 : f32 to vector<8x32xf32>
    %206 = arith.mulf %204, %205 : vector<8x32xf32>
    %207 = vector.extract_strided_slice %203 {offsets = [0, 32], sizes = [8, 32], strides = [1, 1]} : vector<8x96xf32> to vector<8x32xf32>
    %208 = vector.extract_strided_slice %203 {offsets = [0, 64], sizes = [8, 32], strides = [1, 1]} : vector<8x96xf32> to vector<8x32xf32>
    %209 = vector.extract_strided_slice %206 {offsets = [0, 0], sizes = [8, 8], strides = [1, 1]} : vector<8x32xf32> to vector<8x8xf32>
    %210 = vector.extract_strided_slice %207 {offsets = [0, 0], sizes = [8, 8], strides = [1, 1]} : vector<8x32xf32> to vector<8x8xf32>
    "tpu.trace_start"() <{level = 10 : i32, message = "qd,kd->qk"}> : () -> ()
    %cst_91 = arith.constant dense<0.000000e+00> : vector<8x8xf32>
    %211 = tpu.matmul %209, %210, %cst_91 {dimension_numbers = #tpu.dot_dimension_numbers<[1], [1], [0], [0], [0, 0, 1, 0], [], []>} : vector<8x8xf32>, vector<8x8xf32>, vector<8x8xf32> -> vector<8x8xf32>
    "tpu.trace_stop"() : () -> ()
    %212 = vector.broadcast %27 : vector<1x8xf32> to vector<8x8xf32>
    %213 = arith.addf %211, %212 : vector<8x8xf32>
    %cst_92 = arith.constant dense<0xFF800000> : vector<8xf32>
    %214 = vector.multi_reduction <maximumf>, %213, %cst_92 [1] : vector<8x8xf32> to vector<8xf32>
    %215 = vector.shape_cast %214 : vector<8xf32> to vector<8x1xf32>
    %216 = vector.broadcast %215 : vector<8x1xf32> to vector<8x8xf32>
    %217 = arith.subf %213, %216 : vector<8x8xf32>
    %218 = math.exp %217 : vector<8x8xf32>
    %cst_93 = arith.constant dense<0.000000e+00> : vector<8xf32>
    %219 = vector.multi_reduction <add>, %218, %cst_93 [1] : vector<8x8xf32> to vector<8xf32>
    %220 = vector.shape_cast %219 : vector<8xf32> to vector<8x1xf32>
    %221 = tpu.reciprocal %220 {approx = true} : vector<8x1xf32> -> vector<8x1xf32>
    %222 = vector.broadcast %221 : vector<8x1xf32> to vector<8x8xf32>
    %223 = arith.mulf %218, %222 : vector<8x8xf32>
    %224 = vector.extract_strided_slice %208 {offsets = [0, 0], sizes = [8, 8], strides = [1, 1]} : vector<8x32xf32> to vector<8x8xf32>
    %cst_94 = arith.constant dense<0.000000e+00> : vector<8x8xf32>
    %225 = tpu.matmul %223, %224, %cst_94 {dimension_numbers = #tpu.dot_dimension_numbers<[1], [0], [0], [1], [0, 0, 1, 1], [], []>} : vector<8x8xf32>, vector<8x8xf32>, vector<8x8xf32> -> vector<8x8xf32>
    %226 = vector.extract_strided_slice %206 {offsets = [0, 8], sizes = [8, 8], strides = [1, 1]} : vector<8x32xf32> to vector<8x8xf32>
    %227 = vector.extract_strided_slice %207 {offsets = [0, 8], sizes = [8, 8], strides = [1, 1]} : vector<8x32xf32> to vector<8x8xf32>
    "tpu.trace_start"() <{level = 10 : i32, message = "qd,kd->qk"}> : () -> ()
    %cst_95 = arith.constant dense<0.000000e+00> : vector<8x8xf32>
    %228 = tpu.matmul %226, %227, %cst_95 {dimension_numbers = #tpu.dot_dimension_numbers<[1], [1], [0], [0], [0, 0, 1, 0], [], []>} : vector<8x8xf32>, vector<8x8xf32>, vector<8x8xf32> -> vector<8x8xf32>
    "tpu.trace_stop"() : () -> ()
    %229 = vector.broadcast %27 : vector<1x8xf32> to vector<8x8xf32>
    %230 = arith.addf %228, %229 : vector<8x8xf32>
    %cst_96 = arith.constant dense<0xFF800000> : vector<8xf32>
    %231 = vector.multi_reduction <maximumf>, %230, %cst_96 [1] : vector<8x8xf32> to vector<8xf32>
    %232 = vector.shape_cast %231 : vector<8xf32> to vector<8x1xf32>
    %233 = vector.broadcast %232 : vector<8x1xf32> to vector<8x8xf32>
    %234 = arith.subf %230, %233 : vector<8x8xf32>
    %235 = math.exp %234 : vector<8x8xf32>
    %cst_97 = arith.constant dense<0.000000e+00> : vector<8xf32>
    %236 = vector.multi_reduction <add>, %235, %cst_97 [1] : vector<8x8xf32> to vector<8xf32>
    %237 = vector.shape_cast %236 : vector<8xf32> to vector<8x1xf32>
    %238 = tpu.reciprocal %237 {approx = true} : vector<8x1xf32> -> vector<8x1xf32>
    %239 = vector.broadcast %238 : vector<8x1xf32> to vector<8x8xf32>
    %240 = arith.mulf %235, %239 : vector<8x8xf32>
    %241 = vector.extract_strided_slice %208 {offsets = [0, 8], sizes = [8, 8], strides = [1, 1]} : vector<8x32xf32> to vector<8x8xf32>
    %cst_98 = arith.constant dense<0.000000e+00> : vector<8x8xf32>
    %242 = tpu.matmul %240, %241, %cst_98 {dimension_numbers = #tpu.dot_dimension_numbers<[1], [0], [0], [1], [0, 0, 1, 1], [], []>} : vector<8x8xf32>, vector<8x8xf32>, vector<8x8xf32> -> vector<8x8xf32>
    %243 = vector.extract_strided_slice %206 {offsets = [0, 16], sizes = [8, 8], strides = [1, 1]} : vector<8x32xf32> to vector<8x8xf32>
    %244 = vector.extract_strided_slice %207 {offsets = [0, 16], sizes = [8, 8], strides = [1, 1]} : vector<8x32xf32> to vector<8x8xf32>
    "tpu.trace_start"() <{level = 10 : i32, message = "qd,kd->qk"}> : () -> ()
    %cst_99 = arith.constant dense<0.000000e+00> : vector<8x8xf32>
    %245 = tpu.matmul %243, %244, %cst_99 {dimension_numbers = #tpu.dot_dimension_numbers<[1], [1], [0], [0], [0, 0, 1, 0], [], []>} : vector<8x8xf32>, vector<8x8xf32>, vector<8x8xf32> -> vector<8x8xf32>
    "tpu.trace_stop"() : () -> ()
    %246 = vector.broadcast %27 : vector<1x8xf32> to vector<8x8xf32>
    %247 = arith.addf %245, %246 : vector<8x8xf32>
    %cst_100 = arith.constant dense<0xFF800000> : vector<8xf32>
    %248 = vector.multi_reduction <maximumf>, %247, %cst_100 [1] : vector<8x8xf32> to vector<8xf32>
    %249 = vector.shape_cast %248 : vector<8xf32> to vector<8x1xf32>
    %250 = vector.broadcast %249 : vector<8x1xf32> to vector<8x8xf32>
    %251 = arith.subf %247, %250 : vector<8x8xf32>
    %252 = math.exp %251 : vector<8x8xf32>
    %cst_101 = arith.constant dense<0.000000e+00> : vector<8xf32>
    %253 = vector.multi_reduction <add>, %252, %cst_101 [1] : vector<8x8xf32> to vector<8xf32>
    %254 = vector.shape_cast %253 : vector<8xf32> to vector<8x1xf32>
    %255 = tpu.reciprocal %254 {approx = true} : vector<8x1xf32> -> vector<8x1xf32>
    %256 = vector.broadcast %255 : vector<8x1xf32> to vector<8x8xf32>
    %257 = arith.mulf %252, %256 : vector<8x8xf32>
    %258 = vector.extract_strided_slice %208 {offsets = [0, 16], sizes = [8, 8], strides = [1, 1]} : vector<8x32xf32> to vector<8x8xf32>
    %cst_102 = arith.constant dense<0.000000e+00> : vector<8x8xf32>
    %259 = tpu.matmul %257, %258, %cst_102 {dimension_numbers = #tpu.dot_dimension_numbers<[1], [0], [0], [1], [0, 0, 1, 1], [], []>} : vector<8x8xf32>, vector<8x8xf32>, vector<8x8xf32> -> vector<8x8xf32>
    %260 = vector.extract_strided_slice %206 {offsets = [0, 24], sizes = [8, 8], strides = [1, 1]} : vector<8x32xf32> to vector<8x8xf32>
    %261 = vector.extract_strided_slice %207 {offsets = [0, 24], sizes = [8, 8], strides = [1, 1]} : vector<8x32xf32> to vector<8x8xf32>
    "tpu.trace_start"() <{level = 10 : i32, message = "qd,kd->qk"}> : () -> ()
    %cst_103 = arith.constant dense<0.000000e+00> : vector<8x8xf32>
    %262 = tpu.matmul %260, %261, %cst_103 {dimension_numbers = #tpu.dot_dimension_numbers<[1], [1], [0], [0], [0, 0, 1, 0], [], []>} : vector<8x8xf32>, vector<8x8xf32>, vector<8x8xf32> -> vector<8x8xf32>
    "tpu.trace_stop"() : () -> ()
    %263 = vector.broadcast %27 : vector<1x8xf32> to vector<8x8xf32>
    %264 = arith.addf %262, %263 : vector<8x8xf32>
    %cst_104 = arith.constant dense<0xFF800000> : vector<8xf32>
    %265 = vector.multi_reduction <maximumf>, %264, %cst_104 [1] : vector<8x8xf32> to vector<8xf32>
    %266 = vector.shape_cast %265 : vector<8xf32> to vector<8x1xf32>
    %267 = vector.broadcast %266 : vector<8x1xf32> to vector<8x8xf32>
    %268 = arith.subf %264, %267 : vector<8x8xf32>
    %269 = math.exp %268 : vector<8x8xf32>
    %cst_105 = arith.constant dense<0.000000e+00> : vector<8xf32>
    %270 = vector.multi_reduction <add>, %269, %cst_105 [1] : vector<8x8xf32> to vector<8xf32>
    %271 = vector.shape_cast %270 : vector<8xf32> to vector<8x1xf32>
    %272 = tpu.reciprocal %271 {approx = true} : vector<8x1xf32> -> vector<8x1xf32>
    %273 = vector.broadcast %272 : vector<8x1xf32> to vector<8x8xf32>
    %274 = arith.mulf %269, %273 : vector<8x8xf32>
    %275 = vector.extract_strided_slice %208 {offsets = [0, 24], sizes = [8, 8], strides = [1, 1]} : vector<8x32xf32> to vector<8x8xf32>
    %cst_106 = arith.constant dense<0.000000e+00> : vector<8x8xf32>
    %276 = tpu.matmul %274, %275, %cst_106 {dimension_numbers = #tpu.dot_dimension_numbers<[1], [0], [0], [1], [0, 0, 1, 1], [], []>} : vector<8x8xf32>, vector<8x8xf32>, vector<8x8xf32> -> vector<8x8xf32>
    %277 = tpu.concatenate %225, %242, %259, %276 in 1 : vector<8x8xf32>, vector<8x8xf32>, vector<8x8xf32>, vector<8x8xf32> -> vector<8x32xf32>
    %c1_107 = arith.constant 1 : index
    %c0_108 = arith.constant 0 : index
    %c0_109 = arith.constant 0 : index
    %278 = vector.load %arg8[%c1_107, %c0_108, %c0_109] : memref<2x32x32xf32, #tpu.memory_space<vmem>>, vector<1x32x32xf32>
    %279 = vector.shape_cast %278 : vector<1x32x32xf32> to vector<32x32xf32>
    %cst_110 = arith.constant dense<0.000000e+00> : vector<8x32xf32>
    %280 = tpu.matmul %277, %279, %cst_110 {dimension_numbers = #tpu.dot_dimension_numbers<[1], [0], [0], [1], [0, 0, 1, 1], [], []>} : vector<8x32xf32>, vector<32x32xf32>, vector<8x32xf32> -> vector<8x32xf32>
    %c1_111 = arith.constant 1 : index
    %c0_112 = arith.constant 0 : index
    %c0_113 = arith.constant 0 : index
    %281 = vector.load %arg9[%c1_111, %c0_112, %c0_113] : memref<2x1x32xf32, #tpu.memory_space<vmem>>, vector<1x1x32xf32>
    %282 = vector.shape_cast %281 : vector<1x1x32xf32> to vector<1x32xf32>
    %283 = vector.broadcast %282 : vector<1x32xf32> to vector<8x32xf32>
    %284 = arith.addf %280, %283 : vector<8x32xf32>
    %285 = arith.addf %284, %196 : vector<8x32xf32>
    %c1_114 = arith.constant 1 : index
    %c0_115 = arith.constant 0 : index
    %c0_116 = arith.constant 0 : index
    %286 = vector.load %arg10[%c1_114, %c0_115, %c0_116] : memref<2x1x32xf32, #tpu.memory_space<vmem>>, vector<1x1x32xf32>
    %287 = vector.shape_cast %286 : vector<1x1x32xf32> to vector<1x32xf32>
    %c1_117 = arith.constant 1 : index
    %c0_118 = arith.constant 0 : index
    %c0_119 = arith.constant 0 : index
    %288 = vector.load %arg11[%c1_117, %c0_118, %c0_119] : memref<2x1x32xf32, #tpu.memory_space<vmem>>, vector<1x1x32xf32>
    %289 = vector.shape_cast %288 : vector<1x1x32xf32> to vector<1x32xf32>
    %cst_120 = arith.constant dense<0.000000e+00> : vector<8xf32>
    %290 = vector.multi_reduction <add>, %285, %cst_120 [1] : vector<8x32xf32> to vector<8xf32>
    %291 = vector.shape_cast %290 : vector<8xf32> to vector<8x1xf32>
    %cst_121 = arith.constant 3.200000e+01 : f32
    %292 = vector.broadcast %cst_121 : f32 to vector<8x1xf32>
    %293 = arith.divf %291, %292 : vector<8x1xf32>
    %294 = vector.broadcast %293 : vector<8x1xf32> to vector<8x32xf32>
    %295 = arith.subf %285, %294 : vector<8x32xf32>
    %296 = arith.mulf %295, %295 : vector<8x32xf32>
    %cst_122 = arith.constant dense<0.000000e+00> : vector<8xf32>
    %297 = vector.multi_reduction <add>, %296, %cst_122 [1] : vector<8x32xf32> to vector<8xf32>
    %298 = vector.shape_cast %297 : vector<8xf32> to vector<8x1xf32>
    %cst_123 = arith.constant 3.200000e+01 : f32
    %299 = vector.broadcast %cst_123 : f32 to vector<8x1xf32>
    %300 = arith.divf %298, %299 : vector<8x1xf32>
    %301 = vector.broadcast %293 : vector<8x1xf32> to vector<8x32xf32>
    %302 = arith.subf %285, %301 : vector<8x32xf32>
    %cst_124 = arith.constant 9.99999996E-13 : f32
    %303 = vector.broadcast %cst_124 : f32 to vector<8x1xf32>
    %304 = arith.addf %300, %303 : vector<8x1xf32>
    %305 = math.rsqrt %304 : vector<8x1xf32>
    %306 = vector.broadcast %305 : vector<8x1xf32> to vector<8x32xf32>
    %307 = arith.mulf %302, %306 : vector<8x32xf32>
    %308 = vector.broadcast %287 : vector<1x32xf32> to vector<8x32xf32>
    %309 = arith.mulf %307, %308 : vector<8x32xf32>
    %310 = vector.broadcast %289 : vector<1x32xf32> to vector<8x32xf32>
    %311 = arith.addf %309, %310 : vector<8x32xf32>
    %c1_125 = arith.constant 1 : index
    %c0_126 = arith.constant 0 : index
    %c0_127 = arith.constant 0 : index
    %312 = vector.load %arg12[%c1_125, %c0_126, %c0_127] : memref<2x32x64xf32, #tpu.memory_space<vmem>>, vector<1x32x64xf32>
    %313 = vector.shape_cast %312 : vector<1x32x64xf32> to vector<32x64xf32>
    %cst_128 = arith.constant dense<0.000000e+00> : vector<8x64xf32>
    %314 = tpu.matmul %311, %313, %cst_128 {dimension_numbers = #tpu.dot_dimension_numbers<[1], [0], [0], [1], [0, 0, 1, 1], [], []>} : vector<8x32xf32>, vector<32x64xf32>, vector<8x64xf32> -> vector<8x64xf32>
    %c1_129 = arith.constant 1 : index
    %c0_130 = arith.constant 0 : index
    %c0_131 = arith.constant 0 : index
    %315 = vector.load %arg13[%c1_129, %c0_130, %c0_131] : memref<2x1x64xf32, #tpu.memory_space<vmem>>, vector<1x1x64xf32>
    %316 = vector.shape_cast %315 : vector<1x1x64xf32> to vector<1x64xf32>
    %317 = vector.broadcast %316 : vector<1x64xf32> to vector<8x64xf32>
    %318 = arith.addf %314, %317 : vector<8x64xf32>
    %cst_132 = arith.constant 5.000000e-01 : f32
    %319 = vector.broadcast %cst_132 : f32 to vector<8x64xf32>
    %320 = arith.mulf %319, %318 : vector<8x64xf32>
    %cst_133 = arith.constant 4.471500e-02 : f32
    %321 = vector.broadcast %cst_133 : f32 to vector<8x64xf32>
    %322 = arith.mulf %321, %318 : vector<8x64xf32>
    %323 = arith.mulf %322, %318 : vector<8x64xf32>
    %324 = arith.mulf %323, %318 : vector<8x64xf32>
    %325 = arith.addf %318, %324 : vector<8x64xf32>
    %cst_134 = arith.constant 0.797884583 : f32
    %326 = vector.broadcast %cst_134 : f32 to vector<8x64xf32>
    %327 = arith.mulf %326, %325 : vector<8x64xf32>
    %328 = math.tanh %327 : vector<8x64xf32>
    %cst_135 = arith.constant 1.000000e+00 : f32
    %329 = vector.broadcast %cst_135 : f32 to vector<8x64xf32>
    %330 = arith.addf %329, %328 : vector<8x64xf32>
    %331 = arith.mulf %320, %330 : vector<8x64xf32>
    %c1_136 = arith.constant 1 : index
    %c0_137 = arith.constant 0 : index
    %c0_138 = arith.constant 0 : index
    %332 = vector.load %arg14[%c1_136, %c0_137, %c0_138] : memref<2x64x32xf32, #tpu.memory_space<vmem>>, vector<1x64x32xf32>
    %333 = vector.shape_cast %332 : vector<1x64x32xf32> to vector<64x32xf32>
    %cst_139 = arith.constant dense<0.000000e+00> : vector<8x32xf32>
    %334 = tpu.matmul %331, %333, %cst_139 {dimension_numbers = #tpu.dot_dimension_numbers<[1], [0], [0], [1], [0, 0, 1, 1], [], []>} : vector<8x64xf32>, vector<64x32xf32>, vector<8x32xf32> -> vector<8x32xf32>
    %c1_140 = arith.constant 1 : index
    %c0_141 = arith.constant 0 : index
    %c0_142 = arith.constant 0 : index
    %335 = vector.load %arg15[%c1_140, %c0_141, %c0_142] : memref<2x1x32xf32, #tpu.memory_space<vmem>>, vector<1x1x32xf32>
    %336 = vector.shape_cast %335 : vector<1x1x32xf32> to vector<1x32xf32>
    %337 = vector.broadcast %336 : vector<1x32xf32> to vector<8x32xf32>
    %338 = arith.addf %334, %337 : vector<8x32xf32>
    %339 = arith.addf %338, %311 : vector<8x32xf32>
    %c1_143 = arith.constant 1 : index
    %c0_144 = arith.constant 0 : index
    %c0_145 = arith.constant 0 : index
    %340 = vector.load %arg16[%c1_143, %c0_144, %c0_145] : memref<2x1x32xf32, #tpu.memory_space<vmem>>, vector<1x1x32xf32>
    %341 = vector.shape_cast %340 : vector<1x1x32xf32> to vector<1x32xf32>
    %c1_146 = arith.constant 1 : index
    %c0_147 = arith.constant 0 : index
    %c0_148 = arith.constant 0 : index
    %342 = vector.load %arg17[%c1_146, %c0_147, %c0_148] : memref<2x1x32xf32, #tpu.memory_space<vmem>>, vector<1x1x32xf32>
    %343 = vector.shape_cast %342 : vector<1x1x32xf32> to vector<1x32xf32>
    %cst_149 = arith.constant dense<0.000000e+00> : vector<8xf32>
    %344 = vector.multi_reduction <add>, %339, %cst_149 [1] : vector<8x32xf32> to vector<8xf32>
    %345 = vector.shape_cast %344 : vector<8xf32> to vector<8x1xf32>
    %cst_150 = arith.constant 3.200000e+01 : f32
    %346 = vector.broadcast %cst_150 : f32 to vector<8x1xf32>
    %347 = arith.divf %345, %346 : vector<8x1xf32>
    %348 = vector.broadcast %347 : vector<8x1xf32> to vector<8x32xf32>
    %349 = arith.subf %339, %348 : vector<8x32xf32>
    %350 = arith.mulf %349, %349 : vector<8x32xf32>
    %cst_151 = arith.constant dense<0.000000e+00> : vector<8xf32>
    %351 = vector.multi_reduction <add>, %350, %cst_151 [1] : vector<8x32xf32> to vector<8xf32>
    %352 = vector.shape_cast %351 : vector<8xf32> to vector<8x1xf32>
    %cst_152 = arith.constant 3.200000e+01 : f32
    %353 = vector.broadcast %cst_152 : f32 to vector<8x1xf32>
    %354 = arith.divf %352, %353 : vector<8x1xf32>
    %355 = vector.broadcast %347 : vector<8x1xf32> to vector<8x32xf32>
    %356 = arith.subf %339, %355 : vector<8x32xf32>
    %cst_153 = arith.constant 9.99999996E-13 : f32
    %357 = vector.broadcast %cst_153 : f32 to vector<8x1xf32>
    %358 = arith.addf %354, %357 : vector<8x1xf32>
    %359 = math.rsqrt %358 : vector<8x1xf32>
    %360 = vector.broadcast %359 : vector<8x1xf32> to vector<8x32xf32>
    %361 = arith.mulf %356, %360 : vector<8x32xf32>
    %362 = vector.broadcast %341 : vector<1x32xf32> to vector<8x32xf32>
    %363 = arith.mulf %361, %362 : vector<8x32xf32>
    %364 = vector.broadcast %343 : vector<1x32xf32> to vector<8x32xf32>
    %365 = arith.addf %363, %364 : vector<8x32xf32>
    %c0_154 = arith.constant 0 : index
    %c0_155 = arith.constant 0 : index
    %c0_156 = arith.constant 0 : index
    %366 = vector.load %arg18[%c0_154, %c0_155, %c0_156] : memref<2x32x128xf32, #tpu.memory_space<vmem>>, vector<1x32x128xf32>
    %367 = vector.shape_cast %366 : vector<1x32x128xf32> to vector<32x128xf32>
    %cst_157 = arith.constant dense<0.000000e+00> : vector<8x128xf32>
    %368 = tpu.matmul %365, %367, %cst_157 {dimension_numbers = #tpu.dot_dimension_numbers<[1], [0], [0], [1], [0, 0, 1, 1], [], []>} : vector<8x32xf32>, vector<32x128xf32>, vector<8x128xf32> -> vector<8x128xf32>
    %c0_158 = arith.constant 0 : index
    %c0_159 = arith.constant 0 : index
    %c0_160 = arith.constant 0 : index
    %369 = vector.load %arg21[%c0_158, %c0_159, %c0_160] : memref<2x1x128xf32, #tpu.memory_space<vmem>>, vector<1x1x128xf32>
    %370 = vector.shape_cast %369 : vector<1x1x128xf32> to vector<1x128xf32>
    %371 = vector.broadcast %370 : vector<1x128xf32> to vector<8x128xf32>
    %372 = arith.addf %368, %371 : vector<8x128xf32>
    %c0_161 = arith.constant 0 : index
    %c0_162 = arith.constant 0 : index
    %373 = vector.load %arg29[%c0_161, %c0_162] : memref<8x128xf32, #tpu.memory_space<vmem>>, vector<8x128xf32>
    tpu.vector_store %arg29[%c0_161, %c0_162], %372 {strides = array<i32>} : memref<8x128xf32, #tpu.memory_space<vmem>>, vector<8x128xf32>,
    %c0_163 = arith.constant 0 : index
    %c0_164 = arith.constant 0 : index
    %c0_165 = arith.constant 0 : index
    %374 = vector.load %arg19[%c0_163, %c0_164, %c0_165] : memref<2x16x64xf32, #tpu.memory_space<vmem>>, vector<1x16x64xf32>
    %375 = vector.shape_cast %374 : vector<1x16x64xf32> to vector<16x64xf32>
    %c0_166 = arith.constant 0 : index
    %c0_167 = arith.constant 0 : index
    %c0_168 = arith.constant 0 : index
    %376 = vector.load %arg20[%c0_166, %c0_167, %c0_168] : memref<2x16x64xf32, #tpu.memory_space<vmem>>, vector<1x16x64xf32>
    %377 = vector.shape_cast %376 : vector<1x16x64xf32> to vector<16x64xf32>
    %cst_169 = arith.constant 0.000000e+00 : f32
    %378 = vector.broadcast %cst_169 : f32 to vector<1x16xf32>
    %c0_i32 = arith.constant 0 : i32
    %c8_i32 = arith.constant 8 : i32
    %379 = arith.addi %c0_i32, %c8_i32 : i32
    %c1_i32 = arith.constant 1 : i32
    %380:4 = scf.for %arg35 = %c0_i32 to %379 step %c1_i32 iter_args(%arg36 = %378, %arg37 = %378, %arg38 = %378, %arg39 = %378) -> (vector<1x16xf32>, vector<1x16xf32>, vector<1x16xf32>, vector<1x16xf32>)  : i32 {
      %445 = arith.index_cast %arg35 : i32 to index
      %c0_223 = arith.constant 0 : index
      %446 = vector.load %arg29[%445, %c0_223] : memref<8x128xf32, #tpu.memory_space<vmem>>, vector<1x128xf32>
      %447 = vector.extract_strided_slice %446 {offsets = [0, 0], sizes = [1, 64], strides = [1, 1]} : vector<1x128xf32> to vector<1x64xf32>
      %cst_224 = arith.constant dense<0.000000e+00> : vector<1x64xf32>
      %448 = tpu.matmul %arg36, %375, %cst_224 {dimension_numbers = #tpu.dot_dimension_numbers<[1], [0], [0], [1], [0, 0, 1, 1], [], []>} : vector<1x16xf32>, vector<16x64xf32>, vector<1x64xf32> -> vector<1x64xf32>
      %449 = arith.addf %447, %448 : vector<1x64xf32>
      %450 = vector.extract_strided_slice %449 {offsets = [0, 0], sizes = [1, 16], strides = [1, 1]} : vector<1x64xf32> to vector<1x16xf32>
      %cst_225 = arith.constant 0.000000e+00 : f32
      %451 = vector.broadcast %cst_225 : f32 to vector<1x16xf32>
      %452 = arith.subf %451, %450 : vector<1x16xf32>
      %453 = math.exp %452 : vector<1x16xf32>
      %cst_226 = arith.constant 1.000000e+00 : f32
      %454 = vector.broadcast %cst_226 : f32 to vector<1x16xf32>
      %455 = arith.addf %454, %453 : vector<1x16xf32>
      %456 = tpu.reciprocal %455 {approx = true} : vector<1x16xf32> -> vector<1x16xf32>
      %457 = vector.extract_strided_slice %449 {offsets = [0, 16], sizes = [1, 16], strides = [1, 1]} : vector<1x64xf32> to vector<1x16xf32>
      %cst_227 = arith.constant 0.000000e+00 : f32
      %458 = vector.broadcast %cst_227 : f32 to vector<1x16xf32>
      %459 = arith.subf %458, %457 : vector<1x16xf32>
      %460 = math.exp %459 : vector<1x16xf32>
      %cst_228 = arith.constant 1.000000e+00 : f32
      %461 = vector.broadcast %cst_228 : f32 to vector<1x16xf32>
      %462 = arith.addf %461, %460 : vector<1x16xf32>
      %463 = tpu.reciprocal %462 {approx = true} : vector<1x16xf32> -> vector<1x16xf32>
      %464 = vector.extract_strided_slice %449 {offsets = [0, 32], sizes = [1, 16], strides = [1, 1]} : vector<1x64xf32> to vector<1x16xf32>
      %465 = math.tanh %464 : vector<1x16xf32>
      %466 = vector.extract_strided_slice %449 {offsets = [0, 48], sizes = [1, 16], strides = [1, 1]} : vector<1x64xf32> to vector<1x16xf32>
      %cst_229 = arith.constant 0.000000e+00 : f32
      %467 = vector.broadcast %cst_229 : f32 to vector<1x16xf32>
      %468 = arith.subf %467, %466 : vector<1x16xf32>
      %469 = math.exp %468 : vector<1x16xf32>
      %cst_230 = arith.constant 1.000000e+00 : f32
      %470 = vector.broadcast %cst_230 : f32 to vector<1x16xf32>
      %471 = arith.addf %470, %469 : vector<1x16xf32>
      %472 = tpu.reciprocal %471 {approx = true} : vector<1x16xf32> -> vector<1x16xf32>
      %473 = arith.mulf %463, %arg37 : vector<1x16xf32>
      %474 = arith.mulf %456, %465 : vector<1x16xf32>
      %475 = arith.addf %473, %474 : vector<1x16xf32>
      %476 = math.tanh %475 : vector<1x16xf32>
      %477 = arith.mulf %472, %476 : vector<1x16xf32>
      %478 = arith.index_cast %arg35 : i32 to index
      %c0_231 = arith.constant 0 : index
      %479 = vector.load %arg31[%478, %c0_231] : memref<8x16xf32, #tpu.memory_space<vmem>>, vector<1x16xf32>
      tpu.vector_store %arg31[%478, %c0_231], %477 {strides = array<i32>} : memref<8x16xf32, #tpu.memory_space<vmem>>, vector<1x16xf32>,
      %c7_i32_232 = arith.constant 7 : i32
      %480 = arith.subi %c7_i32_232, %arg35 : i32
      %481 = arith.index_cast %480 : i32 to index
      %c0_233 = arith.constant 0 : index
      %482 = vector.load %arg29[%481, %c0_233] : memref<8x128xf32, #tpu.memory_space<vmem>>, vector<1x128xf32>
      %483 = vector.extract_strided_slice %482 {offsets = [0, 64], sizes = [1, 64], strides = [1, 1]} : vector<1x128xf32> to vector<1x64xf32>
      %cst_234 = arith.constant dense<0.000000e+00> : vector<1x64xf32>
      %484 = tpu.matmul %arg38, %377, %cst_234 {dimension_numbers = #tpu.dot_dimension_numbers<[1], [0], [0], [1], [0, 0, 1, 1], [], []>} : vector<1x16xf32>, vector<16x64xf32>, vector<1x64xf32> -> vector<1x64xf32>
      %485 = arith.addf %483, %484 : vector<1x64xf32>
      %486 = vector.extract_strided_slice %485 {offsets = [0, 0], sizes = [1, 16], strides = [1, 1]} : vector<1x64xf32> to vector<1x16xf32>
      %cst_235 = arith.constant 0.000000e+00 : f32
      %487 = vector.broadcast %cst_235 : f32 to vector<1x16xf32>
      %488 = arith.subf %487, %486 : vector<1x16xf32>
      %489 = math.exp %488 : vector<1x16xf32>
      %cst_236 = arith.constant 1.000000e+00 : f32
      %490 = vector.broadcast %cst_236 : f32 to vector<1x16xf32>
      %491 = arith.addf %490, %489 : vector<1x16xf32>
      %492 = tpu.reciprocal %491 {approx = true} : vector<1x16xf32> -> vector<1x16xf32>
      %493 = vector.extract_strided_slice %485 {offsets = [0, 16], sizes = [1, 16], strides = [1, 1]} : vector<1x64xf32> to vector<1x16xf32>
      %cst_237 = arith.constant 0.000000e+00 : f32
      %494 = vector.broadcast %cst_237 : f32 to vector<1x16xf32>
      %495 = arith.subf %494, %493 : vector<1x16xf32>
      %496 = math.exp %495 : vector<1x16xf32>
      %cst_238 = arith.constant 1.000000e+00 : f32
      %497 = vector.broadcast %cst_238 : f32 to vector<1x16xf32>
      %498 = arith.addf %497, %496 : vector<1x16xf32>
      %499 = tpu.reciprocal %498 {approx = true} : vector<1x16xf32> -> vector<1x16xf32>
      %500 = vector.extract_strided_slice %485 {offsets = [0, 32], sizes = [1, 16], strides = [1, 1]} : vector<1x64xf32> to vector<1x16xf32>
      %501 = math.tanh %500 : vector<1x16xf32>
      %502 = vector.extract_strided_slice %485 {offsets = [0, 48], sizes = [1, 16], strides = [1, 1]} : vector<1x64xf32> to vector<1x16xf32>
      %cst_239 = arith.constant 0.000000e+00 : f32
      %503 = vector.broadcast %cst_239 : f32 to vector<1x16xf32>
      %504 = arith.subf %503, %502 : vector<1x16xf32>
      %505 = math.exp %504 : vector<1x16xf32>
      %cst_240 = arith.constant 1.000000e+00 : f32
      %506 = vector.broadcast %cst_240 : f32 to vector<1x16xf32>
      %507 = arith.addf %506, %505 : vector<1x16xf32>
      %508 = tpu.reciprocal %507 {approx = true} : vector<1x16xf32> -> vector<1x16xf32>
      %509 = arith.mulf %499, %arg39 : vector<1x16xf32>
      %510 = arith.mulf %492, %501 : vector<1x16xf32>
      %511 = arith.addf %509, %510 : vector<1x16xf32>
      %512 = math.tanh %511 : vector<1x16xf32>
      %513 = arith.mulf %508, %512 : vector<1x16xf32>
      %514 = arith.index_cast %480 : i32 to index
      %c0_241 = arith.constant 0 : index
      %515 = vector.load %arg32[%514, %c0_241] : memref<8x16xf32, #tpu.memory_space<vmem>>, vector<1x16xf32>
      tpu.vector_store %arg32[%514, %c0_241], %513 {strides = array<i32>} : memref<8x16xf32, #tpu.memory_space<vmem>>, vector<1x16xf32>,
      scf.yield %477, %475, %513, %511 : vector<1x16xf32>, vector<1x16xf32>, vector<1x16xf32>, vector<1x16xf32>
    }
    %c8_i32_170 = arith.constant 8 : i32
    %c0_171 = arith.constant 0 : index
    %c0_172 = arith.constant 0 : index
    %381 = vector.load %arg31[%c0_171, %c0_172] : memref<8x16xf32, #tpu.memory_space<vmem>>, vector<8x16xf32>
    %c0_173 = arith.constant 0 : index
    %c0_174 = arith.constant 0 : index
    %382 = vector.load %arg32[%c0_173, %c0_174] : memref<8x16xf32, #tpu.memory_space<vmem>>, vector<8x16xf32>
    %383 = tpu.concatenate %381, %382 in 1 : vector<8x16xf32>, vector<8x16xf32> -> vector<8x32xf32>
    %c1_175 = arith.constant 1 : index
    %c0_176 = arith.constant 0 : index
    %c0_177 = arith.constant 0 : index
    %384 = vector.load %arg18[%c1_175, %c0_176, %c0_177] : memref<2x32x128xf32, #tpu.memory_space<vmem>>, vector<1x32x128xf32>
    %385 = vector.shape_cast %384 : vector<1x32x128xf32> to vector<32x128xf32>
    %cst_178 = arith.constant dense<0.000000e+00> : vector<8x128xf32>
    %386 = tpu.matmul %383, %385, %cst_178 {dimension_numbers = #tpu.dot_dimension_numbers<[1], [0], [0], [1], [0, 0, 1, 1], [], []>} : vector<8x32xf32>, vector<32x128xf32>, vector<8x128xf32> -> vector<8x128xf32>
    %c1_179 = arith.constant 1 : index
    %c0_180 = arith.constant 0 : index
    %c0_181 = arith.constant 0 : index
    %387 = vector.load %arg21[%c1_179, %c0_180, %c0_181] : memref<2x1x128xf32, #tpu.memory_space<vmem>>, vector<1x1x128xf32>
    %388 = vector.shape_cast %387 : vector<1x1x128xf32> to vector<1x128xf32>
    %389 = vector.broadcast %388 : vector<1x128xf32> to vector<8x128xf32>
    %390 = arith.addf %386, %389 : vector<8x128xf32>
    %c0_182 = arith.constant 0 : index
    %c0_183 = arith.constant 0 : index
    %391 = vector.load %arg30[%c0_182, %c0_183] : memref<8x128xf32, #tpu.memory_space<vmem>>, vector<8x128xf32>
    tpu.vector_store %arg30[%c0_182, %c0_183], %390 {strides = array<i32>} : memref<8x128xf32, #tpu.memory_space<vmem>>, vector<8x128xf32>,
    %c1_184 = arith.constant 1 : index
    %c0_185 = arith.constant 0 : index
    %c0_186 = arith.constant 0 : index
    %392 = vector.load %arg19[%c1_184, %c0_185, %c0_186] : memref<2x16x64xf32, #tpu.memory_space<vmem>>, vector<1x16x64xf32>
    %393 = vector.shape_cast %392 : vector<1x16x64xf32> to vector<16x64xf32>
    %c1_187 = arith.constant 1 : index
    %c0_188 = arith.constant 0 : index
    %c0_189 = arith.constant 0 : index
    %394 = vector.load %arg20[%c1_187, %c0_188, %c0_189] : memref<2x16x64xf32, #tpu.memory_space<vmem>>, vector<1x16x64xf32>
    %395 = vector.shape_cast %394 : vector<1x16x64xf32> to vector<16x64xf32>
    %cst_190 = arith.constant 0.000000e+00 : f32
    %396 = vector.broadcast %cst_190 : f32 to vector<1x16xf32>
    %c0_i32_191 = arith.constant 0 : i32
    %c8_i32_192 = arith.constant 8 : i32
    %397 = arith.addi %c0_i32_191, %c8_i32_192 : i32
    %c1_i32_193 = arith.constant 1 : i32
    %398:4 = scf.for %arg35 = %c0_i32_191 to %397 step %c1_i32_193 iter_args(%arg36 = %396, %arg37 = %396, %arg38 = %396, %arg39 = %396) -> (vector<1x16xf32>, vector<1x16xf32>, vector<1x16xf32>, vector<1x16xf32>)  : i32 {
      %445 = arith.index_cast %arg35 : i32 to index
      %c0_223 = arith.constant 0 : index
      %446 = vector.load %arg30[%445, %c0_223] : memref<8x128xf32, #tpu.memory_space<vmem>>, vector<1x128xf32>
      %447 = vector.extract_strided_slice %446 {offsets = [0, 0], sizes = [1, 64], strides = [1, 1]} : vector<1x128xf32> to vector<1x64xf32>
      %cst_224 = arith.constant dense<0.000000e+00> : vector<1x64xf32>
      %448 = tpu.matmul %arg36, %393, %cst_224 {dimension_numbers = #tpu.dot_dimension_numbers<[1], [0], [0], [1], [0, 0, 1, 1], [], []>} : vector<1x16xf32>, vector<16x64xf32>, vector<1x64xf32> -> vector<1x64xf32>
      %449 = arith.addf %447, %448 : vector<1x64xf32>
      %450 = vector.extract_strided_slice %449 {offsets = [0, 0], sizes = [1, 16], strides = [1, 1]} : vector<1x64xf32> to vector<1x16xf32>
      %cst_225 = arith.constant 0.000000e+00 : f32
      %451 = vector.broadcast %cst_225 : f32 to vector<1x16xf32>
      %452 = arith.subf %451, %450 : vector<1x16xf32>
      %453 = math.exp %452 : vector<1x16xf32>
      %cst_226 = arith.constant 1.000000e+00 : f32
      %454 = vector.broadcast %cst_226 : f32 to vector<1x16xf32>
      %455 = arith.addf %454, %453 : vector<1x16xf32>
      %456 = tpu.reciprocal %455 {approx = true} : vector<1x16xf32> -> vector<1x16xf32>
      %457 = vector.extract_strided_slice %449 {offsets = [0, 16], sizes = [1, 16], strides = [1, 1]} : vector<1x64xf32> to vector<1x16xf32>
      %cst_227 = arith.constant 0.000000e+00 : f32
      %458 = vector.broadcast %cst_227 : f32 to vector<1x16xf32>
      %459 = arith.subf %458, %457 : vector<1x16xf32>
      %460 = math.exp %459 : vector<1x16xf32>
      %cst_228 = arith.constant 1.000000e+00 : f32
      %461 = vector.broadcast %cst_228 : f32 to vector<1x16xf32>
      %462 = arith.addf %461, %460 : vector<1x16xf32>
      %463 = tpu.reciprocal %462 {approx = true} : vector<1x16xf32> -> vector<1x16xf32>
      %464 = vector.extract_strided_slice %449 {offsets = [0, 32], sizes = [1, 16], strides = [1, 1]} : vector<1x64xf32> to vector<1x16xf32>
      %465 = math.tanh %464 : vector<1x16xf32>
      %466 = vector.extract_strided_slice %449 {offsets = [0, 48], sizes = [1, 16], strides = [1, 1]} : vector<1x64xf32> to vector<1x16xf32>
      %cst_229 = arith.constant 0.000000e+00 : f32
      %467 = vector.broadcast %cst_229 : f32 to vector<1x16xf32>
      %468 = arith.subf %467, %466 : vector<1x16xf32>
      %469 = math.exp %468 : vector<1x16xf32>
      %cst_230 = arith.constant 1.000000e+00 : f32
      %470 = vector.broadcast %cst_230 : f32 to vector<1x16xf32>
      %471 = arith.addf %470, %469 : vector<1x16xf32>
      %472 = tpu.reciprocal %471 {approx = true} : vector<1x16xf32> -> vector<1x16xf32>
      %473 = arith.mulf %463, %arg37 : vector<1x16xf32>
      %474 = arith.mulf %456, %465 : vector<1x16xf32>
      %475 = arith.addf %473, %474 : vector<1x16xf32>
      %476 = math.tanh %475 : vector<1x16xf32>
      %477 = arith.mulf %472, %476 : vector<1x16xf32>
      %478 = arith.index_cast %arg35 : i32 to index
      %c0_231 = arith.constant 0 : index
      %479 = vector.load %arg33[%478, %c0_231] : memref<8x16xf32, #tpu.memory_space<vmem>>, vector<1x16xf32>
      tpu.vector_store %arg33[%478, %c0_231], %477 {strides = array<i32>} : memref<8x16xf32, #tpu.memory_space<vmem>>, vector<1x16xf32>,
      %c7_i32_232 = arith.constant 7 : i32
      %480 = arith.subi %c7_i32_232, %arg35 : i32
      %481 = arith.index_cast %480 : i32 to index
      %c0_233 = arith.constant 0 : index
      %482 = vector.load %arg30[%481, %c0_233] : memref<8x128xf32, #tpu.memory_space<vmem>>, vector<1x128xf32>
      %483 = vector.extract_strided_slice %482 {offsets = [0, 64], sizes = [1, 64], strides = [1, 1]} : vector<1x128xf32> to vector<1x64xf32>
      %cst_234 = arith.constant dense<0.000000e+00> : vector<1x64xf32>
      %484 = tpu.matmul %arg38, %395, %cst_234 {dimension_numbers = #tpu.dot_dimension_numbers<[1], [0], [0], [1], [0, 0, 1, 1], [], []>} : vector<1x16xf32>, vector<16x64xf32>, vector<1x64xf32> -> vector<1x64xf32>
      %485 = arith.addf %483, %484 : vector<1x64xf32>
      %486 = vector.extract_strided_slice %485 {offsets = [0, 0], sizes = [1, 16], strides = [1, 1]} : vector<1x64xf32> to vector<1x16xf32>
      %cst_235 = arith.constant 0.000000e+00 : f32
      %487 = vector.broadcast %cst_235 : f32 to vector<1x16xf32>
      %488 = arith.subf %487, %486 : vector<1x16xf32>
      %489 = math.exp %488 : vector<1x16xf32>
      %cst_236 = arith.constant 1.000000e+00 : f32
      %490 = vector.broadcast %cst_236 : f32 to vector<1x16xf32>
      %491 = arith.addf %490, %489 : vector<1x16xf32>
      %492 = tpu.reciprocal %491 {approx = true} : vector<1x16xf32> -> vector<1x16xf32>
      %493 = vector.extract_strided_slice %485 {offsets = [0, 16], sizes = [1, 16], strides = [1, 1]} : vector<1x64xf32> to vector<1x16xf32>
      %cst_237 = arith.constant 0.000000e+00 : f32
      %494 = vector.broadcast %cst_237 : f32 to vector<1x16xf32>
      %495 = arith.subf %494, %493 : vector<1x16xf32>
      %496 = math.exp %495 : vector<1x16xf32>
      %cst_238 = arith.constant 1.000000e+00 : f32
      %497 = vector.broadcast %cst_238 : f32 to vector<1x16xf32>
      %498 = arith.addf %497, %496 : vector<1x16xf32>
      %499 = tpu.reciprocal %498 {approx = true} : vector<1x16xf32> -> vector<1x16xf32>
      %500 = vector.extract_strided_slice %485 {offsets = [0, 32], sizes = [1, 16], strides = [1, 1]} : vector<1x64xf32> to vector<1x16xf32>
      %501 = math.tanh %500 : vector<1x16xf32>
      %502 = vector.extract_strided_slice %485 {offsets = [0, 48], sizes = [1, 16], strides = [1, 1]} : vector<1x64xf32> to vector<1x16xf32>
      %cst_239 = arith.constant 0.000000e+00 : f32
      %503 = vector.broadcast %cst_239 : f32 to vector<1x16xf32>
      %504 = arith.subf %503, %502 : vector<1x16xf32>
      %505 = math.exp %504 : vector<1x16xf32>
      %cst_240 = arith.constant 1.000000e+00 : f32
      %506 = vector.broadcast %cst_240 : f32 to vector<1x16xf32>
      %507 = arith.addf %506, %505 : vector<1x16xf32>
      %508 = tpu.reciprocal %507 {approx = true} : vector<1x16xf32> -> vector<1x16xf32>
      %509 = arith.mulf %499, %arg39 : vector<1x16xf32>
      %510 = arith.mulf %492, %501 : vector<1x16xf32>
      %511 = arith.addf %509, %510 : vector<1x16xf32>
      %512 = math.tanh %511 : vector<1x16xf32>
      %513 = arith.mulf %508, %512 : vector<1x16xf32>
      %514 = arith.index_cast %480 : i32 to index
      %c0_241 = arith.constant 0 : index
      %515 = vector.load %arg34[%514, %c0_241] : memref<8x16xf32, #tpu.memory_space<vmem>>, vector<1x16xf32>
      tpu.vector_store %arg34[%514, %c0_241], %513 {strides = array<i32>} : memref<8x16xf32, #tpu.memory_space<vmem>>, vector<1x16xf32>,
      scf.yield %477, %475, %513, %511 : vector<1x16xf32>, vector<1x16xf32>, vector<1x16xf32>, vector<1x16xf32>
    }
    %c8_i32_194 = arith.constant 8 : i32
    %c0_195 = arith.constant 0 : index
    %c0_196 = arith.constant 0 : index
    %399 = vector.load %arg33[%c0_195, %c0_196] : memref<8x16xf32, #tpu.memory_space<vmem>>, vector<8x16xf32>
    %c0_197 = arith.constant 0 : index
    %c0_198 = arith.constant 0 : index
    %400 = vector.load %arg34[%c0_197, %c0_198] : memref<8x16xf32, #tpu.memory_space<vmem>>, vector<8x16xf32>
    %401 = tpu.concatenate %399, %400 in 1 : vector<8x16xf32>, vector<8x16xf32> -> vector<8x32xf32>
    %c0_199 = arith.constant 0 : index
    %c0_200 = arith.constant 0 : index
    %402 = vector.load %arg22[%c0_199, %c0_200] : memref<32x8xf32, #tpu.memory_space<vmem>>, vector<32x8xf32>
    %cst_201 = arith.constant dense<0.000000e+00> : vector<8x8xf32>
    %403 = tpu.matmul %401, %402, %cst_201 {dimension_numbers = #tpu.dot_dimension_numbers<[1], [0], [0], [1], [0, 0, 1, 1], [], []>} : vector<8x32xf32>, vector<32x8xf32>, vector<8x8xf32> -> vector<8x8xf32>
    %c0_202 = arith.constant 0 : index
    %c0_203 = arith.constant 0 : index
    %404 = vector.load %arg23[%c0_202, %c0_203] : memref<1x8xf32, #tpu.memory_space<vmem>>, vector<1x8xf32>
    %405 = vector.broadcast %404 : vector<1x8xf32> to vector<8x8xf32>
    %406 = arith.addf %403, %405 : vector<8x8xf32>
    %c0_204 = arith.constant 0 : index
    %c0_205 = arith.constant 0 : index
    %c0_206 = arith.constant 0 : index
    %407 = vector.load %arg27[%c0_204, %c0_205, %c0_206] : memref<1x8x8xf32, #tpu.memory_space<vmem>>, vector<1x8x8xf32>
    %408 = vector.shape_cast %407 : vector<1x8x8xf32> to vector<8x8xf32>
    %409 = vector.shape_cast %406 : vector<8x8xf32> to vector<1x8x8xf32>
    tpu.vector_store %arg27[%c0_204, %c0_205, %c0_206], %409 {strides = array<i32>} : memref<1x8x8xf32, #tpu.memory_space<vmem>>, vector<1x8x8xf32>,
    %c0_207 = arith.constant 0 : index
    %c0_208 = arith.constant 0 : index
    %410 = vector.load %arg24[%c0_207, %c0_208] : memref<8x8xf32, #tpu.memory_space<vmem>>, vector<8x8xf32>
    %411 = tpu.iota {dimensions = array<i32: 0>} : vector<8x8xi32>
    %412 = tpu.iota {dimensions = array<i32: 1>} : vector<8x8xi32>
    %413 = arith.cmpi eq, %411, %412 : vector<8x8xi32>
    %414 = arith.extui %413 : vector<8x8xi1> to vector<8x8xi32>
    %415 = arith.sitofp %414 : vector<8x8xi32> to vector<8x8xf32>
    %c0_209 = arith.constant 0 : index
    %c0_210 = arith.constant 0 : index
    %416 = vector.load %arg25[%c0_209, %c0_210] : memref<1x8xf32, #tpu.memory_space<vmem>>, vector<1x8xf32>
    %417 = vector.extract_strided_slice %406 {offsets = [0, 0], sizes = [1, 8], strides = [1, 1]} : vector<8x8xf32> to vector<1x8xf32>
    %418 = arith.addf %416, %417 : vector<1x8xf32>
    %c1_i32_211 = arith.constant 1 : i32
    %c7_i32 = arith.constant 7 : i32
    %419 = arith.addi %c1_i32_211, %c7_i32 : i32
    %c1_i32_212 = arith.constant 1 : i32
    %420 = scf.for %arg35 = %c1_i32_211 to %419 step %c1_i32_212 iter_args(%arg36 = %418) -> (vector<1x8xf32>)  : i32 {
      %445 = vector.broadcast %arg36 : vector<1x8xf32> to vector<8x8xf32>
      %446 = arith.mulf %415, %445 : vector<8x8xf32>
      %cst_223 = arith.constant dense<0.000000e+00> : vector<8xf32>
      %447 = vector.multi_reduction <add>, %446, %cst_223 [1] : vector<8x8xf32> to vector<8xf32>
      %448 = vector.shape_cast %447 : vector<8xf32> to vector<8x1xf32>
      %449 = vector.broadcast %448 : vector<8x1xf32> to vector<8x8xf32>
      %450 = arith.addf %449, %410 : vector<8x8xf32>
      %cst_224 = arith.constant dense<0xFF800000> : vector<8xf32>
      %451 = vector.multi_reduction <maximumf>, %450, %cst_224 [0] : vector<8x8xf32> to vector<8xf32>
      %452 = vector.shape_cast %451 : vector<8xf32> to vector<1x8xf32>
      %453 = vector.broadcast %452 : vector<1x8xf32> to vector<8x8xf32>
      %454 = arith.subf %450, %453 : vector<8x8xf32>
      %455 = math.exp %454 : vector<8x8xf32>
      %cst_225 = arith.constant dense<0.000000e+00> : vector<8xf32>
      %456 = vector.multi_reduction <add>, %455, %cst_225 [0] : vector<8x8xf32> to vector<8xf32>
      %457 = vector.shape_cast %456 : vector<8xf32> to vector<1x8xf32>
      %458 = math.log %457 : vector<1x8xf32>
      %459 = arith.addf %452, %458 : vector<1x8xf32>
      %c0_226 = arith.constant 0 : index
      %460 = arith.index_cast %arg35 : i32 to index
      %c0_227 = arith.constant 0 : index
      %461 = vector.load %arg27[%c0_226, %460, %c0_227] : memref<1x8x8xf32, #tpu.memory_space<vmem>>, vector<1x1x8xf32>
      %462 = vector.shape_cast %461 : vector<1x1x8xf32> to vector<1x8xf32>
      %463 = arith.addf %459, %462 : vector<1x8xf32>
      %464 = arith.index_cast %arg0 : i32 to index
      %465 = arith.index_cast %arg35 : i32 to index
      %466 = memref.load %arg1[%464, %465] : memref<2x8xi32, #tpu.memory_space<smem>>
      %c0_i32_228 = arith.constant 0 : i32
      %467 = arith.cmpi sgt, %466, %c0_i32_228 : i32
      %468 = arith.select %467, %463, %arg36 : vector<1x8xf32>
      scf.yield %468 : vector<1x8xf32>
    }
    %c7_i32_213 = arith.constant 7 : i32
    %c0_214 = arith.constant 0 : index
    %c0_215 = arith.constant 0 : index
    %421 = vector.load %arg26[%c0_214, %c0_215] : memref<1x8xf32, #tpu.memory_space<vmem>>, vector<1x8xf32>
    %422 = arith.addf %420, %421 : vector<1x8xf32>
    %423 = vector.shape_cast %422 : vector<1x8xf32> to vector<1x1x8xf32>
    %cst_216 = arith.constant dense<0xFF800000> : vector<1xf32>
    %424 = vector.multi_reduction <maximumf>, %423, %cst_216 [1, 2] : vector<1x1x8xf32> to vector<1xf32>
    %425 = vector.shape_cast %424 : vector<1xf32> to vector<1x1x1xf32>
    %426 = vector.extract %425[0, 0, 0] : f32 from vector<1x1x1xf32>
    %427 = vector.broadcast %426 : f32 to vector<1x8xf32>
    %428 = arith.subf %422, %427 : vector<1x8xf32>
    %429 = math.exp %428 : vector<1x8xf32>
    %430 = vector.shape_cast %429 : vector<1x8xf32> to vector<1x1x8xf32>
    %cst_217 = arith.constant dense<0.000000e+00> : vector<1xf32>
    %431 = vector.multi_reduction <add>, %430, %cst_217 [1, 2] : vector<1x1x8xf32> to vector<1xf32>
    %432 = vector.shape_cast %431 : vector<1xf32> to vector<1x1x1xf32>
    %433 = vector.extract %432[0, 0, 0] : f32 from vector<1x1x1xf32>
    %434 = math.log %433 : f32
    %435 = arith.addf %426, %434 : f32
    %436 = tpu.iota {dimensions = array<i32: 1>} : vector<1x8xi32>
    %c0_i32_218 = arith.constant 0 : i32
    %437 = vector.broadcast %c0_i32_218 : i32 to vector<1x8xi32>
    %438 = arith.cmpi eq, %436, %437 : vector<1x8xi32>
    %cst_219 = arith.constant 0.000000e+00 : f32
    %439 = vector.broadcast %435 : f32 to vector<1x8xf32>
    %440 = vector.broadcast %cst_219 : f32 to vector<1x8xf32>
    %441 = arith.select %438, %439, %440 : vector<1x8xi1>, vector<1x8xf32>
    %c0_220 = arith.constant 0 : index
    %c0_221 = arith.constant 0 : index
    %c0_222 = arith.constant 0 : index
    %442 = vector.load %arg28[%c0_220, %c0_221, %c0_222] : memref<1x1x8xf32, #tpu.memory_space<vmem>>, vector<1x1x8xf32>
    %443 = vector.shape_cast %442 : vector<1x1x8xf32> to vector<1x8xf32>
    %444 = vector.shape_cast %441 : vector<1x8xf32> to vector<1x1x8xf32>
    tpu.vector_store %arg28[%c0_220, %c0_221, %c0_222], %444 {strides = array<i32>} : memref<1x1x8xf32, #tpu.memory_space<vmem>>, vector<1x1x8xf32>,
    return
  }
  func.func @transform_0(%arg0: i32, %arg1: memref<2x8xi32, #tpu.memory_space<smem>>) -> (i32, i32, i32) {
    %c0_i32 = arith.constant 0 : i32
    %c0_i32_0 = arith.constant 0 : i32
    %c0_i32_1 = arith.constant 0 : i32
    return %arg0, %c0_i32, %c0_i32_0 : i32, i32, i32
  }
  func.func @transform_1(%arg0: i32, %arg1: memref<2x8xi32, #tpu.memory_space<smem>>) -> (i32, i32, i32) {
    %c0_i32 = arith.constant 0 : i32
    %c0_i32_0 = arith.constant 0 : i32
    %c0_i32_1 = arith.constant 0 : i32
    return %arg0, %c0_i32, %c0_i32_0 : i32, i32, i32
  }
  func.func @transform_2(%arg0: i32, %arg1: memref<2x8xi32, #tpu.memory_space<smem>>) -> (i32, i32) {
    %c0_i32 = arith.constant 0 : i32
    %c0_i32_0 = arith.constant 0 : i32
    %c0_i32_1 = arith.constant 0 : i32
    return %c0_i32, %c0_i32_0 : i32, i32
  }
  func.func @transform_3(%arg0: i32, %arg1: memref<2x8xi32, #tpu.memory_space<smem>>) -> (i32, i32) {
    %c0_i32 = arith.constant 0 : i32
    %c0_i32_0 = arith.constant 0 : i32
    %c0_i32_1 = arith.constant 0 : i32
    return %c0_i32, %c0_i32_0 : i32, i32
  }
  func.func @transform_4(%arg0: i32, %arg1: memref<2x8xi32, #tpu.memory_space<smem>>) -> (i32, i32, i32) {
    %c0_i32 = arith.constant 0 : i32
    %c0_i32_0 = arith.constant 0 : i32
    %c0_i32_1 = arith.constant 0 : i32
    %c0_i32_2 = arith.constant 0 : i32
    return %c0_i32, %c0_i32_0, %c0_i32_1 : i32, i32, i32
  }
  func.func @transform_5(%arg0: i32, %arg1: memref<2x8xi32, #tpu.memory_space<smem>>) -> (i32, i32, i32) {
    %c0_i32 = arith.constant 0 : i32
    %c0_i32_0 = arith.constant 0 : i32
    %c0_i32_1 = arith.constant 0 : i32
    %c0_i32_2 = arith.constant 0 : i32
    return %c0_i32, %c0_i32_0, %c0_i32_1 : i32, i32, i32
  }
  func.func @transform_6(%arg0: i32, %arg1: memref<2x8xi32, #tpu.memory_space<smem>>) -> (i32, i32, i32) {
    %c0_i32 = arith.constant 0 : i32
    %c0_i32_0 = arith.constant 0 : i32
    %c0_i32_1 = arith.constant 0 : i32
    %c0_i32_2 = arith.constant 0 : i32
    return %c0_i32, %c0_i32_0, %c0_i32_1 : i32, i32, i32
  }
  func.func @transform_7(%arg0: i32, %arg1: memref<2x8xi32, #tpu.memory_space<smem>>) -> (i32, i32, i32) {
    %c0_i32 = arith.constant 0 : i32
    %c0_i32_0 = arith.constant 0 : i32
    %c0_i32_1 = arith.constant 0 : i32
    %c0_i32_2 = arith.constant 0 : i32
    return %c0_i32, %c0_i32_0, %c0_i32_1 : i32, i32, i32
  }
  func.func @transform_8(%arg0: i32, %arg1: memref<2x8xi32, #tpu.memory_space<smem>>) -> (i32, i32, i32) {
    %c0_i32 = arith.constant 0 : i32
    %c0_i32_0 = arith.constant 0 : i32
    %c0_i32_1 = arith.constant 0 : i32
    %c0_i32_2 = arith.constant 0 : i32
    return %c0_i32, %c0_i32_0, %c0_i32_1 : i32, i32, i32
  }
  func.func @transform_9(%arg0: i32, %arg1: memref<2x8xi32, #tpu.memory_space<smem>>) -> (i32, i32, i32) {
    %c0_i32 = arith.constant 0 : i32
    %c0_i32_0 = arith.constant 0 : i32
    %c0_i32_1 = arith.constant 0 : i32
    %c0_i32_2 = arith.constant 0 : i32
    return %c0_i32, %c0_i32_0, %c0_i32_1 : i32, i32, i32
  }
  func.func @transform_10(%arg0: i32, %arg1: memref<2x8xi32, #tpu.memory_space<smem>>) -> (i32, i32, i32) {
    %c0_i32 = arith.constant 0 : i32
    %c0_i32_0 = arith.constant 0 : i32
    %c0_i32_1 = arith.constant 0 : i32
    %c0_i32_2 = arith.constant 0 : i32
    return %c0_i32, %c0_i32_0, %c0_i32_1 : i32, i32, i32
  }
  func.func @transform_11(%arg0: i32, %arg1: memref<2x8xi32, #tpu.memory_space<smem>>) -> (i32, i32, i32) {
    %c0_i32 = arith.constant 0 : i32
    %c0_i32_0 = arith.constant 0 : i32
    %c0_i32_1 = arith.constant 0 : i32
    %c0_i32_2 = arith.constant 0 : i32
    return %c0_i32, %c0_i32_0, %c0_i32_1 : i32, i32, i32
  }
  func.func @transform_12(%arg0: i32, %arg1: memref<2x8xi32, #tpu.memory_space<smem>>) -> (i32, i32, i32) {
    %c0_i32 = arith.constant 0 : i32
    %c0_i32_0 = arith.constant 0 : i32
    %c0_i32_1 = arith.constant 0 : i32
    %c0_i32_2 = arith.constant 0 : i32
    return %c0_i32, %c0_i32_0, %c0_i32_1 : i32, i32, i32
  }
  func.func @transform_13(%arg0: i32, %arg1: memref<2x8xi32, #tpu.memory_space<smem>>) -> (i32, i32, i32) {
    %c0_i32 = arith.constant 0 : i32
    %c0_i32_0 = arith.constant 0 : i32
    %c0_i32_1 = arith.constant 0 : i32
    %c0_i32_2 = arith.constant 0 : i32
    return %c0_i32, %c0_i32_0, %c0_i32_1 : i32, i32, i32
  }
  func.func @transform_14(%arg0: i32, %arg1: memref<2x8xi32, #tpu.memory_space<smem>>) -> (i32, i32, i32) {
    %c0_i32 = arith.constant 0 : i32
    %c0_i32_0 = arith.constant 0 : i32
    %c0_i32_1 = arith.constant 0 : i32
    %c0_i32_2 = arith.constant 0 : i32
    return %c0_i32, %c0_i32_0, %c0_i32_1 : i32, i32, i32
  }
  func.func @transform_15(%arg0: i32, %arg1: memref<2x8xi32, #tpu.memory_space<smem>>) -> (i32, i32, i32) {
    %c0_i32 = arith.constant 0 : i32
    %c0_i32_0 = arith.constant 0 : i32
    %c0_i32_1 = arith.constant 0 : i32
    %c0_i32_2 = arith.constant 0 : i32
    return %c0_i32, %c0_i32_0, %c0_i32_1 : i32, i32, i32
  }
  func.func @transform_16(%arg0: i32, %arg1: memref<2x8xi32, #tpu.memory_space<smem>>) -> (i32, i32, i32) {
    %c0_i32 = arith.constant 0 : i32
    %c0_i32_0 = arith.constant 0 : i32
    %c0_i32_1 = arith.constant 0 : i32
    %c0_i32_2 = arith.constant 0 : i32
    return %c0_i32, %c0_i32_0, %c0_i32_1 : i32, i32, i32
  }
  func.func @transform_17(%arg0: i32, %arg1: memref<2x8xi32, #tpu.memory_space<smem>>) -> (i32, i32, i32) {
    %c0_i32 = arith.constant 0 : i32
    %c0_i32_0 = arith.constant 0 : i32
    %c0_i32_1 = arith.constant 0 : i32
    %c0_i32_2 = arith.constant 0 : i32
    return %c0_i32, %c0_i32_0, %c0_i32_1 : i32, i32, i32
  }
  func.func @transform_18(%arg0: i32, %arg1: memref<2x8xi32, #tpu.memory_space<smem>>) -> (i32, i32, i32) {
    %c0_i32 = arith.constant 0 : i32
    %c0_i32_0 = arith.constant 0 : i32
    %c0_i32_1 = arith.constant 0 : i32
    %c0_i32_2 = arith.constant 0 : i32
    return %c0_i32, %c0_i32_0, %c0_i32_1 : i32, i32, i32
  }
  func.func @transform_19(%arg0: i32, %arg1: memref<2x8xi32, #tpu.memory_space<smem>>) -> (i32, i32, i32) {
    %c0_i32 = arith.constant 0 : i32
    %c0_i32_0 = arith.constant 0 : i32
    %c0_i32_1 = arith.constant 0 : i32
    %c0_i32_2 = arith.constant 0 : i32
    return %c0_i32, %c0_i32_0, %c0_i32_1 : i32, i32, i32
  }
  func.func @transform_20(%arg0: i32, %arg1: memref<2x8xi32, #tpu.memory_space<smem>>) -> (i32, i32) {
    %c0_i32 = arith.constant 0 : i32
    %c0_i32_0 = arith.constant 0 : i32
    %c0_i32_1 = arith.constant 0 : i32
    return %c0_i32, %c0_i32_0 : i32, i32
  }
  func.func @transform_21(%arg0: i32, %arg1: memref<2x8xi32, #tpu.memory_space<smem>>) -> (i32, i32) {
    %c0_i32 = arith.constant 0 : i32
    %c0_i32_0 = arith.constant 0 : i32
    %c0_i32_1 = arith.constant 0 : i32
    return %c0_i32, %c0_i32_0 : i32, i32
  }
  func.func @transform_22(%arg0: i32, %arg1: memref<2x8xi32, #tpu.memory_space<smem>>) -> (i32, i32) {
    %c0_i32 = arith.constant 0 : i32
    %c0_i32_0 = arith.constant 0 : i32
    %c0_i32_1 = arith.constant 0 : i32
    return %c0_i32, %c0_i32_0 : i32, i32
  }
  func.func @transform_23(%arg0: i32, %arg1: memref<2x8xi32, #tpu.memory_space<smem>>) -> (i32, i32) {
    %c0_i32 = arith.constant 0 : i32
    %c0_i32_0 = arith.constant 0 : i32
    %c0_i32_1 = arith.constant 0 : i32
    return %c0_i32, %c0_i32_0 : i32, i32
  }
  func.func @transform_24(%arg0: i32, %arg1: memref<2x8xi32, #tpu.memory_space<smem>>) -> (i32, i32) {
    %c0_i32 = arith.constant 0 : i32
    %c0_i32_0 = arith.constant 0 : i32
    %c0_i32_1 = arith.constant 0 : i32
    return %c0_i32, %c0_i32_0 : i32, i32
  }
  func.func @transform_25(%arg0: i32, %arg1: memref<2x8xi32, #tpu.memory_space<smem>>) -> (i32, i32, i32) {
    %c0_i32 = arith.constant 0 : i32
    %c0_i32_0 = arith.constant 0 : i32
    %c0_i32_1 = arith.constant 0 : i32
    return %arg0, %c0_i32, %c0_i32_0 : i32, i32, i32
  }
  func.func @transform_26(%arg0: i32, %arg1: memref<2x8xi32, #tpu.memory_space<smem>>) -> (i32, i32, i32) {
    %c0_i32 = arith.constant 0 : i32
    %c0_i32_0 = arith.constant 0 : i32
    %c0_i32_1 = arith.constant 0 : i32
    return %arg0, %c0_i32, %c0_i32_0 : i32, i32, i32
  }
}

</mosaic_0001>

<llo_original>
// kernel: custom-call.18
$region0: #{custom-call.18}
  %s0 = inlined_call_operand.vmem [shape: s32[7,2,5], index: 0, kind: output, shape index: {}]

// kernel: forward.1
$region0: #{forward.1}
  #allocation0 [shape = 'u32[]', space=smem, size = 0x4, offset = 0x4, fixed_abs, tag = 'smem constant byte address 0x4 - core index']
  #allocation1 [shape = 'u32[144,128]{1,0:T(1,128)}', space=vmem, size = 0x12000, scoped, tag = 'internal scratch']
  #allocation2 [shape = 'f32[8,128]{1,0:T(8,128)}', space=vmem, size = 0x1000, scoped, tag = 'scratch operand']
  #allocation3 [shape = 'f32[8,128]{1,0:T(8,128)}', space=vmem, size = 0x1000, scoped, tag = 'scratch operand']
  #allocation4 [shape = 'f32[8,16]{1,0:T(8,128)}', space=vmem, size = 0x1000, scoped, tag = 'scratch operand']
  #allocation5 [shape = 'f32[8,16]{1,0:T(8,128)}', space=vmem, size = 0x1000, scoped, tag = 'scratch operand']
  #allocation6 [shape = 'f32[8,16]{1,0:T(8,128)}', space=vmem, size = 0x1000, scoped, tag = 'scratch operand']
  #allocation7 [shape = 'f32[8,16]{1,0:T(8,128)}', space=vmem, size = 0x1000, scoped, tag = 'scratch operand']
  #allocation8 [shape = 's32[1]{0}', space=sflag, size = 0x4, scoped, tag = 'scoped memory for forward.1']
  #allocation9 [shape = 'u8[1024]{0}', space=smem, size = 0x400, scoped, tag = 'prefetched SMEM operand 0']
  %s0 = inlined_call_operand.vmem [shape: s32[2,8], index: 0, kind: input, shape index: {}]
  %s1 = inlined_call_operand.vmem [shape: f32[2,8,32], index: 1, kind: input, shape index: {}]
  %s2 = inlined_call_operand.vmem [shape: f32[2,1,8], index: 2, kind: input, shape index: {}]
  %s3 = inlined_call_operand.vmem [shape: f32[1,32], index: 3, kind: input, shape index: {}]
  %s4 = inlined_call_operand.vmem [shape: f32[1,32], index: 4, kind: input, shape index: {}]
  %s5 = inlined_call_operand.vmem [shape: f32[2,32,96], index: 5, kind: input, shape index: {}]
  %s6 = inlined_call_operand.vmem [shape: f32[2,1,96], index: 6, kind: input, shape index: {}]
  %s7 = inlined_call_operand.vmem [shape: f32[2,32,32], index: 7, kind: input, shape index: {}]
  %s8 = inlined_call_operand.vmem [shape: f32[2,1,32], index: 8, kind: input, shape index: {}]
  %s9 = inlined_call_operand.vmem [shape: f32[2,1,32], index: 9, kind: input, shape index: {}]
  %s10 = inlined_call_operand.vmem [shape: f32[2,1,32], index: 10, kind: input, shape index: {}]
  %s11 = inlined_call_operand.vmem [shape: f32[2,32,64], index: 11, kind: input, shape index: {}]
  %s12 = inlined_call_operand.vmem [shape: f32[2,1,64], index: 12, kind: input, shape index: {}]
  %s13 = inlined_call_operand.vmem [shape: f32[2,64,32], index: 13, kind: input, shape index: {}]
  %s14 = inlined_call_operand.vmem [shape: f32[2,1,32], index: 14, kind: input, shape index: {}]
  %s15 = inlined_call_operand.vmem [shape: f32[2,1,32], index: 15, kind: input, shape index: {}]
  %s16 = inlined_call_operand.vmem [shape: f32[2,1,32], index: 16, kind: input, shape index: {}]
  %s17 = inlined_call_operand.vmem [shape: f32[2,32,128], index: 17, kind: input, shape index: {}]
  %s18 = inlined_call_operand.vmem [shape: f32[2,16,64], index: 18, kind: input, shape index: {}]
  %s19 = inlined_call_operand.vmem [shape: f32[2,16,64], index: 19, kind: input, shape index: {}]
  %s20 = inlined_call_operand.vmem [shape: f32[2,1,128], index: 20, kind: input, shape index: {}]
  %s21 = inlined_call_operand.vmem [shape: f32[32,8], index: 21, kind: input, shape index: {}]
  %s22 = inlined_call_operand.vmem [shape: f32[1,8], index: 22, kind: input, shape index: {}]
  %s23 = inlined_call_operand.vmem [shape: f32[8,8], index: 23, kind: input, shape index: {}]
  %s24 = inlined_call_operand.vmem [shape: f32[1,8], index: 24, kind: input, shape index: {}]
  %s25 = inlined_call_operand.vmem [shape: f32[1,8], index: 25, kind: input, shape index: {}]
  %s26 = inlined_call_operand.vmem [shape: f32[2,8,8], index: 26, kind: output, shape index: {0}]
  %s27 = inlined_call_operand.vmem [shape: f32[2,1,8], index: 27, kind: output, shape index: {1}]
  %28 = xla_tuple %s26, %s27
  %s29 = sld [smem:[#allocation0]]
  $region162: #{forward.1} parent=0
    _
  %s31 = ssub.s32 1, %s29
  %s32 = scalar_select 0, %s31, %s29
  %s33 = sshll.u32 %s0, 4
  %s34 = int_to_ptr.vmem [resolvable:$true] %s33
  %36 = dma.vmem_to_smem %s34, 32, [#allocation9], [#allocation8]
  %37 = dma.done [#allocation8], 32
  %38 = sfence
  loop: start=0, step=1, limit=4
  $region2: #{forward.1} parent=0 // loop_pre_header
    _
  $region3: #{forward.1} parent=0 // loop_header
    %s40 = sphi 0, %s44
    %p41 = scmp.ge.s32.totalorder %s40, 4
    %s50 = sphi 0, %s52
    %s53 = sphi 0, %s50
    %s54 = sphi 0, %s53
    %s70 = sphi 0, %s54
    %s76 = sphi 0, %s78
    %s79 = sphi 0, %s76
    %s80 = sphi 0, %s79
    %s96 = sphi 0, %s80
    %s100 = sphi 0, %s100
    %s102 = sphi 0, %s100
    %s103 = sphi 0, %s102
    %s117 = sphi 0, %s103
    %s121 = sphi 0, %s121
    %s123 = sphi 0, %s121
    %s124 = sphi 0, %s123
    %s138 = sphi 0, %s124
    %s142 = sphi 0, %s142
    %s144 = sphi 0, %s142
    %s145 = sphi 0, %s144
    %s159 = sphi 0, %s145
    %s163 = sphi 0, %s163
    %s165 = sphi 0, %s163
    %s166 = sphi 0, %s165
    %s180 = sphi 0, %s166
    %s184 = sphi 0, %s184
    %s186 = sphi 0, %s184
    %s187 = sphi 0, %s186
    %s201 = sphi 0, %s187
    %s205 = sphi 0, %s205
    %s207 = sphi 0, %s205
    %s208 = sphi 0, %s207
    %s222 = sphi 0, %s208
    %s226 = sphi 0, %s226
    %s228 = sphi 0, %s226
    %s229 = sphi 0, %s228
    %s243 = sphi 0, %s229
    %s247 = sphi 0, %s247
    %s249 = sphi 0, %s247
    %s250 = sphi 0, %s249
    %s264 = sphi 0, %s250
    %s268 = sphi 0, %s268
    %s270 = sphi 0, %s268
    %s271 = sphi 0, %s270
    %s285 = sphi 0, %s271
    %s289 = sphi 0, %s289
    %s291 = sphi 0, %s289
    %s292 = sphi 0, %s291
    %s306 = sphi 0, %s292
    %s310 = sphi 0, %s310
    %s312 = sphi 0, %s310
    %s313 = sphi 0, %s312
    %s327 = sphi 0, %s313
    %s331 = sphi 0, %s331
    %s333 = sphi 0, %s331
    %s334 = sphi 0, %s333
    %s348 = sphi 0, %s334
    %s352 = sphi 0, %s352
    %s354 = sphi 0, %s352
    %s355 = sphi 0, %s354
    %s369 = sphi 0, %s355
    %s373 = sphi 0, %s373
    %s375 = sphi 0, %s373
    %s376 = sphi 0, %s375
    %s390 = sphi 0, %s376
    %s394 = sphi 0, %s394
    %s396 = sphi 0, %s394
    %s397 = sphi 0, %s396
    %s411 = sphi 0, %s397
    %s415 = sphi 0, %s415
    %s417 = sphi 0, %s415
    %s418 = sphi 0, %s417
    %s432 = sphi 0, %s418
    %s436 = sphi 0, %s436
    %s438 = sphi 0, %s436
    %s439 = sphi 0, %s438
    %s453 = sphi 0, %s439
    %s457 = sphi 0, %s457
    %s459 = sphi 0, %s457
    %s460 = sphi 0, %s459
    %s474 = sphi 0, %s460
    %s478 = sphi 0, %s478
    %s480 = sphi 0, %s478
    %s481 = sphi 0, %s480
    %s495 = sphi 0, %s481
    %s499 = sphi 0, %s499
    %s501 = sphi 0, %s499
    %s502 = sphi 0, %s501
    %s516 = sphi 0, %s502
    %s520 = sphi 0, %s520
    %s522 = sphi 0, %s520
    %s523 = sphi 0, %s522
    %s537 = sphi 0, %s523
    %s541 = sphi 0, %s541
    %s543 = sphi 0, %s541
    %s544 = sphi 0, %s543
    %s558 = sphi 0, %s544
    %s562 = sphi 0, %s562
    %s564 = sphi 0, %s562
    %s565 = sphi 0, %s564
    %s579 = sphi 0, %s565
    %s585 = sphi 0, %s587
    %s588 = sphi 0, %s585
    %s589 = sphi 0, %s588
    %s605 = sphi 0, %s589
    %s611 = sphi 0, %s613
    %s614 = sphi 0, %s611
    %s615 = sphi 0, %s614
    %s631 = sphi 0, %s615
  $region4: #{forward.1} parent=0 // loop_header_branch
    %43 = sbr.rel (%p41) target = $region8
  $region5: #{forward.1} parent=0 // loop_body
    %s45 = ssub.s32 %s40, 1
    %s46 = ssub.s32 %s40, 2
    %s47 = sadd.s32 %s40, 1
    %s48 = ssub.s32 %s40, %s47
    %p49 = scmp.eq.s32.totalorder %s48, 0
    %s51 = sadd.s32 %s50, 1
    %s52 = scalar_select %p49, %s50, %s51
    %p55 = pneg %p49
    %p56 = scmp.eq.s32.totalorder %s40, 1
    %p57 = por %p55, %p56
    %p58 = scmp.ne.s32.totalorder %s50, %s53
    %p59 = scmp.eq.s32.totalorder %s40, 0
    %p60 = por %p58, %p59
    %p61 = scmp.ne.s32.totalorder %s50, %s53
    %p62 = scmp.eq.s32.totalorder %s45, 1
    %p63 = por %p61, %p62
    %p64 = scmp.ne.s32.totalorder %s53, %s54
    %p65 = scmp.eq.s32.totalorder %s45, 0
    %p66 = por %p64, %p65
    %p67 = scmp.ne.s32.totalorder %s53, %s54
    %p68 = scmp.eq.s32.totalorder %s46, 1
    %p69 = por %p67, %p68
    %p71 = scmp.ne.s32.totalorder %s54, %s70
    %p72 = scmp.eq.s32.totalorder %s46, 0
    %p73 = por %p71, %p72
    %s74 = ssub.s32 %s40, %s47
    %p75 = scmp.eq.s32.totalorder %s74, 0
    %s77 = sadd.s32 %s76, 1
    %s78 = scalar_select %p75, %s76, %s77
    %p81 = pneg %p75
    %p82 = scmp.eq.s32.totalorder %s40, 1
    %p83 = por %p81, %p82
    %p84 = scmp.ne.s32.totalorder %s76, %s79
    %p85 = scmp.eq.s32.totalorder %s40, 0
    %p86 = por %p84, %p85
    %p87 = scmp.ne.s32.totalorder %s76, %s79
    %p88 = scmp.eq.s32.totalorder %s45, 1
    %p89 = por %p87, %p88
    %p90 = scmp.ne.s32.totalorder %s79, %s80
    %p91 = scmp.eq.s32.totalorder %s45, 0
    %p92 = por %p90, %p91
    %p93 = scmp.ne.s32.totalorder %s79, %s80
    %p94 = scmp.eq.s32.totalorder %s46, 1
    %p95 = por %p93, %p94
    %p97 = scmp.ne.s32.totalorder %s80, %s96
    %p98 = scmp.eq.s32.totalorder %s46, 0
    %p99 = por %p97, %p98
    %s101 = sadd.s32 %s100, 1
    %p104 = scmp.eq.s32.totalorder %s40, 1
    %p105 = scmp.ne.s32.totalorder %s100, %s102
    %p106 = scmp.eq.s32.totalorder %s40, 0
    %p107 = por %p105, %p106
    %p108 = scmp.ne.s32.totalorder %s100, %s102
    %p109 = scmp.eq.s32.totalorder %s45, 1
    %p110 = por %p108, %p109
    %p111 = scmp.ne.s32.totalorder %s102, %s103
    %p112 = scmp.eq.s32.totalorder %s45, 0
    %p113 = por %p111, %p112
    %p114 = scmp.ne.s32.totalorder %s102, %s103
    %p115 = scmp.eq.s32.totalorder %s46, 1
    %p116 = por %p114, %p115
    %p118 = scmp.ne.s32.totalorder %s103, %s117
    %p119 = scmp.eq.s32.totalorder %s46, 0
    %p120 = por %p118, %p119
    %s122 = sadd.s32 %s121, 1
    %p125 = scmp.eq.s32.totalorder %s40, 1
    %p126 = scmp.ne.s32.totalorder %s121, %s123
    %p127 = scmp.eq.s32.totalorder %s40, 0
    %p128 = por %p126, %p127
    %p129 = scmp.ne.s32.totalorder %s121, %s123
    %p130 = scmp.eq.s32.totalorder %s45, 1
    %p131 = por %p129, %p130
    %p132 = scmp.ne.s32.totalorder %s123, %s124
    %p133 = scmp.eq.s32.totalorder %s45, 0
    %p134 = por %p132, %p133
    %p135 = scmp.ne.s32.totalorder %s123, %s124
    %p136 = scmp.eq.s32.totalorder %s46, 1
    %p137 = por %p135, %p136
    %p139 = scmp.ne.s32.totalorder %s124, %s138
    %p140 = scmp.eq.s32.totalorder %s46, 0
    %p141 = por %p139, %p140
    %s143 = sadd.s32 %s142, 1
    %p146 = scmp.eq.s32.totalorder %s40, 1
    %p147 = scmp.ne.s32.totalorder %s142, %s144
    %p148 = scmp.eq.s32.totalorder %s40, 0
    %p149 = por %p147, %p148
    %p150 = scmp.ne.s32.totalorder %s142, %s144
    %p151 = scmp.eq.s32.totalorder %s45, 1
    %p152 = por %p150, %p151
    %p153 = scmp.ne.s32.totalorder %s144, %s145
    %p154 = scmp.eq.s32.totalorder %s45, 0
    %p155 = por %p153, %p154
    %p156 = scmp.ne.s32.totalorder %s144, %s145
    %p157 = scmp.eq.s32.totalorder %s46, 1
    %p158 = por %p156, %p157
    %p160 = scmp.ne.s32.totalorder %s145, %s159
    %p161 = scmp.eq.s32.totalorder %s46, 0
    %p162 = por %p160, %p161
    %s164 = sadd.s32 %s163, 1
    %p167 = scmp.eq.s32.totalorder %s40, 1
    %p168 = scmp.ne.s32.totalorder %s163, %s165
    %p169 = scmp.eq.s32.totalorder %s40, 0
    %p170 = por %p168, %p169
    %p171 = scmp.ne.s32.totalorder %s163, %s165
    %p172 = scmp.eq.s32.totalorder %s45, 1
    %p173 = por %p171, %p172
    %p174 = scmp.ne.s32.totalorder %s165, %s166
    %p175 = scmp.eq.s32.totalorder %s45, 0
    %p176 = por %p174, %p175
    %p177 = scmp.ne.s32.totalorder %s165, %s166
    %p178 = scmp.eq.s32.totalorder %s46, 1
    %p179 = por %p177, %p178
    %p181 = scmp.ne.s32.totalorder %s166, %s180
    %p182 = scmp.eq.s32.totalorder %s46, 0
    %p183 = por %p181, %p182
    %s185 = sadd.s32 %s184, 1
    %p188 = scmp.eq.s32.totalorder %s40, 1
    %p189 = scmp.ne.s32.totalorder %s184, %s186
    %p190 = scmp.eq.s32.totalorder %s40, 0
    %p191 = por %p189, %p190
    %p192 = scmp.ne.s32.totalorder %s184, %s186
    %p193 = scmp.eq.s32.totalorder %s45, 1
    %p194 = por %p192, %p193
    %p195 = scmp.ne.s32.totalorder %s186, %s187
    %p196 = scmp.eq.s32.totalorder %s45, 0
    %p197 = por %p195, %p196
    %p198 = scmp.ne.s32.totalorder %s186, %s187
    %p199 = scmp.eq.s32.totalorder %s46, 1
    %p200 = por %p198, %p199
    %p202 = scmp.ne.s32.totalorder %s187, %s201
    %p203 = scmp.eq.s32.totalorder %s46, 0
    %p204 = por %p202, %p203
    %s206 = sadd.s32 %s205, 1
    %p209 = scmp.eq.s32.totalorder %s40, 1
    %p210 = scmp.ne.s32.totalorder %s205, %s207
    %p211 = scmp.eq.s32.totalorder %s40, 0
    %p212 = por %p210, %p211
    %p213 = scmp.ne.s32.totalorder %s205, %s207
    %p214 = scmp.eq.s32.totalorder %s45, 1
    %p215 = por %p213, %p214
    %p216 = scmp.ne.s32.totalorder %s207, %s208
    %p217 = scmp.eq.s32.totalorder %s45, 0
    %p218 = por %p216, %p217
    %p219 = scmp.ne.s32.totalorder %s207, %s208
    %p220 = scmp.eq.s32.totalorder %s46, 1
    %p221 = por %p219, %p220
    %p223 = scmp.ne.s32.totalorder %s208, %s222
    %p224 = scmp.eq.s32.totalorder %s46, 0
    %p225 = por %p223, %p224
    %s227 = sadd.s32 %s226, 1
    %p230 = scmp.eq.s32.totalorder %s40, 1
    %p231 = scmp.ne.s32.totalorder %s226, %s228
    %p232 = scmp.eq.s32.totalorder %s40, 0
    %p233 = por %p231, %p232
    %p234 = scmp.ne.s32.totalorder %s226, %s228
    %p235 = scmp.eq.s32.totalorder %s45, 1
    %p236 = por %p234, %p235
    %p237 = scmp.ne.s32.totalorder %s228, %s229
    %p238 = scmp.eq.s32.totalorder %s45, 0
    %p239 = por %p237, %p238
    %p240 = scmp.ne.s32.totalorder %s228, %s229
    %p241 = scmp.eq.s32.totalorder %s46, 1
    %p242 = por %p240, %p241
    %p244 = scmp.ne.s32.totalorder %s229, %s243
    %p245 = scmp.eq.s32.totalorder %s46, 0
    %p246 = por %p244, %p245
    %s248 = sadd.s32 %s247, 1
    %p251 = scmp.eq.s32.totalorder %s40, 1
    %p252 = scmp.ne.s32.totalorder %s247, %s249
    %p253 = scmp.eq.s32.totalorder %s40, 0
    %p254 = por %p252, %p253
    %p255 = scmp.ne.s32.totalorder %s247, %s249
    %p256 = scmp.eq.s32.totalorder %s45, 1
    %p257 = por %p255, %p256
    %p258 = scmp.ne.s32.totalorder %s249, %s250
    %p259 = scmp.eq.s32.totalorder %s45, 0
    %p260 = por %p258, %p259
    %p261 = scmp.ne.s32.totalorder %s249, %s250
    %p262 = scmp.eq.s32.totalorder %s46, 1
    %p263 = por %p261, %p262
    %p265 = scmp.ne.s32.totalorder %s250, %s264
    %p266 = scmp.eq.s32.totalorder %s46, 0
    %p267 = por %p265, %p266
    %s269 = sadd.s32 %s268, 1
    %p272 = scmp.eq.s32.totalorder %s40, 1
    %p273 = scmp.ne.s32.totalorder %s268, %s270
    %p274 = scmp.eq.s32.totalorder %s40, 0
    %p275 = por %p273, %p274
    %p276 = scmp.ne.s32.totalorder %s268, %s270
    %p277 = scmp.eq.s32.totalorder %s45, 1
    %p278 = por %p276, %p277
    %p279 = scmp.ne.s32.totalorder %s270, %s271
    %p280 = scmp.eq.s32.totalorder %s45, 0
    %p281 = por %p279, %p280
    %p282 = scmp.ne.s32.totalorder %s270, %s271
    %p283 = scmp.eq.s32.totalorder %s46, 1
    %p284 = por %p282, %p283
    %p286 = scmp.ne.s32.totalorder %s271, %s285
    %p287 = scmp.eq.s32.totalorder %s46, 0
    %p288 = por %p286, %p287
    %s290 = sadd.s32 %s289, 1
    %p293 = scmp.eq.s32.totalorder %s40, 1
    %p294 = scmp.ne.s32.totalorder %s289, %s291
    %p295 = scmp.eq.s32.totalorder %s40, 0
    %p296 = por %p294, %p295
    %p297 = scmp.ne.s32.totalorder %s289, %s291
    %p298 = scmp.eq.s32.totalorder %s45, 1
    %p299 = por %p297, %p298
    %p300 = scmp.ne.s32.totalorder %s291, %s292
    %p301 = scmp.eq.s32.totalorder %s45, 0
    %p302 = por %p300, %p301
    %p303 = scmp.ne.s32.totalorder %s291, %s292
    %p304 = scmp.eq.s32.totalorder %s46, 1
    %p305 = por %p303, %p304
    %p307 = scmp.ne.s32.totalorder %s292, %s306
    %p308 = scmp.eq.s32.totalorder %s46, 0
    %p309 = por %p307, %p308
    %s311 = sadd.s32 %s310, 1
    %p314 = scmp.eq.s32.totalorder %s40, 1
    %p315 = scmp.ne.s32.totalorder %s310, %s312
    %p316 = scmp.eq.s32.totalorder %s40, 0
    %p317 = por %p315, %p316
    %p318 = scmp.ne.s32.totalorder %s310, %s312
    %p319 = scmp.eq.s32.totalorder %s45, 1
    %p320 = por %p318, %p319
    %p321 = scmp.ne.s32.totalorder %s312, %s313
    %p322 = scmp.eq.s32.totalorder %s45, 0
    %p323 = por %p321, %p322
    %p324 = scmp.ne.s32.totalorder %s312, %s313
    %p325 = scmp.eq.s32.totalorder %s46, 1
    %p326 = por %p324, %p325
    %p328 = scmp.ne.s32.totalorder %s313, %s327
    %p329 = scmp.eq.s32.totalorder %s46, 0
    %p330 = por %p328, %p329
    %s332 = sadd.s32 %s331, 1
    %p335 = scmp.eq.s32.totalorder %s40, 1
    %p336 = scmp.ne.s32.totalorder %s331, %s333
    %p337 = scmp.eq.s32.totalorder %s40, 0
    %p338 = por %p336, %p337
    %p339 = scmp.ne.s32.totalorder %s331, %s333
    %p340 = scmp.eq.s32.totalorder %s45, 1
    %p341 = por %p339, %p340
    %p342 = scmp.ne.s32.totalorder %s333, %s334
    %p343 = scmp.eq.s32.totalorder %s45, 0
    %p344 = por %p342, %p343
    %p345 = scmp.ne.s32.totalorder %s333, %s334
    %p346 = scmp.eq.s32.totalorder %s46, 1
    %p347 = por %p345, %p346
    %p349 = scmp.ne.s32.totalorder %s334, %s348
    %p350 = scmp.eq.s32.totalorder %s46, 0
    %p351 = por %p349, %p350
    %s353 = sadd.s32 %s352, 1
    %p356 = scmp.eq.s32.totalorder %s40, 1
    %p357 = scmp.ne.s32.totalorder %s352, %s354
    %p358 = scmp.eq.s32.totalorder %s40, 0
    %p359 = por %p357, %p358
    %p360 = scmp.ne.s32.totalorder %s352, %s354
    %p361 = scmp.eq.s32.totalorder %s45, 1
    %p362 = por %p360, %p361
    %p363 = scmp.ne.s32.totalorder %s354, %s355
    %p364 = scmp.eq.s32.totalorder %s45, 0
    %p365 = por %p363, %p364
    %p366 = scmp.ne.s32.totalorder %s354, %s355
    %p367 = scmp.eq.s32.totalorder %s46, 1
    %p368 = por %p366, %p367
    %p370 = scmp.ne.s32.totalorder %s355, %s369
    %p371 = scmp.eq.s32.totalorder %s46, 0
    %p372 = por %p370, %p371
    %s374 = sadd.s32 %s373, 1
    %p377 = scmp.eq.s32.totalorder %s40, 1
    %p378 = scmp.ne.s32.totalorder %s373, %s375
    %p379 = scmp.eq.s32.totalorder %s40, 0
    %p380 = por %p378, %p379
    %p381 = scmp.ne.s32.totalorder %s373, %s375
    %p382 = scmp.eq.s32.totalorder %s45, 1
    %p383 = por %p381, %p382
    %p384 = scmp.ne.s32.totalorder %s375, %s376
    %p385 = scmp.eq.s32.totalorder %s45, 0
    %p386 = por %p384, %p385
    %p387 = scmp.ne.s32.totalorder %s375, %s376
    %p388 = scmp.eq.s32.totalorder %s46, 1
    %p389 = por %p387, %p388
    %p391 = scmp.ne.s32.totalorder %s376, %s390
    %p392 = scmp.eq.s32.totalorder %s46, 0
    %p393 = por %p391, %p392
    %s395 = sadd.s32 %s394, 1
    %p398 = scmp.eq.s32.totalorder %s40, 1
    %p399 = scmp.ne.s32.totalorder %s394, %s396
    %p400 = scmp.eq.s32.totalorder %s40, 0
    %p401 = por %p399, %p400
    %p402 = scmp.ne.s32.totalorder %s394, %s396
    %p403 = scmp.eq.s32.totalorder %s45, 1
    %p404 = por %p402, %p403
    %p405 = scmp.ne.s32.totalorder %s396, %s397
    %p406 = scmp.eq.s32.totalorder %s45, 0
    %p407 = por %p405, %p406
    %p408 = scmp.ne.s32.totalorder %s396, %s397
    %p409 = scmp.eq.s32.totalorder %s46, 1
    %p410 = por %p408, %p409
    %p412 = scmp.ne.s32.totalorder %s397, %s411
    %p413 = scmp.eq.s32.totalorder %s46, 0
    %p414 = por %p412, %p413
    %s416 = sadd.s32 %s415, 1
    %p419 = scmp.eq.s32.totalorder %s40, 1
    %p420 = scmp.ne.s32.totalorder %s415, %s417
    %p421 = scmp.eq.s32.totalorder %s40, 0
    %p422 = por %p420, %p421
    %p423 = scmp.ne.s32.totalorder %s415, %s417
    %p424 = scmp.eq.s32.totalorder %s45, 1
    %p425 = por %p423, %p424
    %p426 = scmp.ne.s32.totalorder %s417, %s418
    %p427 = scmp.eq.s32.totalorder %s45, 0
    %p428 = por %p426, %p427
    %p429 = scmp.ne.s32.totalorder %s417, %s418
    %p430 = scmp.eq.s32.totalorder %s46, 1
    %p431 = por %p429, %p430
    %p433 = scmp.ne.s32.totalorder %s418, %s432
    %p434 = scmp.eq.s32.totalorder %s46, 0
    %p435 = por %p433, %p434
    %s437 = sadd.s32 %s436, 1
    %p440 = scmp.eq.s32.totalorder %s40, 1
    %p441 = scmp.ne.s32.totalorder %s436, %s438
    %p442 = scmp.eq.s32.totalorder %s40, 0
    %p443 = por %p441, %p442
    %p444 = scmp.ne.s32.totalorder %s436, %s438
    %p445 = scmp.eq.s32.totalorder %s45, 1
    %p446 = por %p444, %p445
    %p447 = scmp.ne.s32.totalorder %s438, %s439
    %p448 = scmp.eq.s32.totalorder %s45, 0
    %p449 = por %p447, %p448
    %p450 = scmp.ne.s32.totalorder %s438, %s439
    %p451 = scmp.eq.s32.totalorder %s46, 1
    %p452 = por %p450, %p451
    %p454 = scmp.ne.s32.totalorder %s439, %s453
    %p455 = scmp.eq.s32.totalorder %s46, 0
    %p456 = por %p454, %p455
    %s458 = sadd.s32 %s457, 1
    %p461 = scmp.eq.s32.totalorder %s40, 1
    %p462 = scmp.ne.s32.totalorder %s457, %s459
    %p463 = scmp.eq.s32.totalorder %s40, 0
    %p464 = por %p462, %p463
    %p465 = scmp.ne.s32.totalorder %s457, %s459
    %p466 = scmp.eq.s32.totalorder %s45, 1
    %p467 = por %p465, %p466
    %p468 = scmp.ne.s32.totalorder %s459, %s460
    %p469 = scmp.eq.s32.totalorder %s45, 0
    %p470 = por %p468, %p469
    %p471 = scmp.ne.s32.totalorder %s459, %s460
    %p472 = scmp.eq.s32.totalorder %s46, 1
    %p473 = por %p471, %p472
    %p475 = scmp.ne.s32.totalorder %s460, %s474
    %p476 = scmp.eq.s32.totalorder %s46, 0
    %p477 = por %p475, %p476
    %s479 = sadd.s32 %s478, 1
    %p482 = scmp.eq.s32.totalorder %s40, 1
    %p483 = scmp.ne.s32.totalorder %s478, %s480
    %p484 = scmp.eq.s32.totalorder %s40, 0
    %p485 = por %p483, %p484
    %p486 = scmp.ne.s32.totalorder %s478, %s480
    %p487 = scmp.eq.s32.totalorder %s45, 1
    %p488 = por %p486, %p487
    %p489 = scmp.ne.s32.totalorder %s480, %s481
    %p490 = scmp.eq.s32.totalorder %s45, 0
    %p491 = por %p489, %p490
    %p492 = scmp.ne.s32.totalorder %s480, %s481
    %p493 = scmp.eq.s32.totalorder %s46, 1
    %p494 = por %p492, %p493
    %p496 = scmp.ne.s32.totalorder %s481, %s495
    %p497 = scmp.eq.s32.totalorder %s46, 0
    %p498 = por %p496, %p497
    %s500 = sadd.s32 %s499, 1
    %p503 = scmp.eq.s32.totalorder %s40, 1
    %p504 = scmp.ne.s32.totalorder %s499, %s501
    %p505 = scmp.eq.s32.totalorder %s40, 0
    %p506 = por %p504, %p505
    %p507 = scmp.ne.s32.totalorder %s499, %s501
    %p508 = scmp.eq.s32.totalorder %s45, 1
    %p509 = por %p507, %p508
    %p510 = scmp.ne.s32.totalorder %s501, %s502
    %p511 = scmp.eq.s32.totalorder %s45, 0
    %p512 = por %p510, %p511
    %p513 = scmp.ne.s32.totalorder %s501, %s502
    %p514 = scmp.eq.s32.totalorder %s46, 1
    %p515 = por %p513, %p514
    %p517 = scmp.ne.s32.totalorder %s502, %s516
    %p518 = scmp.eq.s32.totalorder %s46, 0
    %p519 = por %p517, %p518
    %s521 = sadd.s32 %s520, 1
    %p524 = scmp.eq.s32.totalorder %s40, 1
    %p525 = scmp.ne.s32.totalorder %s520, %s522
    %p526 = scmp.eq.s32.totalorder %s40, 0
    %p527 = por %p525, %p526
    %p528 = scmp.ne.s32.totalorder %s520, %s522
    %p529 = scmp.eq.s32.totalorder %s45, 1
    %p530 = por %p528, %p529
    %p531 = scmp.ne.s32.totalorder %s522, %s523
    %p532 = scmp.eq.s32.totalorder %s45, 0
    %p533 = por %p531, %p532
    %p534 = scmp.ne.s32.totalorder %s522, %s523
    %p535 = scmp.eq.s32.totalorder %s46, 1
    %p536 = por %p534, %p535
    %p538 = scmp.ne.s32.totalorder %s523, %s537
    %p539 = scmp.eq.s32.totalorder %s46, 0
    %p540 = por %p538, %p539
    %s542 = sadd.s32 %s541, 1
    %p545 = scmp.eq.s32.totalorder %s40, 1
    %p546 = scmp.ne.s32.totalorder %s541, %s543
    %p547 = scmp.eq.s32.totalorder %s40, 0
    %p548 = por %p546, %p547
    %p549 = scmp.ne.s32.totalorder %s541, %s543
    %p550 = scmp.eq.s32.totalorder %s45, 1
    %p551 = por %p549, %p550
    %p552 = scmp.ne.s32.totalorder %s543, %s544
    %p553 = scmp.eq.s32.totalorder %s45, 0
    %p554 = por %p552, %p553
    %p555 = scmp.ne.s32.totalorder %s543, %s544
    %p556 = scmp.eq.s32.totalorder %s46, 1
    %p557 = por %p555, %p556
    %p559 = scmp.ne.s32.totalorder %s544, %s558
    %p560 = scmp.eq.s32.totalorder %s46, 0
    %p561 = por %p559, %p560
    %s563 = sadd.s32 %s562, 1
    %p566 = scmp.eq.s32.totalorder %s40, 1
    %p567 = scmp.ne.s32.totalorder %s562, %s564
    %p568 = scmp.eq.s32.totalorder %s40, 0
    %p569 = por %p567, %p568
    %p570 = scmp.ne.s32.totalorder %s562, %s564
    %p571 = scmp.eq.s32.totalorder %s45, 1
    %p572 = por %p570, %p571
    %p573 = scmp.ne.s32.totalorder %s564, %s565
    %p574 = scmp.eq.s32.totalorder %s45, 0
    %p575 = por %p573, %p574
    %p576 = scmp.ne.s32.totalorder %s564, %s565
    %p577 = scmp.eq.s32.totalorder %s46, 1
    %p578 = por %p576, %p577
    %p580 = scmp.ne.s32.totalorder %s565, %s579
    %p581 = scmp.eq.s32.totalorder %s46, 0
    %p582 = por %p580, %p581
    %s583 = ssub.s32 %s40, %s47
    %p584 = scmp.eq.s32.totalorder %s583, 0
    %s586 = sadd.s32 %s585, 1
    %s587 = scalar_select %p584, %s585, %s586
    %p590 = pneg %p584
    %p591 = scmp.eq.s32.totalorder %s40, 1
    %p592 = por %p590, %p591
    %p593 = scmp.ne.s32.totalorder %s585, %s588
    %p594 = scmp.eq.s32.totalorder %s40, 0
    %p595 = por %p593, %p594
    %p596 = scmp.ne.s32.totalorder %s585, %s588
    %p597 = scmp.eq.s32.totalorder %s45, 1
    %p598 = por %p596, %p597
    %p599 = scmp.ne.s32.totalorder %s588, %s589
    %p600 = scmp.eq.s32.totalorder %s45, 0
    %p601 = por %p599, %p600
    %p602 = scmp.ne.s32.totalorder %s588, %s589
    %p603 = scmp.eq.s32.totalorder %s46, 1
    %p604 = por %p602, %p603
    %p606 = scmp.ne.s32.totalorder %s589, %s605
    %p607 = scmp.eq.s32.totalorder %s46, 0
    %p608 = por %p606, %p607
    %s609 = ssub.s32 %s40, %s47
    %p610 = scmp.eq.s32.totalorder %s609, 0
    %s612 = sadd.s32 %s611, 1
    %s613 = scalar_select %p610, %s611, %s612
    %p616 = pneg %p610
    %p617 = scmp.eq.s32.totalorder %s40, 1
    %p618 = por %p616, %p617
    %p619 = scmp.ne.s32.totalorder %s611, %s614
    %p620 = scmp.eq.s32.totalorder %s40, 0
    %p621 = por %p619, %p620
    %p622 = scmp.ne.s32.totalorder %s611, %s614
    %p623 = scmp.eq.s32.totalorder %s45, 1
    %p624 = por %p622, %p623
    %p625 = scmp.ne.s32.totalorder %s614, %s615
    %p626 = scmp.eq.s32.totalorder %s45, 0
    %p627 = por %p625, %p626
    %p628 = scmp.ne.s32.totalorder %s614, %s615
    %p629 = scmp.eq.s32.totalorder %s46, 1
    %p630 = por %p628, %p629
    %p632 = scmp.ne.s32.totalorder %s615, %s631
    %p633 = scmp.eq.s32.totalorder %s46, 0
    %p634 = por %p632, %p633
    %p635 = scmp.le.s32.totalorder 1, %s40
    %p636 = scmp.lt.s32.totalorder %s40, 3
    %p637 = pnand %p635, %p636
    %p638 = pneg %p637
    // Predicated region
    $region9: #{forward.1} parent=5 // pred_check
      _
    $region10: #{forward.1} parent=5 // pred_check_branch
      %640 = sbr.rel (%p637) target = $region12
    $region11: #{forward.1} parent=5 // pred_region
      %s641 = ssub.s32 %s40, 1
      // Predicated region
      $region13: #{forward.1} parent=11 // pred_check
        %p642 = pneg %p113
      $region14: #{forward.1} parent=11 // pred_check_branch
        %644 = sbr.rel (%p642) target = $region16
      $region15: #{forward.1} parent=11 // pred_region
        _
      $region16: #{forward.1} parent=11 // pred_fallthru
        _
      // Predicated region
      $region17: #{forward.1} parent=11 // pred_check
        %p645 = pneg %p134
      $region18: #{forward.1} parent=11 // pred_check_branch
        %647 = sbr.rel (%p645) target = $region20
      $region19: #{forward.1} parent=11 // pred_region
        _
      $region20: #{forward.1} parent=11 // pred_fallthru
        _
      // Predicated region
      $region21: #{forward.1} parent=11 // pred_check
        %p648 = pneg %p155
      $region22: #{forward.1} parent=11 // pred_check_branch
        %650 = sbr.rel (%p648) target = $region24
      $region23: #{forward.1} parent=11 // pred_region
        _
      $region24: #{forward.1} parent=11 // pred_fallthru
        _
      // Predicated region
      $region25: #{forward.1} parent=11 // pred_check
        %p651 = pneg %p176
      $region26: #{forward.1} parent=11 // pred_check_branch
        %653 = sbr.rel (%p651) target = $region28
      $region27: #{forward.1} parent=11 // pred_region
        _
      $region28: #{forward.1} parent=11 // pred_fallthru
        _
      // Predicated region
      $region29: #{forward.1} parent=11 // pred_check
        %p654 = pneg %p197
      $region30: #{forward.1} parent=11 // pred_check_branch
        %656 = sbr.rel (%p654) target = $region32
      $region31: #{forward.1} parent=11 // pred_region
        _
      $region32: #{forward.1} parent=11 // pred_fallthru
        _
      // Predicated region
      $region33: #{forward.1} parent=11 // pred_check
        %p657 = pneg %p218
      $region34: #{forward.1} parent=11 // pred_check_branch
        %659 = sbr.rel (%p657) target = $region36
      $region35: #{forward.1} parent=11 // pred_region
        _
      $region36: #{forward.1} parent=11 // pred_fallthru
        _
      // Predicated region
      $region37: #{forward.1} parent=11 // pred_check
        %p660 = pneg %p239
      $region38: #{forward.1} parent=11 // pred_check_branch
        %662 = sbr.rel (%p660) target = $region40
      $region39: #{forward.1} parent=11 // pred_region
        _
      $region40: #{forward.1} parent=11 // pred_fallthru
        _
      // Predicated region
      $region41: #{forward.1} parent=11 // pred_check
        %p663 = pneg %p260
      $region42: #{forward.1} parent=11 // pred_check_branch
        %665 = sbr.rel (%p663) target = $region44
      $region43: #{forward.1} parent=11 // pred_region
        _
      $region44: #{forward.1} parent=11 // pred_fallthru
        _
      // Predicated region
      $region45: #{forward.1} parent=11 // pred_check
        %p666 = pneg %p281
      $region46: #{forward.1} parent=11 // pred_check_branch
        %668 = sbr.rel (%p666) target = $region48
      $region47: #{forward.1} parent=11 // pred_region
        _
      $region48: #{forward.1} parent=11 // pred_fallthru
        _
      // Predicated region
      $region49: #{forward.1} parent=11 // pred_check
        %p669 = pneg %p302
      $region50: #{forward.1} parent=11 // pred_check_branch
        %671 = sbr.rel (%p669) target = $region52
      $region51: #{forward.1} parent=11 // pred_region
        _
      $region52: #{forward.1} parent=11 // pred_fallthru
        _
      // Predicated region
      $region53: #{forward.1} parent=11 // pred_check
        %p672 = pneg %p323
      $region54: #{forward.1} parent=11 // pred_check_branch
        %674 = sbr.rel (%p672) target = $region56
      $region55: #{forward.1} parent=11 // pred_region
        _
      $region56: #{forward.1} parent=11 // pred_fallthru
        _
      // Predicated region
      $region57: #{forward.1} parent=11 // pred_check
        %p675 = pneg %p344
      $region58: #{forward.1} parent=11 // pred_check_branch
        %677 = sbr.rel (%p675) target = $region60
      $region59: #{forward.1} parent=11 // pred_region
        _
      $region60: #{forward.1} parent=11 // pred_fallthru
        _
      // Predicated region
      $region61: #{forward.1} parent=11 // pred_check
        %p678 = pneg %p365
      $region62: #{forward.1} parent=11 // pred_check_branch
        %680 = sbr.rel (%p678) target = $region64
      $region63: #{forward.1} parent=11 // pred_region
        _
      $region64: #{forward.1} parent=11 // pred_fallthru
        _
      // Predicated region
      $region65: #{forward.1} parent=11 // pred_check
        %p681 = pneg %p386
      $region66: #{forward.1} parent=11 // pred_check_branch
        %683 = sbr.rel (%p681) target = $region68
      $region67: #{forward.1} parent=11 // pred_region
        _
      $region68: #{forward.1} parent=11 // pred_fallthru
        _
      // Predicated region
      $region69: #{forward.1} parent=11 // pred_check
        %p684 = pneg %p407
      $region70: #{forward.1} parent=11 // pred_check_branch
        %686 = sbr.rel (%p684) target = $region72
      $region71: #{forward.1} parent=11 // pred_region
        _
      $region72: #{forward.1} parent=11 // pred_fallthru
        _
      // Predicated region
      $region73: #{forward.1} parent=11 // pred_check
        %p687 = pneg %p428
      $region74: #{forward.1} parent=11 // pred_check_branch
        %689 = sbr.rel (%p687) target = $region76
      $region75: #{forward.1} parent=11 // pred_region
        _
      $region76: #{forward.1} parent=11 // pred_fallthru
        _
      // Predicated region
      $region77: #{forward.1} parent=11 // pred_check
        %p690 = pneg %p449
      $region78: #{forward.1} parent=11 // pred_check_branch
        %692 = sbr.rel (%p690) target = $region80
      $region79: #{forward.1} parent=11 // pred_region
        _
      $region80: #{forward.1} parent=11 // pred_fallthru
        _
      // Predicated region
      $region81: #{forward.1} parent=11 // pred_check
        %p693 = pneg %p470
      $region82: #{forward.1} parent=11 // pred_check_branch
        %695 = sbr.rel (%p693) target = $region84
      $region83: #{forward.1} parent=11 // pred_region
        _
      $region84: #{forward.1} parent=11 // pred_fallthru
        _
      // Predicated region
      $region85: #{forward.1} parent=11 // pred_check
        %p696 = pneg %p491
      $region86: #{forward.1} parent=11 // pred_check_branch
        %698 = sbr.rel (%p696) target = $region88
      $region87: #{forward.1} parent=11 // pred_region
        _
      $region88: #{forward.1} parent=11 // pred_fallthru
        _
      // Predicated region
      $region89: #{forward.1} parent=11 // pred_check
        %p699 = pneg %p512
      $region90: #{forward.1} parent=11 // pred_check_branch
        %701 = sbr.rel (%p699) target = $region92
      $region91: #{forward.1} parent=11 // pred_region
        _
      $region92: #{forward.1} parent=11 // pred_fallthru
        _
      // Predicated region
      $region93: #{forward.1} parent=11 // pred_check
        %p702 = pneg %p533
      $region94: #{forward.1} parent=11 // pred_check_branch
        %704 = sbr.rel (%p702) target = $region96
      $region95: #{forward.1} parent=11 // pred_region
        _
      $region96: #{forward.1} parent=11 // pred_fallthru
        _
      // Predicated region
      $region97: #{forward.1} parent=11 // pred_check
        %p705 = pneg %p554
      $region98: #{forward.1} parent=11 // pred_check_branch
        %707 = sbr.rel (%p705) target = $region100
      $region99: #{forward.1} parent=11 // pred_region
        _
      $region100: #{forward.1} parent=11 // pred_fallthru
        _
      // Predicated region
      $region101: #{forward.1} parent=11 // pred_check
        %p708 = pneg %p575
      $region102: #{forward.1} parent=11 // pred_check_branch
        %710 = sbr.rel (%p708) target = $region104
      $region103: #{forward.1} parent=11 // pred_region
        _
      $region104: #{forward.1} parent=11 // pred_fallthru
        _
    $region12: #{forward.1} parent=5 // pred_fallthru
      _
    %p711 = scmp.lt.s32.totalorder %s40, 2
    // Predicated region
    $region105: #{forward.1} parent=5 // pred_check
      %p712 = pneg %p711
    $region106: #{forward.1} parent=5 // pred_check_branch
      %714 = sbr.rel (%p712) target = $region108
    $region107: #{forward.1} parent=5 // pred_region
      // Predicated region
      $region109: #{forward.1} parent=107 // pred_check
        %p715 = pneg %p60
      $region110: #{forward.1} parent=107 // pred_check_branch
        %717 = sbr.rel (%p715) target = $region112
      $region111: #{forward.1} parent=107 // pred_region
        %p718 = scmp.lt.s32.totalorder %s40, 1
        %s719 = scalar_select %p718, %s40, 1
        %s720 = smul.addr %s719, 8
        %s721 = scalar_lea.vmem %s1, %s720
      $region112: #{forward.1} parent=107 // pred_fallthru
        _
      // Predicated region
      $region113: #{forward.1} parent=107 // pred_check
        %p722 = pneg %p86
      $region114: #{forward.1} parent=107 // pred_check_branch
        %724 = sbr.rel (%p722) target = $region116
      $region115: #{forward.1} parent=107 // pred_region
        %p725 = scmp.lt.s32.totalorder %s40, 1
        %s726 = scalar_select %p725, %s40, 1
        %s727 = scalar_lea.vmem %s2, %s726
      $region116: #{forward.1} parent=107 // pred_fallthru
        _
    $region108: #{forward.1} parent=5 // pred_fallthru
      _
    %p728 = scmp.le.s32.totalorder 1, %s40
    %p729 = scmp.lt.s32.totalorder %s40, 3
    %p730 = pnand %p728, %p729
    %p731 = pneg %p730
    // Predicated region
    $region117: #{forward.1} parent=5 // pred_check
      _
    $region118: #{forward.1} parent=5 // pred_check_branch
      %733 = sbr.rel (%p730) target = $region120
    $region119: #{forward.1} parent=5 // pred_region
      %s734 = ssub.s32 %s40, 1
      %p735 = scmp.lt.s32.totalorder %s45, 1
      %s736 = scalar_select %p735, %s45, 1
      %s737 = smul.addr %s736, 8
      %s738 = scalar_lea.vmem %s1, %s737
      %p739 = pneg %p66
      %p740 = pneg %p63
      %p741 = scmp.lt.s32.totalorder %s45, 1
      %s742 = scalar_select %p741, %s45, 1
      %s743 = scalar_lea.vmem %s2, %s742
      %p744 = pneg %p92
      %p745 = pneg %p89
      %p746 = pneg %p113
      %p747 = pneg %p110
      %p748 = pneg %p134
      %p749 = pneg %p131
      %p750 = pneg %p155
      %p751 = pneg %p152
      %p752 = pneg %p176
      %p753 = pneg %p173
      %p754 = pneg %p197
      %p755 = pneg %p194
      %p756 = pneg %p218
      %p757 = pneg %p215
      %p758 = pneg %p239
      %p759 = pneg %p236
      %p760 = pneg %p260
      %p761 = pneg %p257
      %p762 = pneg %p281
      %p763 = pneg %p278
      %p764 = pneg %p302
      %p765 = pneg %p299
      %p766 = pneg %p323
      %p767 = pneg %p320
      %p768 = pneg %p344
      %p769 = pneg %p341
      %p770 = pneg %p365
      %p771 = pneg %p362
      %p772 = pneg %p386
      %p773 = pneg %p383
      %p774 = pneg %p407
      %p775 = pneg %p404
      %p776 = pneg %p428
      %p777 = pneg %p425
      %p778 = pneg %p449
      %p779 = pneg %p446
      %p780 = pneg %p470
      %p781 = pneg %p467
      %p782 = pneg %p491
      %p783 = pneg %p488
      %p784 = pneg %p512
      %p785 = pneg %p509
      %p786 = pneg %p533
      %p787 = pneg %p530
      %p788 = pneg %p554
      %p789 = pneg %p551
      %p790 = pneg %p575
      %p791 = pneg %p572
      %p792 = pneg %p601
      %p793 = pneg %p598
      %p794 = scmp.lt.s32.totalorder %s45, 1
      %s795 = scalar_select %p794, %s45, 1
      %s796 = smul.addr %s795, 8
      %s797 = scalar_lea.vmem %s26, %s796
      %p798 = pneg %p627
      %p799 = pneg %p624
      %p800 = scmp.lt.s32.totalorder %s45, 1
      %s801 = scalar_select %p800, %s45, 1
      %s802 = scalar_lea.vmem %s27, %s801
      %p803 = scmp.lt.s32.totalorder %s45, 1
      %s804 = scalar_select %p803, %s45, 1
      %s805 = smul.addr %s804, 8
      %s806 = scalar_lea.vmem %s1, %s805
      %p807 = scmp.lt.s32.totalorder %s45, 1
      %s808 = scalar_select %p807, %s45, 1
      %s809 = scalar_lea.vmem %s2, %s808
      %p810 = scmp.lt.s32.totalorder %s45, 1
      %s811 = scalar_select %p810, %s45, 1
      %s812 = smul.addr %s811, 8
      %s813 = scalar_lea.vmem %s26, %s812
      %p814 = scmp.lt.s32.totalorder %s45, 1
      %s815 = scalar_select %p814, %s45, 1
      %s816 = scalar_lea.vmem %s27, %s815
      %v817 = vld [vmem:[%s806] sm:$0xff]
      %v818 = vld [vmem:[%s3] sm:$0x1]
      %v819 = vld [vmem:[%s4] sm:$0x1]
      %vm820 = vcmask 261120
      %v821 = vsel %vm820, %v817, 0.0
      %822 = vadd.xlane.f32.xlu0 %v821
      %v823 = vpop.xlane.xlu0 %822
      %v824 = vrcp.pop 32.0
      %v825 = vmul.f32 %v823, %v824
      %v826 = vsub.f32 %v817, %v825
      %v827 = vmul.f32 %v826, %v826
      %v828 = vsel %vm820, %v827, 0.0
      %829 = vadd.xlane.f32.xlu0 %v828
      %v830 = vpop.xlane.xlu0 %829
      %v831 = vmul.f32 %v830, %v824
      %v832 = vadd.f32 %v831, 1e-12
      %v833 = vrsqrt.pop %v832
      %v834 = vmul.f32 %v826, %v833
      %v836 = vlaneseq
      %v837 = vshrl.u32 %v836, 7
      %v838 = vsub.s32 0, %v837
      %v839 = vrot.slane %v818, %v838
      %v841 = vmul.f32 %v834, %v839
      %v843 = vlaneseq
      %v844 = vshrl.u32 %v843, 7
      %v845 = vsub.s32 0, %v844
      %v846 = vrot.slane %v819, %v845
      %v848 = vadd.f32 %v841, %v846
      %v849 = vld [vmem:[%s809] sm:$0x1]
      %v850 = vld [vmem:[%s5] sm:$0xff]
      %v851 = vld [vmem:[%s5 + $0x8] sm:$0xff]
      %v852 = vld [vmem:[%s5 + $0x10] sm:$0xff]
      %v853 = vld [vmem:[%s5 + $0x18] sm:$0xff]
      %v854 = vld [vmem:[%s6] sm:$0x1]
      %v856 = vlaneseq
      %v857 = vshrl.u32 %v856, 7
      %v858 = vsub.s32 0, %v857
      %v859 = vrot.slane %v854, %v858
      %v862 = vsel %vm820, %v848, 0
      %864 = vmatprep.subr.mxu0 0.0
      %865 = vmatpush1.msra.mxu0 %v850
      %866 = vmatprep.subr.mxu0 0.0
      %867 = vmatpush1.msra.mxu0 %v851
      %868 = vmatprep.subr.mxu0 0.0
      %869 = vmatpush1.msra.mxu0 %v852
      %870 = vmatprep.subr.mxu0 0.0
      %871 = vmatpush1.msra.mxu0 %v853
      %872 = vmatprep.subr.mxu0 0.0
      %873 = vmatpush1.msra.mxu0 0.0
      %874 = vmatprep.subr.mxu0 0.0
      %875 = vmatpush1.msra.mxu0 0.0
      %876 = vmatprep.subr.mxu0 0.0
      %877 = vmatpush1.msra.mxu0 0.0
      %878 = vmatprep.subr.mxu0 0.0
      %879 = vmatpush1.msra.mxu0 0.0
      %880 = vmatprep.subr.mxu0 0.0
      %881 = vmatpush1.msra.mxu0 0.0
      %882 = vmatprep.subr.mxu0 0.0
      %883 = vmatpush1.msra.mxu0 0.0
      %884 = vmatprep.subr.mxu0 0.0
      %885 = vmatpush1.msra.mxu0 0.0
      %886 = vmatprep.subr.mxu0 0.0
      %887 = vmatpush1.msra.mxu0 0.0
      %888 = vmatprep.subr.mxu0 0.0
      %889 = vmatpush1.msra.mxu0 0.0
      %890 = vmatprep.subr.mxu0 0.0
      %891 = vmatpush1.msra.mxu0 0.0
      %892 = vmatprep.subr.mxu0 0.0
      %893 = vmatpush1.msra.mxu0 0.0
      %894 = vmatprep.subr.mxu0 0.0
      %895 = vmatpush1.msra.mxu0 0.0
      %896 = vmatprep.subr.mxu0 0.0
      %897 = vmatpush1.msra.mxu0 0.0
      %898 = vmatprep.subr.mxu0 0.0
      %899 = vmatpush1.msra.mxu0 0.0
      %900 = vmatprep.subr.mxu0 0.0
      %901 = vmatpush1.msra.mxu0 0.0
      %902 = vmatprep.subr.mxu0 0.0
      %903 = vmatpush1.msra.mxu0 0.0
      %904 = vmatprep.subr.mxu0 0.0
      %905 = vmatpush1.msra.mxu0 0.0
      %906 = vmatprep.subr.mxu0 0.0
      %907 = vmatpush1.msra.mxu0 0.0
      %908 = vmatprep.subr.mxu0 0.0
      %909 = vmatpush1.msra.mxu0 0.0
      %910 = vmatprep.subr.mxu0 0.0
      %911 = vmatpush1.msra.mxu0 0.0
      %912 = vmatprep.subr.mxu0 0.0
      %913 = vmatpush1.msra.mxu0 0.0
      %914 = vmatprep.subr.mxu0 0.0
      %915 = vmatpush1.msra.mxu0 0.0
      %916 = vmatprep.subr.mxu0 0.0
      %917 = vmatpush1.msra.mxu0 0.0
      %918 = vmatprep.subr.mxu0 0.0
      %919 = vmatpush1.msra.mxu0 0.0
      %920 = vmatprep.subr.mxu0 0.0
      %921 = vmatpush1.msra.mxu0 0.0
      %922 = vmatprep.subr.mxu0 0.0
      %923 = vmatpush1.msra.mxu0 0.0
      %924 = vmatprep.subr.mxu0 0.0
      %925 = vmatpush1.msra.mxu0 0.0
      %926 = vmatprep.subr.mxu0 0.0
      %927 = vmatpush1.msra.mxu0 0.0
      %928 = vmatprep.mubr.f32.mxu0 0.0
      %929 = vmatmul.mubr.f32.gmra.mrb[0].mxu0 %v862
      %v930 = vpop.f32.mrb[0].mxu0
      %v931 = vadd.f32 %v859, %v930
      %v932 = vpop.f32.mrb[0].mxu0
      %933 = vdwg.mxu0
      %v934 = vmul.f32 %v931, 0.35355338
      %v936 = vlaneseq
      %v937 = vshrl.u32 %v936, 7
      %v938 = vsub.s32 0, %v937
      %v939 = vrot.slane %v849, %v938
      %942 = vrot.lane.b32.xlu0 %v931, 96
      %v943 = vpop.permute.xlu0 %942
      %vm944 = vcmask 64512
      %v946 = vsel %vm944, %v934, 0
      %v948 = vsel %vm944, %v943, 0
      %950 = vmatprep.subr.mxu0 0.0
      %951 = vmatpush1.xpose.msra.mxu0 %v948
      %952 = vmatprep.subr.mxu0 0.0
      %953 = vmatpush1.xpose.msra.mxu0 0.0
      %954 = vmatprep.subr.mxu0 0.0
      %955 = vmatpush1.xpose.msra.mxu0 0.0
      %956 = vmatprep.subr.mxu0 0.0
      %957 = vmatpush1.xpose.msra.mxu0 0.0
      %958 = vmatprep.subr.mxu0 0.0
      %959 = vmatpush1.xpose.msra.mxu0 0.0
      %960 = vmatprep.subr.mxu0 0.0
      %961 = vmatpush1.xpose.msra.mxu0 0.0
      %962 = vmatprep.subr.mxu0 0.0
      %963 = vmatpush1.xpose.msra.mxu0 0.0
      %964 = vmatprep.subr.mxu0 0.0
      %965 = vmatpush1.xpose.msra.mxu0 0.0
      %966 = vmatprep.subr.mxu0 0.0
      %967 = vmatpush1.xpose.msra.mxu0 0.0
      %968 = vmatprep.subr.mxu0 0.0
      %969 = vmatpush1.xpose.msra.mxu0 0.0
      %970 = vmatprep.subr.mxu0 0.0
      %971 = vmatpush1.xpose.msra.mxu0 0.0
      %972 = vmatprep.subr.mxu0 0.0
      %973 = vmatpush1.xpose.msra.mxu0 0.0
      %974 = vmatprep.subr.mxu0 0.0
      %975 = vmatpush1.xpose.msra.mxu0 0.0
      %976 = vmatprep.subr.mxu0 0.0
      %977 = vmatpush1.xpose.msra.mxu0 0.0
      %978 = vmatprep.subr.mxu0 0.0
      %979 = vmatpush1.xpose.msra.mxu0 0.0
      %980 = vmatprep.subr.mxu0 0.0
      %981 = vmatpush1.xpose.msra.mxu0 0.0
      %982 = vmatprep.subr.mxu0 0.0
      %983 = vmatpush1.xpose.msra.mxu0 0.0
      %984 = vmatprep.subr.mxu0 0.0
      %985 = vmatpush1.xpose.msra.mxu0 0.0
      %986 = vmatprep.subr.mxu0 0.0
      %987 = vmatpush1.xpose.msra.mxu0 0.0
      %988 = vmatprep.subr.mxu0 0.0
      %989 = vmatpush1.xpose.msra.mxu0 0.0
      %990 = vmatprep.subr.mxu0 0.0
      %991 = vmatpush1.xpose.msra.mxu0 0.0
      %992 = vmatprep.subr.mxu0 0.0
      %993 = vmatpush1.xpose.msra.mxu0 0.0
      %994 = vmatprep.subr.mxu0 0.0
      %995 = vmatpush1.xpose.msra.mxu0 0.0
      %996 = vmatprep.subr.mxu0 0.0
      %997 = vmatpush1.xpose.msra.mxu0 0.0
      %998 = vmatprep.subr.mxu0 0.0
      %999 = vmatpush1.xpose.msra.mxu0 0.0
      %1000 = vmatprep.subr.mxu0 0.0
      %1001 = vmatpush1.xpose.msra.mxu0 0.0
      %1002 = vmatprep.subr.mxu0 0.0
      %1003 = vmatpush1.xpose.msra.mxu0 0.0
      %1004 = vmatprep.subr.mxu0 0.0
      %1005 = vmatpush1.xpose.msra.mxu0 0.0
      %1006 = vmatprep.subr.mxu0 0.0
      %1007 = vmatpush1.xpose.msra.mxu0 0.0
      %1008 = vmatprep.subr.mxu0 0.0
      %1009 = vmatpush1.xpose.msra.mxu0 0.0
      %1010 = vmatprep.subr.mxu0 0.0
      %1011 = vmatpush1.xpose.msra.mxu0 0.0
      %1012 = vmatprep.subr.mxu0 0.0
      %1013 = vmatpush1.xpose.msra.mxu0 0.0
      %1014 = vmatprep.mubr.f32.mxu0 0.0
      %1015 = vmatmul.mubr.f32.gmra.mrb[0].mxu0 %v946
      %v1016 = vpop.f32.mrb[0].mxu0
      %v1017 = vadd.f32 %v939, %v1016
      %v1018 = vpop.f32.mrb[0].mxu0
      %1019 = vdwg.mxu0
      %v1020 = vsel %vm944, %v1017, -inf
      %1021 = vmax.xlane.f32.xlu0 %v1020
      %v1022 = vpop.xlane.xlu0 %1021
      %v1023 = vsub.f32 %v1017, %v1022
      %v1024 = vmul.f32 %v1023, 1.442695
      %v1025 = vpow.pop %v1024
      %v1026 = vsel %vm944, %v1025, 0.0
      %1027 = vadd.xlane.f32.xlu0 %v1026
      %v1028 = vpop.xlane.xlu0 %1027
      %v1029 = vrcp.pop %v1028
      %v1030 = vmul.f32 %v1025, %v1029
      %1031 = vrot.lane.b32.xlu0 %v931, 64
      %v1032 = vpop.permute.xlu0 %1031
      %v1035 = vsel %vm944, %v1030, 0
      %1037 = vmatprep.subr.mxu0 0.0
      %1038 = vmatpush1.msra.mxu0 %v1032
      %1039 = vmatprep.subr.mxu0 0.0
      %1040 = vmatpush1.msra.mxu0 0.0
      %1041 = vmatprep.subr.mxu0 0.0
      %1042 = vmatpush1.msra.mxu0 0.0
      %1043 = vmatprep.subr.mxu0 0.0
      %1044 = vmatpush1.msra.mxu0 0.0
      %1045 = vmatprep.subr.mxu0 0.0
      %1046 = vmatpush1.msra.mxu0 0.0
      %1047 = vmatprep.subr.mxu0 0.0
      %1048 = vmatpush1.msra.mxu0 0.0
      %1049 = vmatprep.subr.mxu0 0.0
      %1050 = vmatpush1.msra.mxu0 0.0
      %1051 = vmatprep.subr.mxu0 0.0
      %1052 = vmatpush1.msra.mxu0 0.0
      %1053 = vmatprep.subr.mxu0 0.0
      %1054 = vmatpush1.msra.mxu0 0.0
      %1055 = vmatprep.subr.mxu0 0.0
      %1056 = vmatpush1.msra.mxu0 0.0
      %1057 = vmatprep.subr.mxu0 0.0
      %1058 = vmatpush1.msra.mxu0 0.0
      %1059 = vmatprep.subr.mxu0 0.0
      %1060 = vmatpush1.msra.mxu0 0.0
      %1061 = vmatprep.subr.mxu0 0.0
      %1062 = vmatpush1.msra.mxu0 0.0
      %1063 = vmatprep.subr.mxu0 0.0
      %1064 = vmatpush1.msra.mxu0 0.0
      %1065 = vmatprep.subr.mxu0 0.0
      %1066 = vmatpush1.msra.mxu0 0.0
      %1067 = vmatprep.subr.mxu0 0.0
      %1068 = vmatpush1.msra.mxu0 0.0
      %1069 = vmatprep.subr.mxu0 0.0
      %1070 = vmatpush1.msra.mxu0 0.0
      %1071 = vmatprep.subr.mxu0 0.0
      %1072 = vmatpush1.msra.mxu0 0.0
      %1073 = vmatprep.subr.mxu0 0.0
      %1074 = vmatpush1.msra.mxu0 0.0
      %1075 = vmatprep.subr.mxu0 0.0
      %1076 = vmatpush1.msra.mxu0 0.0
      %1077 = vmatprep.subr.mxu0 0.0
      %1078 = vmatpush1.msra.mxu0 0.0
      %1079 = vmatprep.subr.mxu0 0.0
      %1080 = vmatpush1.msra.mxu0 0.0
      %1081 = vmatprep.subr.mxu0 0.0
      %1082 = vmatpush1.msra.mxu0 0.0
      %1083 = vmatprep.subr.mxu0 0.0
      %1084 = vmatpush1.msra.mxu0 0.0
      %1085 = vmatprep.subr.mxu0 0.0
      %1086 = vmatpush1.msra.mxu0 0.0
      %1087 = vmatprep.subr.mxu0 0.0
      %1088 = vmatpush1.msra.mxu0 0.0
      %1089 = vmatprep.subr.mxu0 0.0
      %1090 = vmatpush1.msra.mxu0 0.0
      %1091 = vmatprep.subr.mxu0 0.0
      %1092 = vmatpush1.msra.mxu0 0.0
      %1093 = vmatprep.subr.mxu0 0.0
      %1094 = vmatpush1.msra.mxu0 0.0
      %1095 = vmatprep.subr.mxu0 0.0
      %1096 = vmatpush1.msra.mxu0 0.0
      %1097 = vmatprep.subr.mxu0 0.0
      %1098 = vmatpush1.msra.mxu0 0.0
      %1099 = vmatprep.subr.mxu0 0.0
      %1100 = vmatpush1.msra.mxu0 0.0
      %1101 = vmatprep.mubr.f32.mxu0 0.0
      %1102 = vmatmul.mubr.f32.gmra.mrb[0].mxu0 %v1035
      %v1103 = vpop.f32.mrb[0].mxu0
      %v1104 = vadd.f32 0.0, %v1103
      %v1105 = vpop.f32.mrb[0].mxu0
      %1106 = vdwg.mxu0
      %1107 = vrot.lane.b32.xlu0 %v934, 120
      %v1108 = vpop.permute.xlu0 %1107
      %1109 = vrot.lane.b32.xlu0 %v931, 88
      %v1110 = vpop.permute.xlu0 %1109
      %v1111 = vsel %vm944, %v1108, 0
      %v1113 = vsel %vm944, %v1110, 0
      %1115 = vmatprep.subr.mxu0 0.0
      %1116 = vmatpush1.xpose.msra.mxu0 %v1113
      %1117 = vmatprep.subr.mxu0 0.0
      %1118 = vmatpush1.xpose.msra.mxu0 0.0
      %1119 = vmatprep.subr.mxu0 0.0
      %1120 = vmatpush1.xpose.msra.mxu0 0.0
      %1121 = vmatprep.subr.mxu0 0.0
      %1122 = vmatpush1.xpose.msra.mxu0 0.0
      %1123 = vmatprep.subr.mxu0 0.0
      %1124 = vmatpush1.xpose.msra.mxu0 0.0
      %1125 = vmatprep.subr.mxu0 0.0
      %1126 = vmatpush1.xpose.msra.mxu0 0.0
      %1127 = vmatprep.subr.mxu0 0.0
      %1128 = vmatpush1.xpose.msra.mxu0 0.0
      %1129 = vmatprep.subr.mxu0 0.0
      %1130 = vmatpush1.xpose.msra.mxu0 0.0
      %1131 = vmatprep.subr.mxu0 0.0
      %1132 = vmatpush1.xpose.msra.mxu0 0.0
      %1133 = vmatprep.subr.mxu0 0.0
      %1134 = vmatpush1.xpose.msra.mxu0 0.0
      %1135 = vmatprep.subr.mxu0 0.0
      %1136 = vmatpush1.xpose.msra.mxu0 0.0
      %1137 = vmatprep.subr.mxu0 0.0
      %1138 = vmatpush1.xpose.msra.mxu0 0.0
      %1139 = vmatprep.subr.mxu0 0.0
      %1140 = vmatpush1.xpose.msra.mxu0 0.0
      %1141 = vmatprep.subr.mxu0 0.0
      %1142 = vmatpush1.xpose.msra.mxu0 0.0
      %1143 = vmatprep.subr.mxu0 0.0
      %1144 = vmatpush1.xpose.msra.mxu0 0.0
      %1145 = vmatprep.subr.mxu0 0.0
      %1146 = vmatpush1.xpose.msra.mxu0 0.0
      %1147 = vmatprep.subr.mxu0 0.0
      %1148 = vmatpush1.xpose.msra.mxu0 0.0
      %1149 = vmatprep.subr.mxu0 0.0
      %1150 = vmatpush1.xpose.msra.mxu0 0.0
      %1151 = vmatprep.subr.mxu0 0.0
      %1152 = vmatpush1.xpose.msra.mxu0 0.0
      %1153 = vmatprep.subr.mxu0 0.0
      %1154 = vmatpush1.xpose.msra.mxu0 0.0
      %1155 = vmatprep.subr.mxu0 0.0
      %1156 = vmatpush1.xpose.msra.mxu0 0.0
      %1157 = vmatprep.subr.mxu0 0.0
      %1158 = vmatpush1.xpose.msra.mxu0 0.0
      %1159 = vmatprep.subr.mxu0 0.0
      %1160 = vmatpush1.xpose.msra.mxu0 0.0
      %1161 = vmatprep.subr.mxu0 0.0
      %1162 = vmatpush1.xpose.msra.mxu0 0.0
      %1163 = vmatprep.subr.mxu0 0.0
      %1164 = vmatpush1.xpose.msra.mxu0 0.0
      %1165 = vmatprep.subr.mxu0 0.0
      %1166 = vmatpush1.xpose.msra.mxu0 0.0
      %1167 = vmatprep.subr.mxu0 0.0
      %1168 = vmatpush1.xpose.msra.mxu0 0.0
      %1169 = vmatprep.subr.mxu0 0.0
      %1170 = vmatpush1.xpose.msra.mxu0 0.0
      %1171 = vmatprep.subr.mxu0 0.0
      %1172 = vmatpush1.xpose.msra.mxu0 0.0
      %1173 = vmatprep.subr.mxu0 0.0
      %1174 = vmatpush1.xpose.msra.mxu0 0.0
      %1175 = vmatprep.subr.mxu0 0.0
      %1176 = vmatpush1.xpose.msra.mxu0 0.0
      %1177 = vmatprep.subr.mxu0 0.0
      %1178 = vmatpush1.xpose.msra.mxu0 0.0
      %1179 = vmatprep.mubr.f32.mxu0 0.0
      %1180 = vmatmul.mubr.f32.gmra.mrb[0].mxu0 %v1111
      %v1181 = vpop.f32.mrb[0].mxu0
      %v1182 = vadd.f32 %v939, %v1181
      %v1183 = vpop.f32.mrb[0].mxu0
      %1184 = vdwg.mxu0
      %v1185 = vsel %vm944, %v1182, -inf
      %1186 = vmax.xlane.f32.xlu0 %v1185
      %v1187 = vpop.xlane.xlu0 %1186
      %v1188 = vsub.f32 %v1182, %v1187
      %v1189 = vmul.f32 %v1188, 1.442695
      %v1190 = vpow.pop %v1189
      %v1191 = vsel %vm944, %v1190, 0.0
      %1192 = vadd.xlane.f32.xlu0 %v1191
      %v1193 = vpop.xlane.xlu0 %1192
      %v1194 = vrcp.pop %v1193
      %v1195 = vmul.f32 %v1190, %v1194
      %1196 = vrot.lane.b32.xlu0 %v931, 56
      %v1197 = vpop.permute.xlu0 %1196
      %v1200 = vsel %vm944, %v1195, 0
      %1202 = vmatprep.subr.mxu0 0.0
      %1203 = vmatpush1.msra.mxu0 %v1197
      %1204 = vmatprep.subr.mxu0 0.0
      %1205 = vmatpush1.msra.mxu0 0.0
      %1206 = vmatprep.subr.mxu0 0.0
      %1207 = vmatpush1.msra.mxu0 0.0
      %1208 = vmatprep.subr.mxu0 0.0
      %1209 = vmatpush1.msra.mxu0 0.0
      %1210 = vmatprep.subr.mxu0 0.0
      %1211 = vmatpush1.msra.mxu0 0.0
      %1212 = vmatprep.subr.mxu0 0.0
      %1213 = vmatpush1.msra.mxu0 0.0
      %1214 = vmatprep.subr.mxu0 0.0
      %1215 = vmatpush1.msra.mxu0 0.0
      %1216 = vmatprep.subr.mxu0 0.0
      %1217 = vmatpush1.msra.mxu0 0.0
      %1218 = vmatprep.subr.mxu0 0.0
      %1219 = vmatpush1.msra.mxu0 0.0
      %1220 = vmatprep.subr.mxu0 0.0
      %1221 = vmatpush1.msra.mxu0 0.0
      %1222 = vmatprep.subr.mxu0 0.0
      %1223 = vmatpush1.msra.mxu0 0.0
      %1224 = vmatprep.subr.mxu0 0.0
      %1225 = vmatpush1.msra.mxu0 0.0
      %1226 = vmatprep.subr.mxu0 0.0
      %1227 = vmatpush1.msra.mxu0 0.0
      %1228 = vmatprep.subr.mxu0 0.0
      %1229 = vmatpush1.msra.mxu0 0.0
      %1230 = vmatprep.subr.mxu0 0.0
      %1231 = vmatpush1.msra.mxu0 0.0
      %1232 = vmatprep.subr.mxu0 0.0
      %1233 = vmatpush1.msra.mxu0 0.0
      %1234 = vmatprep.subr.mxu0 0.0
      %1235 = vmatpush1.msra.mxu0 0.0
      %1236 = vmatprep.subr.mxu0 0.0
      %1237 = vmatpush1.msra.mxu0 0.0
      %1238 = vmatprep.subr.mxu0 0.0
      %1239 = vmatpush1.msra.mxu0 0.0
      %1240 = vmatprep.subr.mxu0 0.0
      %1241 = vmatpush1.msra.mxu0 0.0
      %1242 = vmatprep.subr.mxu0 0.0
      %1243 = vmatpush1.msra.mxu0 0.0
      %1244 = vmatprep.subr.mxu0 0.0
      %1245 = vmatpush1.msra.mxu0 0.0
      %1246 = vmatprep.subr.mxu0 0.0
      %1247 = vmatpush1.msra.mxu0 0.0
      %1248 = vmatprep.subr.mxu0 0.0
      %1249 = vmatpush1.msra.mxu0 0.0
      %1250 = vmatprep.subr.mxu0 0.0
      %1251 = vmatpush1.msra.mxu0 0.0
      %1252 = vmatprep.subr.mxu0 0.0
      %1253 = vmatpush1.msra.mxu0 0.0
      %1254 = vmatprep.subr.mxu0 0.0
      %1255 = vmatpush1.msra.mxu0 0.0
      %1256 = vmatprep.subr.mxu0 0.0
      %1257 = vmatpush1.msra.mxu0 0.0
      %1258 = vmatprep.subr.mxu0 0.0
      %1259 = vmatpush1.msra.mxu0 0.0
      %1260 = vmatprep.subr.mxu0 0.0
      %1261 = vmatpush1.msra.mxu0 0.0
      %1262 = vmatprep.subr.mxu0 0.0
      %1263 = vmatpush1.msra.mxu0 0.0
      %1264 = vmatprep.subr.mxu0 0.0
      %1265 = vmatpush1.msra.mxu0 0.0
      %1266 = vmatprep.mubr.f32.mxu0 0.0
      %1267 = vmatmul.mubr.f32.gmra.mrb[0].mxu0 %v1200
      %v1268 = vpop.f32.mrb[0].mxu0
      %v1269 = vadd.f32 0.0, %v1268
      %v1270 = vpop.f32.mrb[0].mxu0
      %1271 = vdwg.mxu0
      %1272 = vrot.lane.b32.xlu0 %v934, 112
      %v1273 = vpop.permute.xlu0 %1272
      %1274 = vrot.lane.b32.xlu0 %v931, 80
      %v1275 = vpop.permute.xlu0 %1274
      %v1276 = vsel %vm944, %v1273, 0
      %v1278 = vsel %vm944, %v1275, 0
      %1280 = vmatprep.subr.mxu0 0.0
      %1281 = vmatpush1.xpose.msra.mxu0 %v1278
      %1282 = vmatprep.subr.mxu0 0.0
      %1283 = vmatpush1.xpose.msra.mxu0 0.0
      %1284 = vmatprep.subr.mxu0 0.0
      %1285 = vmatpush1.xpose.msra.mxu0 0.0
      %1286 = vmatprep.subr.mxu0 0.0
      %1287 = vmatpush1.xpose.msra.mxu0 0.0
      %1288 = vmatprep.subr.mxu0 0.0
      %1289 = vmatpush1.xpose.msra.mxu0 0.0
      %1290 = vmatprep.subr.mxu0 0.0
      %1291 = vmatpush1.xpose.msra.mxu0 0.0
      %1292 = vmatprep.subr.mxu0 0.0
      %1293 = vmatpush1.xpose.msra.mxu0 0.0
      %1294 = vmatprep.subr.mxu0 0.0
      %1295 = vmatpush1.xpose.msra.mxu0 0.0
      %1296 = vmatprep.subr.mxu0 0.0
      %1297 = vmatpush1.xpose.msra.mxu0 0.0
      %1298 = vmatprep.subr.mxu0 0.0
      %1299 = vmatpush1.xpose.msra.mxu0 0.0
      %1300 = vmatprep.subr.mxu0 0.0
      %1301 = vmatpush1.xpose.msra.mxu0 0.0
      %1302 = vmatprep.subr.mxu0 0.0
      %1303 = vmatpush1.xpose.msra.mxu0 0.0
      %1304 = vmatprep.subr.mxu0 0.0
      %1305 = vmatpush1.xpose.msra.mxu0 0.0
      %1306 = vmatprep.subr.mxu0 0.0
      %1307 = vmatpush1.xpose.msra.mxu0 0.0
      %1308 = vmatprep.subr.mxu0 0.0
      %1309 = vmatpush1.xpose.msra.mxu0 0.0
      %1310 = vmatprep.subr.mxu0 0.0
      %1311 = vmatpush1.xpose.msra.mxu0 0.0
      %1312 = vmatprep.subr.mxu0 0.0
      %1313 = vmatpush1.xpose.msra.mxu0 0.0
      %1314 = vmatprep.subr.mxu0 0.0
      %1315 = vmatpush1.xpose.msra.mxu0 0.0
      %1316 = vmatprep.subr.mxu0 0.0
      %1317 = vmatpush1.xpose.msra.mxu0 0.0
      %1318 = vmatprep.subr.mxu0 0.0
      %1319 = vmatpush1.xpose.msra.mxu0 0.0
      %1320 = vmatprep.subr.mxu0 0.0
      %1321 = vmatpush1.xpose.msra.mxu0 0.0
      %1322 = vmatprep.subr.mxu0 0.0
      %1323 = vmatpush1.xpose.msra.mxu0 0.0
      %1324 = vmatprep.subr.mxu0 0.0
      %1325 = vmatpush1.xpose.msra.mxu0 0.0
      %1326 = vmatprep.subr.mxu0 0.0
      %1327 = vmatpush1.xpose.msra.mxu0 0.0
      %1328 = vmatprep.subr.mxu0 0.0
      %1329 = vmatpush1.xpose.msra.mxu0 0.0
      %1330 = vmatprep.subr.mxu0 0.0
      %1331 = vmatpush1.xpose.msra.mxu0 0.0
      %1332 = vmatprep.subr.mxu0 0.0
      %1333 = vmatpush1.xpose.msra.mxu0 0.0
      %1334 = vmatprep.subr.mxu0 0.0
      %1335 = vmatpush1.xpose.msra.mxu0 0.0
      %1336 = vmatprep.subr.mxu0 0.0
      %1337 = vmatpush1.xpose.msra.mxu0 0.0
      %1338 = vmatprep.subr.mxu0 0.0
      %1339 = vmatpush1.xpose.msra.mxu0 0.0
      %1340 = vmatprep.subr.mxu0 0.0
      %1341 = vmatpush1.xpose.msra.mxu0 0.0
      %1342 = vmatprep.subr.mxu0 0.0
      %1343 = vmatpush1.xpose.msra.mxu0 0.0
      %1344 = vmatprep.mubr.f32.mxu0 0.0
      %1345 = vmatmul.mubr.f32.gmra.mrb[0].mxu0 %v1276
      %v1346 = vpop.f32.mrb[0].mxu0
      %v1347 = vadd.f32 %v939, %v1346
      %v1348 = vpop.f32.mrb[0].mxu0
      %1349 = vdwg.mxu0
      %v1350 = vsel %vm944, %v1347, -inf
      %1351 = vmax.xlane.f32.xlu0 %v1350
      %v1352 = vpop.xlane.xlu0 %1351
      %v1353 = vsub.f32 %v1347, %v1352
      %v1354 = vmul.f32 %v1353, 1.442695
      %v1355 = vpow.pop %v1354
      %v1356 = vsel %vm944, %v1355, 0.0
      %1357 = vadd.xlane.f32.xlu0 %v1356
      %v1358 = vpop.xlane.xlu0 %1357
      %v1359 = vrcp.pop %v1358
      %v1360 = vmul.f32 %v1355, %v1359
      %1361 = vrot.lane.b32.xlu0 %v931, 48
      %v1362 = vpop.permute.xlu0 %1361
      %v1365 = vsel %vm944, %v1360, 0
      %1367 = vmatprep.subr.mxu0 0.0
      %1368 = vmatpush1.msra.mxu0 %v1362
      %1369 = vmatprep.subr.mxu0 0.0
      %1370 = vmatpush1.msra.mxu0 0.0
      %1371 = vmatprep.subr.mxu0 0.0
      %1372 = vmatpush1.msra.mxu0 0.0
      %1373 = vmatprep.subr.mxu0 0.0
      %1374 = vmatpush1.msra.mxu0 0.0
      %1375 = vmatprep.subr.mxu0 0.0
      %1376 = vmatpush1.msra.mxu0 0.0
      %1377 = vmatprep.subr.mxu0 0.0
      %1378 = vmatpush1.msra.mxu0 0.0
      %1379 = vmatprep.subr.mxu0 0.0
      %1380 = vmatpush1.msra.mxu0 0.0
      %1381 = vmatprep.subr.mxu0 0.0
      %1382 = vmatpush1.msra.mxu0 0.0
      %1383 = vmatprep.subr.mxu0 0.0
      %1384 = vmatpush1.msra.mxu0 0.0
      %1385 = vmatprep.subr.mxu0 0.0
      %1386 = vmatpush1.msra.mxu0 0.0
      %1387 = vmatprep.subr.mxu0 0.0
      %1388 = vmatpush1.msra.mxu0 0.0
      %1389 = vmatprep.subr.mxu0 0.0
      %1390 = vmatpush1.msra.mxu0 0.0
      %1391 = vmatprep.subr.mxu0 0.0
      %1392 = vmatpush1.msra.mxu0 0.0
      %1393 = vmatprep.subr.mxu0 0.0
      %1394 = vmatpush1.msra.mxu0 0.0
      %1395 = vmatprep.subr.mxu0 0.0
      %1396 = vmatpush1.msra.mxu0 0.0
      %1397 = vmatprep.subr.mxu0 0.0
      %1398 = vmatpush1.msra.mxu0 0.0
      %1399 = vmatprep.subr.mxu0 0.0
      %1400 = vmatpush1.msra.mxu0 0.0
      %1401 = vmatprep.subr.mxu0 0.0
      %1402 = vmatpush1.msra.mxu0 0.0
      %1403 = vmatprep.subr.mxu0 0.0
      %1404 = vmatpush1.msra.mxu0 0.0
      %1405 = vmatprep.subr.mxu0 0.0
      %1406 = vmatpush1.msra.mxu0 0.0
      %1407 = vmatprep.subr.mxu0 0.0
      %1408 = vmatpush1.msra.mxu0 0.0
      %1409 = vmatprep.subr.mxu0 0.0
      %1410 = vmatpush1.msra.mxu0 0.0
      %1411 = vmatprep.subr.mxu0 0.0
      %1412 = vmatpush1.msra.mxu0 0.0
      %1413 = vmatprep.subr.mxu0 0.0
      %1414 = vmatpush1.msra.mxu0 0.0
      %1415 = vmatprep.subr.mxu0 0.0
      %1416 = vmatpush1.msra.mxu0 0.0
      %1417 = vmatprep.subr.mxu0 0.0
      %1418 = vmatpush1.msra.mxu0 0.0
      %1419 = vmatprep.subr.mxu0 0.0
      %1420 = vmatpush1.msra.mxu0 0.0
      %1421 = vmatprep.subr.mxu0 0.0
      %1422 = vmatpush1.msra.mxu0 0.0
      %1423 = vmatprep.subr.mxu0 0.0
      %1424 = vmatpush1.msra.mxu0 0.0
      %1425 = vmatprep.subr.mxu0 0.0
      %1426 = vmatpush1.msra.mxu0 0.0
      %1427 = vmatprep.subr.mxu0 0.0
      %1428 = vmatpush1.msra.mxu0 0.0
      %1429 = vmatprep.subr.mxu0 0.0
      %1430 = vmatpush1.msra.mxu0 0.0
      %1431 = vmatprep.mubr.f32.mxu0 0.0
      %1432 = vmatmul.mubr.f32.gmra.mrb[0].mxu0 %v1365
      %v1433 = vpop.f32.mrb[0].mxu0
      %v1434 = vadd.f32 0.0, %v1433
      %v1435 = vpop.f32.mrb[0].mxu0
      %1436 = vdwg.mxu0
      %1437 = vrot.lane.b32.xlu0 %v934, 104
      %v1438 = vpop.permute.xlu0 %1437
      %1439 = vrot.lane.b32.xlu0 %v931, 72
      %v1440 = vpop.permute.xlu0 %1439
      %v1441 = vsel %vm944, %v1438, 0
      %v1443 = vsel %vm944, %v1440, 0
      %1445 = vmatprep.subr.mxu0 0.0
      %1446 = vmatpush1.xpose.msra.mxu0 %v1443
      %1447 = vmatprep.subr.mxu0 0.0
      %1448 = vmatpush1.xpose.msra.mxu0 0.0
      %1449 = vmatprep.subr.mxu0 0.0
      %1450 = vmatpush1.xpose.msra.mxu0 0.0
      %1451 = vmatprep.subr.mxu0 0.0
      %1452 = vmatpush1.xpose.msra.mxu0 0.0
      %1453 = vmatprep.subr.mxu0 0.0
      %1454 = vmatpush1.xpose.msra.mxu0 0.0
      %1455 = vmatprep.subr.mxu0 0.0
      %1456 = vmatpush1.xpose.msra.mxu0 0.0
      %1457 = vmatprep.subr.mxu0 0.0
      %1458 = vmatpush1.xpose.msra.mxu0 0.0
      %1459 = vmatprep.subr.mxu0 0.0
      %1460 = vmatpush1.xpose.msra.mxu0 0.0
      %1461 = vmatprep.subr.mxu0 0.0
      %1462 = vmatpush1.xpose.msra.mxu0 0.0
      %1463 = vmatprep.subr.mxu0 0.0
      %1464 = vmatpush1.xpose.msra.mxu0 0.0
      %1465 = vmatprep.subr.mxu0 0.0
      %1466 = vmatpush1.xpose.msra.mxu0 0.0
      %1467 = vmatprep.subr.mxu0 0.0
      %1468 = vmatpush1.xpose.msra.mxu0 0.0
      %1469 = vmatprep.subr.mxu0 0.0
      %1470 = vmatpush1.xpose.msra.mxu0 0.0
      %1471 = vmatprep.subr.mxu0 0.0
      %1472 = vmatpush1.xpose.msra.mxu0 0.0
      %1473 = vmatprep.subr.mxu0 0.0
      %1474 = vmatpush1.xpose.msra.mxu0 0.0
      %1475 = vmatprep.subr.mxu0 0.0
      %1476 = vmatpush1.xpose.msra.mxu0 0.0
      %1477 = vmatprep.subr.mxu0 0.0
      %1478 = vmatpush1.xpose.msra.mxu0 0.0
      %1479 = vmatprep.subr.mxu0 0.0
      %1480 = vmatpush1.xpose.msra.mxu0 0.0
      %1481 = vmatprep.subr.mxu0 0.0
      %1482 = vmatpush1.xpose.msra.mxu0 0.0
      %1483 = vmatprep.subr.mxu0 0.0
      %1484 = vmatpush1.xpose.msra.mxu0 0.0
      %1485 = vmatprep.subr.mxu0 0.0
      %1486 = vmatpush1.xpose.msra.mxu0 0.0
      %1487 = vmatprep.subr.mxu0 0.0
      %1488 = vmatpush1.xpose.msra.mxu0 0.0
      %1489 = vmatprep.subr.mxu0 0.0
      %1490 = vmatpush1.xpose.msra.mxu0 0.0
      %1491 = vmatprep.subr.mxu0 0.0
      %1492 = vmatpush1.xpose.msra.mxu0 0.0
      %1493 = vmatprep.subr.mxu0 0.0
      %1494 = vmatpush1.xpose.msra.mxu0 0.0
      %1495 = vmatprep.subr.mxu0 0.0
      %1496 = vmatpush1.xpose.msra.mxu0 0.0
      %1497 = vmatprep.subr.mxu0 0.0
      %1498 = vmatpush1.xpose.msra.mxu0 0.0
      %1499 = vmatprep.subr.mxu0 0.0
      %1500 = vmatpush1.xpose.msra.mxu0 0.0
      %1501 = vmatprep.subr.mxu0 0.0
      %1502 = vmatpush1.xpose.msra.mxu0 0.0
      %1503 = vmatprep.subr.mxu0 0.0
      %1504 = vmatpush1.xpose.msra.mxu0 0.0
      %1505 = vmatprep.subr.mxu0 0.0
      %1506 = vmatpush1.xpose.msra.mxu0 0.0
      %1507 = vmatprep.subr.mxu0 0.0
      %1508 = vmatpush1.xpose.msra.mxu0 0.0
      %1509 = vmatprep.mubr.f32.mxu0 0.0
      %1510 = vmatmul.mubr.f32.gmra.mrb[0].mxu0 %v1441
      %v1511 = vpop.f32.mrb[0].mxu0
      %v1512 = vadd.f32 %v939, %v1511
      %v1513 = vpop.f32.mrb[0].mxu0
      %1514 = vdwg.mxu0
      %v1515 = vsel %vm944, %v1512, -inf
      %1516 = vmax.xlane.f32.xlu0 %v1515
      %v1517 = vpop.xlane.xlu0 %1516
      %v1518 = vsub.f32 %v1512, %v1517
      %v1519 = vmul.f32 %v1518, 1.442695
      %v1520 = vpow.pop %v1519
      %v1521 = vsel %vm944, %v1520, 0.0
      %1522 = vadd.xlane.f32.xlu0 %v1521
      %v1523 = vpop.xlane.xlu0 %1522
      %v1524 = vrcp.pop %v1523
      %v1525 = vmul.f32 %v1520, %v1524
      %1526 = vrot.lane.b32.xlu0 %v931, 40
      %v1527 = vpop.permute.xlu0 %1526
      %v1530 = vsel %vm944, %v1525, 0
      %1532 = vmatprep.subr.mxu0 0.0
      %1533 = vmatpush1.msra.mxu0 %v1527
      %1534 = vmatprep.subr.mxu0 0.0
      %1535 = vmatpush1.msra.mxu0 0.0
      %1536 = vmatprep.subr.mxu0 0.0
      %1537 = vmatpush1.msra.mxu0 0.0
      %1538 = vmatprep.subr.mxu0 0.0
      %1539 = vmatpush1.msra.mxu0 0.0
      %1540 = vmatprep.subr.mxu0 0.0
      %1541 = vmatpush1.msra.mxu0 0.0
      %1542 = vmatprep.subr.mxu0 0.0
      %1543 = vmatpush1.msra.mxu0 0.0
      %1544 = vmatprep.subr.mxu0 0.0
      %1545 = vmatpush1.msra.mxu0 0.0
      %1546 = vmatprep.subr.mxu0 0.0
      %1547 = vmatpush1.msra.mxu0 0.0
      %1548 = vmatprep.subr.mxu0 0.0
      %1549 = vmatpush1.msra.mxu0 0.0
      %1550 = vmatprep.subr.mxu0 0.0
      %1551 = vmatpush1.msra.mxu0 0.0
      %1552 = vmatprep.subr.mxu0 0.0
      %1553 = vmatpush1.msra.mxu0 0.0
      %1554 = vmatprep.subr.mxu0 0.0
      %1555 = vmatpush1.msra.mxu0 0.0
      %1556 = vmatprep.subr.mxu0 0.0
      %1557 = vmatpush1.msra.mxu0 0.0
      %1558 = vmatprep.subr.mxu0 0.0
      %1559 = vmatpush1.msra.mxu0 0.0
      %1560 = vmatprep.subr.mxu0 0.0
      %1561 = vmatpush1.msra.mxu0 0.0
      %1562 = vmatprep.subr.mxu0 0.0
      %1563 = vmatpush1.msra.mxu0 0.0
      %1564 = vmatprep.subr.mxu0 0.0
      %1565 = vmatpush1.msra.mxu0 0.0
      %1566 = vmatprep.subr.mxu0 0.0
      %1567 = vmatpush1.msra.mxu0 0.0
      %1568 = vmatprep.subr.mxu0 0.0
      %1569 = vmatpush1.msra.mxu0 0.0
      %1570 = vmatprep.subr.mxu0 0.0
      %1571 = vmatpush1.msra.mxu0 0.0
      %1572 = vmatprep.subr.mxu0 0.0
      %1573 = vmatpush1.msra.mxu0 0.0
      %1574 = vmatprep.subr.mxu0 0.0
      %1575 = vmatpush1.msra.mxu0 0.0
      %1576 = vmatprep.subr.mxu0 0.0
      %1577 = vmatpush1.msra.mxu0 0.0
      %1578 = vmatprep.subr.mxu0 0.0
      %1579 = vmatpush1.msra.mxu0 0.0
      %1580 = vmatprep.subr.mxu0 0.0
      %1581 = vmatpush1.msra.mxu0 0.0
      %1582 = vmatprep.subr.mxu0 0.0
      %1583 = vmatpush1.msra.mxu0 0.0
      %1584 = vmatprep.subr.mxu0 0.0
      %1585 = vmatpush1.msra.mxu0 0.0
      %1586 = vmatprep.subr.mxu0 0.0
      %1587 = vmatpush1.msra.mxu0 0.0
      %1588 = vmatprep.subr.mxu0 0.0
      %1589 = vmatpush1.msra.mxu0 0.0
      %1590 = vmatprep.subr.mxu0 0.0
      %1591 = vmatpush1.msra.mxu0 0.0
      %1592 = vmatprep.subr.mxu0 0.0
      %1593 = vmatpush1.msra.mxu0 0.0
      %1594 = vmatprep.subr.mxu0 0.0
      %1595 = vmatpush1.msra.mxu0 0.0
      %1596 = vmatprep.mubr.f32.mxu0 0.0
      %1597 = vmatmul.mubr.f32.gmra.mrb[0].mxu0 %v1530
      %v1598 = vpop.f32.mrb[0].mxu0
      %v1599 = vadd.f32 0.0, %v1598
      %v1600 = vpop.f32.mrb[0].mxu0
      %1601 = vdwg.mxu0
      %1603 = vrot.lane.b32.xlu0 %v1269, 8
      %v1604 = vpop.permute.xlu0 %1603
      %1607 = vrot.lane.b32.xlu0 %v1434, 16
      %v1608 = vpop.permute.xlu0 %1607
      %1611 = vrot.lane.b32.xlu0 %v1599, 24
      %v1612 = vpop.permute.xlu0 %1611
      %v1614 = vsel %vm944, %v1104, %v1604
      %vm1615 = vcmask 130048
      %v1616 = vsel %vm1615, %v1614, %v1608
      %vm1617 = vcmask 195584
      %v1618 = vsel %vm1617, %v1616, %v1612
      %v1619 = vld [vmem:[%s7] sm:$0xff]
      %v1620 = vld [vmem:[%s7 + $0x8] sm:$0xff]
      %v1621 = vld [vmem:[%s7 + $0x10] sm:$0xff]
      %v1622 = vld [vmem:[%s7 + $0x18] sm:$0xff]
      %v1623 = vld [vmem:[%s8] sm:$0x1]
      %v1625 = vlaneseq
      %v1626 = vshrl.u32 %v1625, 7
      %v1627 = vsub.s32 0, %v1626
      %v1628 = vrot.slane %v1623, %v1627
      %v1631 = vsel %vm820, %v1618, 0
      %1633 = vmatprep.subr.mxu0 0.0
      %1634 = vmatpush1.msra.mxu0 %v1619
      %1635 = vmatprep.subr.mxu0 0.0
      %1636 = vmatpush1.msra.mxu0 %v1620
      %1637 = vmatprep.subr.mxu0 0.0
      %1638 = vmatpush1.msra.mxu0 %v1621
      %1639 = vmatprep.subr.mxu0 0.0
      %1640 = vmatpush1.msra.mxu0 %v1622
      %1641 = vmatprep.subr.mxu0 0.0
      %1642 = vmatpush1.msra.mxu0 0.0
      %1643 = vmatprep.subr.mxu0 0.0
      %1644 = vmatpush1.msra.mxu0 0.0
      %1645 = vmatprep.subr.mxu0 0.0
      %1646 = vmatpush1.msra.mxu0 0.0
      %1647 = vmatprep.subr.mxu0 0.0
      %1648 = vmatpush1.msra.mxu0 0.0
      %1649 = vmatprep.subr.mxu0 0.0
      %1650 = vmatpush1.msra.mxu0 0.0
      %1651 = vmatprep.subr.mxu0 0.0
      %1652 = vmatpush1.msra.mxu0 0.0
      %1653 = vmatprep.subr.mxu0 0.0
      %1654 = vmatpush1.msra.mxu0 0.0
      %1655 = vmatprep.subr.mxu0 0.0
      %1656 = vmatpush1.msra.mxu0 0.0
      %1657 = vmatprep.subr.mxu0 0.0
      %1658 = vmatpush1.msra.mxu0 0.0
      %1659 = vmatprep.subr.mxu0 0.0
      %1660 = vmatpush1.msra.mxu0 0.0
      %1661 = vmatprep.subr.mxu0 0.0
      %1662 = vmatpush1.msra.mxu0 0.0
      %1663 = vmatprep.subr.mxu0 0.0
      %1664 = vmatpush1.msra.mxu0 0.0
      %1665 = vmatprep.subr.mxu0 0.0
      %1666 = vmatpush1.msra.mxu0 0.0
      %1667 = vmatprep.subr.mxu0 0.0
      %1668 = vmatpush1.msra.mxu0 0.0
      %1669 = vmatprep.subr.mxu0 0.0
      %1670 = vmatpush1.msra.mxu0 0.0
      %1671 = vmatprep.subr.mxu0 0.0
      %1672 = vmatpush1.msra.mxu0 0.0
      %1673 = vmatprep.subr.mxu0 0.0
      %1674 = vmatpush1.msra.mxu0 0.0
      %1675 = vmatprep.subr.mxu0 0.0
      %1676 = vmatpush1.msra.mxu0 0.0
      %1677 = vmatprep.subr.mxu0 0.0
      %1678 = vmatpush1.msra.mxu0 0.0
      %1679 = vmatprep.subr.mxu0 0.0
      %1680 = vmatpush1.msra.mxu0 0.0
      %1681 = vmatprep.subr.mxu0 0.0
      %1682 = vmatpush1.msra.mxu0 0.0
      %1683 = vmatprep.subr.mxu0 0.0
      %1684 = vmatpush1.msra.mxu0 0.0
      %1685 = vmatprep.subr.mxu0 0.0
      %1686 = vmatpush1.msra.mxu0 0.0
      %1687 = vmatprep.subr.mxu0 0.0
      %1688 = vmatpush1.msra.mxu0 0.0
      %1689 = vmatprep.subr.mxu0 0.0
      %1690 = vmatpush1.msra.mxu0 0.0
      %1691 = vmatprep.subr.mxu0 0.0
      %1692 = vmatpush1.msra.mxu0 0.0
      %1693 = vmatprep.subr.mxu0 0.0
      %1694 = vmatpush1.msra.mxu0 0.0
      %1695 = vmatprep.subr.mxu0 0.0
      %1696 = vmatpush1.msra.mxu0 0.0
      %1697 = vmatprep.mubr.f32.mxu0 0.0
      %1698 = vmatmul.mubr.f32.gmra.mrb[0].mxu0 %v1631
      %v1699 = vpop.f32.mrb[0].mxu0
      %v1700 = vadd.f32 %v1628, %v1699
      %v1701 = vpop.f32.mrb[0].mxu0
      %1702 = vdwg.mxu0
      %v1703 = vadd.f32 %v1700, %v848
      %v1704 = vld [vmem:[%s9] sm:$0x1]
      %v1705 = vld [vmem:[%s10] sm:$0x1]
      %v1706 = vsel %vm820, %v1703, 0.0
      %1707 = vadd.xlane.f32.xlu0 %v1706
      %v1708 = vpop.xlane.xlu0 %1707
      %v1709 = vmul.f32 %v1708, %v824
      %v1710 = vsub.f32 %v1703, %v1709
      %v1711 = vmul.f32 %v1710, %v1710
      %v1712 = vsel %vm820, %v1711, 0.0
      %1713 = vadd.xlane.f32.xlu0 %v1712
      %v1714 = vpop.xlane.xlu0 %1713
      %v1715 = vmul.f32 %v1714, %v824
      %v1716 = vadd.f32 %v1715, 1e-12
      %v1717 = vrsqrt.pop %v1716
      %v1718 = vmul.f32 %v1710, %v1717
      %v1720 = vlaneseq
      %v1721 = vshrl.u32 %v1720, 7
      %v1722 = vsub.s32 0, %v1721
      %v1723 = vrot.slane %v1704, %v1722
      %v1725 = vmul.f32 %v1718, %v1723
      %v1727 = vlaneseq
      %v1728 = vshrl.u32 %v1727, 7
      %v1729 = vsub.s32 0, %v1728
      %v1730 = vrot.slane %v1705, %v1729
      %v1732 = vadd.f32 %v1725, %v1730
      %v1733 = vld [vmem:[%s11] sm:$0xff]
      %v1734 = vld [vmem:[%s11 + $0x8] sm:$0xff]
      %v1735 = vld [vmem:[%s11 + $0x10] sm:$0xff]
      %v1736 = vld [vmem:[%s11 + $0x18] sm:$0xff]
      %v1737 = vld [vmem:[%s12] sm:$0x1]
      %v1739 = vlaneseq
      %v1740 = vshrl.u32 %v1739, 7
      %v1741 = vsub.s32 0, %v1740
      %v1742 = vrot.slane %v1737, %v1741
      %v1745 = vsel %vm820, %v1732, 0
      %1747 = vmatprep.subr.mxu0 0.0
      %1748 = vmatpush1.msra.mxu0 %v1733
      %1749 = vmatprep.subr.mxu0 0.0
      %1750 = vmatpush1.msra.mxu0 %v1734
      %1751 = vmatprep.subr.mxu0 0.0
      %1752 = vmatpush1.msra.mxu0 %v1735
      %1753 = vmatprep.subr.mxu0 0.0
      %1754 = vmatpush1.msra.mxu0 %v1736
      %1755 = vmatprep.subr.mxu0 0.0
      %1756 = vmatpush1.msra.mxu0 0.0
      %1757 = vmatprep.subr.mxu0 0.0
      %1758 = vmatpush1.msra.mxu0 0.0
      %1759 = vmatprep.subr.mxu0 0.0
      %1760 = vmatpush1.msra.mxu0 0.0
      %1761 = vmatprep.subr.mxu0 0.0
      %1762 = vmatpush1.msra.mxu0 0.0
      %1763 = vmatprep.subr.mxu0 0.0
      %1764 = vmatpush1.msra.mxu0 0.0
      %1765 = vmatprep.subr.mxu0 0.0
      %1766 = vmatpush1.msra.mxu0 0.0
      %1767 = vmatprep.subr.mxu0 0.0
      %1768 = vmatpush1.msra.mxu0 0.0
      %1769 = vmatprep.subr.mxu0 0.0
      %1770 = vmatpush1.msra.mxu0 0.0
      %1771 = vmatprep.subr.mxu0 0.0
      %1772 = vmatpush1.msra.mxu0 0.0
      %1773 = vmatprep.subr.mxu0 0.0
      %1774 = vmatpush1.msra.mxu0 0.0
      %1775 = vmatprep.subr.mxu0 0.0
      %1776 = vmatpush1.msra.mxu0 0.0
      %1777 = vmatprep.subr.mxu0 0.0
      %1778 = vmatpush1.msra.mxu0 0.0
      %1779 = vmatprep.subr.mxu0 0.0
      %1780 = vmatpush1.msra.mxu0 0.0
      %1781 = vmatprep.subr.mxu0 0.0
      %1782 = vmatpush1.msra.mxu0 0.0
      %1783 = vmatprep.subr.mxu0 0.0
      %1784 = vmatpush1.msra.mxu0 0.0
      %1785 = vmatprep.subr.mxu0 0.0
      %1786 = vmatpush1.msra.mxu0 0.0
      %1787 = vmatprep.subr.mxu0 0.0
      %1788 = vmatpush1.msra.mxu0 0.0
      %1789 = vmatprep.subr.mxu0 0.0
      %1790 = vmatpush1.msra.mxu0 0.0
      %1791 = vmatprep.subr.mxu0 0.0
      %1792 = vmatpush1.msra.mxu0 0.0
      %1793 = vmatprep.subr.mxu0 0.0
      %1794 = vmatpush1.msra.mxu0 0.0
      %1795 = vmatprep.subr.mxu0 0.0
      %1796 = vmatpush1.msra.mxu0 0.0
      %1797 = vmatprep.subr.mxu0 0.0
      %1798 = vmatpush1.msra.mxu0 0.0
      %1799 = vmatprep.subr.mxu0 0.0
      %1800 = vmatpush1.msra.mxu0 0.0
      %1801 = vmatprep.subr.mxu0 0.0
      %1802 = vmatpush1.msra.mxu0 0.0
      %1803 = vmatprep.subr.mxu0 0.0
      %1804 = vmatpush1.msra.mxu0 0.0
      %1805 = vmatprep.subr.mxu0 0.0
      %1806 = vmatpush1.msra.mxu0 0.0
      %1807 = vmatprep.subr.mxu0 0.0
      %1808 = vmatpush1.msra.mxu0 0.0
      %1809 = vmatprep.subr.mxu0 0.0
      %1810 = vmatpush1.msra.mxu0 0.0
      %1811 = vmatprep.mubr.f32.mxu0 0.0
      %1812 = vmatmul.mubr.f32.gmra.mrb[0].mxu0 %v1745
      %v1813 = vpop.f32.mrb[0].mxu0
      %v1814 = vadd.f32 %v1742, %v1813
      %v1815 = vpop.f32.mrb[0].mxu0
      %1816 = vdwg.mxu0
      %v1817 = vmul.f32 %v1814, 0.5
      %v1818 = vmul.f32 %v1814, 0.044715
      %v1819 = vmul.f32 %v1818, %v1814
      %v1820 = vmul.f32 %v1819, %v1814
      %v1821 = vadd.f32 %v1814, %v1820
      %v1822 = vmul.f32 %v1821, 0.7978846
      %v1823 = vtanh.pop %v1822
      %v1824 = vadd.f32 %v1823, 1.0
      %v1825 = vmul.f32 %v1817, %v1824
      %v1826 = vld [vmem:[%s13] sm:$0xff]
      %v1827 = vld [vmem:[%s13 + $0x8] sm:$0xff]
      %v1828 = vld [vmem:[%s13 + $0x10] sm:$0xff]
      %v1829 = vld [vmem:[%s13 + $0x18] sm:$0xff]
      %v1830 = vld [vmem:[%s13 + $0x20] sm:$0xff]
      %v1831 = vld [vmem:[%s13 + $0x28] sm:$0xff]
      %v1832 = vld [vmem:[%s13 + $0x30] sm:$0xff]
      %v1833 = vld [vmem:[%s13 + $0x38] sm:$0xff]
      %v1834 = vld [vmem:[%s14] sm:$0x1]
      %v1836 = vlaneseq
      %v1837 = vshrl.u32 %v1836, 7
      %v1838 = vsub.s32 0, %v1837
      %v1839 = vrot.slane %v1834, %v1838
      %vm1841 = vcmask 523264
      %v1843 = vsel %vm1841, %v1825, 0
      %1845 = vmatprep.subr.mxu0 0.0
      %1846 = vmatpush1.msra.mxu0 %v1826
      %1847 = vmatprep.subr.mxu0 0.0
      %1848 = vmatpush1.msra.mxu0 %v1827
      %1849 = vmatprep.subr.mxu0 0.0
      %1850 = vmatpush1.msra.mxu0 %v1828
      %1851 = vmatprep.subr.mxu0 0.0
      %1852 = vmatpush1.msra.mxu0 %v1829
      %1853 = vmatprep.subr.mxu0 0.0
      %1854 = vmatpush1.msra.mxu0 %v1830
      %1855 = vmatprep.subr.mxu0 0.0
      %1856 = vmatpush1.msra.mxu0 %v1831
      %1857 = vmatprep.subr.mxu0 0.0
      %1858 = vmatpush1.msra.mxu0 %v1832
      %1859 = vmatprep.subr.mxu0 0.0
      %1860 = vmatpush1.msra.mxu0 %v1833
      %1861 = vmatprep.subr.mxu0 0.0
      %1862 = vmatpush1.msra.mxu0 0.0
      %1863 = vmatprep.subr.mxu0 0.0
      %1864 = vmatpush1.msra.mxu0 0.0
      %1865 = vmatprep.subr.mxu0 0.0
      %1866 = vmatpush1.msra.mxu0 0.0
      %1867 = vmatprep.subr.mxu0 0.0
      %1868 = vmatpush1.msra.mxu0 0.0
      %1869 = vmatprep.subr.mxu0 0.0
      %1870 = vmatpush1.msra.mxu0 0.0
      %1871 = vmatprep.subr.mxu0 0.0
      %1872 = vmatpush1.msra.mxu0 0.0
      %1873 = vmatprep.subr.mxu0 0.0
      %1874 = vmatpush1.msra.mxu0 0.0
      %1875 = vmatprep.subr.mxu0 0.0
      %1876 = vmatpush1.msra.mxu0 0.0
      %1877 = vmatprep.subr.mxu0 0.0
      %1878 = vmatpush1.msra.mxu0 0.0
      %1879 = vmatprep.subr.mxu0 0.0
      %1880 = vmatpush1.msra.mxu0 0.0
      %1881 = vmatprep.subr.mxu0 0.0
      %1882 = vmatpush1.msra.mxu0 0.0
      %1883 = vmatprep.subr.mxu0 0.0
      %1884 = vmatpush1.msra.mxu0 0.0
      %1885 = vmatprep.subr.mxu0 0.0
      %1886 = vmatpush1.msra.mxu0 0.0
      %1887 = vmatprep.subr.mxu0 0.0
      %1888 = vmatpush1.msra.mxu0 0.0
      %1889 = vmatprep.subr.mxu0 0.0
      %1890 = vmatpush1.msra.mxu0 0.0
      %1891 = vmatprep.subr.mxu0 0.0
      %1892 = vmatpush1.msra.mxu0 0.0
      %1893 = vmatprep.subr.mxu0 0.0
      %1894 = vmatpush1.msra.mxu0 0.0
      %1895 = vmatprep.subr.mxu0 0.0
      %1896 = vmatpush1.msra.mxu0 0.0
      %1897 = vmatprep.subr.mxu0 0.0
      %1898 = vmatpush1.msra.mxu0 0.0
      %1899 = vmatprep.subr.mxu0 0.0
      %1900 = vmatpush1.msra.mxu0 0.0
      %1901 = vmatprep.subr.mxu0 0.0
      %1902 = vmatpush1.msra.mxu0 0.0
      %1903 = vmatprep.subr.mxu0 0.0
      %1904 = vmatpush1.msra.mxu0 0.0
      %1905 = vmatprep.subr.mxu0 0.0
      %1906 = vmatpush1.msra.mxu0 0.0
      %1907 = vmatprep.subr.mxu0 0.0
      %1908 = vmatpush1.msra.mxu0 0.0
      %1909 = vmatprep.mubr.f32.mxu0 0.0
      %1910 = vmatmul.mubr.f32.gmra.mrb[0].mxu0 %v1843
      %v1911 = vpop.f32.mrb[0].mxu0
      %v1912 = vadd.f32 %v1839, %v1911
      %v1913 = vpop.f32.mrb[0].mxu0
      %1914 = vdwg.mxu0
      %v1915 = vadd.f32 %v1912, %v1732
      %v1916 = vld [vmem:[%s15] sm:$0x1]
      %v1917 = vld [vmem:[%s16] sm:$0x1]
      %v1918 = vsel %vm820, %v1915, 0.0
      %1919 = vadd.xlane.f32.xlu0 %v1918
      %v1920 = vpop.xlane.xlu0 %1919
      %v1921 = vmul.f32 %v1920, %v824
      %v1922 = vsub.f32 %v1915, %v1921
      %v1923 = vmul.f32 %v1922, %v1922
      %v1924 = vsel %vm820, %v1923, 0.0
      %1925 = vadd.xlane.f32.xlu0 %v1924
      %v1926 = vpop.xlane.xlu0 %1925
      %v1927 = vmul.f32 %v1926, %v824
      %v1928 = vadd.f32 %v1927, 1e-12
      %v1929 = vrsqrt.pop %v1928
      %v1930 = vmul.f32 %v1922, %v1929
      %v1932 = vlaneseq
      %v1933 = vshrl.u32 %v1932, 7
      %v1934 = vsub.s32 0, %v1933
      %v1935 = vrot.slane %v1916, %v1934
      %v1937 = vmul.f32 %v1930, %v1935
      %v1939 = vlaneseq
      %v1940 = vshrl.u32 %v1939, 7
      %v1941 = vsub.s32 0, %v1940
      %v1942 = vrot.slane %v1917, %v1941
      %v1944 = vadd.f32 %v1937, %v1942
      %s1945 = scalar_lea.vmem %s5, 32
      %v1946 = vld [vmem:[%s1945] sm:$0xff]
      %v1947 = vld [vmem:[%s1945 + $0x8] sm:$0xff]
      %v1948 = vld [vmem:[%s1945 + $0x10] sm:$0xff]
      %v1949 = vld [vmem:[%s1945 + $0x18] sm:$0xff]
      %s1950 = scalar_lea.vmem %s6, 1
      %v1951 = vld [vmem:[%s1950] sm:$0x1]
      %v1953 = vlaneseq
      %v1954 = vshrl.u32 %v1953, 7
      %v1955 = vsub.s32 0, %v1954
      %v1956 = vrot.slane %v1951, %v1955
      %v1959 = vsel %vm820, %v1944, 0
      %1961 = vmatprep.subr.mxu0 0.0
      %1962 = vmatpush1.msra.mxu0 %v1946
      %1963 = vmatprep.subr.mxu0 0.0
      %1964 = vmatpush1.msra.mxu0 %v1947
      %1965 = vmatprep.subr.mxu0 0.0
      %1966 = vmatpush1.msra.mxu0 %v1948
      %1967 = vmatprep.subr.mxu0 0.0
      %1968 = vmatpush1.msra.mxu0 %v1949
      %1969 = vmatprep.subr.mxu0 0.0
      %1970 = vmatpush1.msra.mxu0 0.0
      %1971 = vmatprep.subr.mxu0 0.0
      %1972 = vmatpush1.msra.mxu0 0.0
      %1973 = vmatprep.subr.mxu0 0.0
      %1974 = vmatpush1.msra.mxu0 0.0
      %1975 = vmatprep.subr.mxu0 0.0
      %1976 = vmatpush1.msra.mxu0 0.0
      %1977 = vmatprep.subr.mxu0 0.0
      %1978 = vmatpush1.msra.mxu0 0.0
      %1979 = vmatprep.subr.mxu0 0.0
      %1980 = vmatpush1.msra.mxu0 0.0
      %1981 = vmatprep.subr.mxu0 0.0
      %1982 = vmatpush1.msra.mxu0 0.0
      %1983 = vmatprep.subr.mxu0 0.0
      %1984 = vmatpush1.msra.mxu0 0.0
      %1985 = vmatprep.subr.mxu0 0.0
      %1986 = vmatpush1.msra.mxu0 0.0
      %1987 = vmatprep.subr.mxu0 0.0
      %1988 = vmatpush1.msra.mxu0 0.0
      %1989 = vmatprep.subr.mxu0 0.0
      %1990 = vmatpush1.msra.mxu0 0.0
      %1991 = vmatprep.subr.mxu0 0.0
      %1992 = vmatpush1.msra.mxu0 0.0
      %1993 = vmatprep.subr.mxu0 0.0
      %1994 = vmatpush1.msra.mxu0 0.0
      %1995 = vmatprep.subr.mxu0 0.0
      %1996 = vmatpush1.msra.mxu0 0.0
      %1997 = vmatprep.subr.mxu0 0.0
      %1998 = vmatpush1.msra.mxu0 0.0
      %1999 = vmatprep.subr.mxu0 0.0
      %2000 = vmatpush1.msra.mxu0 0.0
      %2001 = vmatprep.subr.mxu0 0.0
      %2002 = vmatpush1.msra.mxu0 0.0
      %2003 = vmatprep.subr.mxu0 0.0
      %2004 = vmatpush1.msra.mxu0 0.0
      %2005 = vmatprep.subr.mxu0 0.0
      %2006 = vmatpush1.msra.mxu0 0.0
      %2007 = vmatprep.subr.mxu0 0.0
      %2008 = vmatpush1.msra.mxu0 0.0
      %2009 = vmatprep.subr.mxu0 0.0
      %2010 = vmatpush1.msra.mxu0 0.0
      %2011 = vmatprep.subr.mxu0 0.0
      %2012 = vmatpush1.msra.mxu0 0.0
      %2013 = vmatprep.subr.mxu0 0.0
      %2014 = vmatpush1.msra.mxu0 0.0
      %2015 = vmatprep.subr.mxu0 0.0
      %2016 = vmatpush1.msra.mxu0 0.0
      %2017 = vmatprep.subr.mxu0 0.0
      %2018 = vmatpush1.msra.mxu0 0.0
      %2019 = vmatprep.subr.mxu0 0.0
      %2020 = vmatpush1.msra.mxu0 0.0
      %2021 = vmatprep.subr.mxu0 0.0
      %2022 = vmatpush1.msra.mxu0 0.0
      %2023 = vmatprep.subr.mxu0 0.0
      %2024 = vmatpush1.msra.mxu0 0.0
      %2025 = vmatprep.mubr.f32.mxu0 0.0
      %2026 = vmatmul.mubr.f32.gmra.mrb[0].mxu0 %v1959
      %v2027 = vpop.f32.mrb[0].mxu0
      %v2028 = vadd.f32 %v1956, %v2027
      %v2029 = vpop.f32.mrb[0].mxu0
      %2030 = vdwg.mxu0
      %v2031 = vmul.f32 %v2028, 0.35355338
      %2033 = vrot.lane.b32.xlu0 %v2028, 96
      %v2034 = vpop.permute.xlu0 %2033
      %v2036 = vsel %vm944, %v2031, 0
      %v2038 = vsel %vm944, %v2034, 0
      %2040 = vmatprep.subr.mxu0 0.0
      %2041 = vmatpush1.xpose.msra.mxu0 %v2038
      %2042 = vmatprep.subr.mxu0 0.0
      %2043 = vmatpush1.xpose.msra.mxu0 0.0
      %2044 = vmatprep.subr.mxu0 0.0
      %2045 = vmatpush1.xpose.msra.mxu0 0.0
      %2046 = vmatprep.subr.mxu0 0.0
      %2047 = vmatpush1.xpose.msra.mxu0 0.0
      %2048 = vmatprep.subr.mxu0 0.0
      %2049 = vmatpush1.xpose.msra.mxu0 0.0
      %2050 = vmatprep.subr.mxu0 0.0
      %2051 = vmatpush1.xpose.msra.mxu0 0.0
      %2052 = vmatprep.subr.mxu0 0.0
      %2053 = vmatpush1.xpose.msra.mxu0 0.0
      %2054 = vmatprep.subr.mxu0 0.0
      %2055 = vmatpush1.xpose.msra.mxu0 0.0
      %2056 = vmatprep.subr.mxu0 0.0
      %2057 = vmatpush1.xpose.msra.mxu0 0.0
      %2058 = vmatprep.subr.mxu0 0.0
      %2059 = vmatpush1.xpose.msra.mxu0 0.0
      %2060 = vmatprep.subr.mxu0 0.0
      %2061 = vmatpush1.xpose.msra.mxu0 0.0
      %2062 = vmatprep.subr.mxu0 0.0
      %2063 = vmatpush1.xpose.msra.mxu0 0.0
      %2064 = vmatprep.subr.mxu0 0.0
      %2065 = vmatpush1.xpose.msra.mxu0 0.0
      %2066 = vmatprep.subr.mxu0 0.0
      %2067 = vmatpush1.xpose.msra.mxu0 0.0
      %2068 = vmatprep.subr.mxu0 0.0
      %2069 = vmatpush1.xpose.msra.mxu0 0.0
      %2070 = vmatprep.subr.mxu0 0.0
      %2071 = vmatpush1.xpose.msra.mxu0 0.0
      %2072 = vmatprep.subr.mxu0 0.0
      %2073 = vmatpush1.xpose.msra.mxu0 0.0
      %2074 = vmatprep.subr.mxu0 0.0
      %2075 = vmatpush1.xpose.msra.mxu0 0.0
      %2076 = vmatprep.subr.mxu0 0.0
      %2077 = vmatpush1.xpose.msra.mxu0 0.0
      %2078 = vmatprep.subr.mxu0 0.0
      %2079 = vmatpush1.xpose.msra.mxu0 0.0
      %2080 = vmatprep.subr.mxu0 0.0
      %2081 = vmatpush1.xpose.msra.mxu0 0.0
      %2082 = vmatprep.subr.mxu0 0.0
      %2083 = vmatpush1.xpose.msra.mxu0 0.0
      %2084 = vmatprep.subr.mxu0 0.0
      %2085 = vmatpush1.xpose.msra.mxu0 0.0
      %2086 = vmatprep.subr.mxu0 0.0
      %2087 = vmatpush1.xpose.msra.mxu0 0.0
      %2088 = vmatprep.subr.mxu0 0.0
      %2089 = vmatpush1.xpose.msra.mxu0 0.0
      %2090 = vmatprep.subr.mxu0 0.0
      %2091 = vmatpush1.xpose.msra.mxu0 0.0
      %2092 = vmatprep.subr.mxu0 0.0
      %2093 = vmatpush1.xpose.msra.mxu0 0.0
      %2094 = vmatprep.subr.mxu0 0.0
      %2095 = vmatpush1.xpose.msra.mxu0 0.0
      %2096 = vmatprep.subr.mxu0 0.0
      %2097 = vmatpush1.xpose.msra.mxu0 0.0
      %2098 = vmatprep.subr.mxu0 0.0
      %2099 = vmatpush1.xpose.msra.mxu0 0.0
      %2100 = vmatprep.subr.mxu0 0.0
      %2101 = vmatpush1.xpose.msra.mxu0 0.0
      %2102 = vmatprep.subr.mxu0 0.0
      %2103 = vmatpush1.xpose.msra.mxu0 0.0
      %2104 = vmatprep.mubr.f32.mxu0 0.0
      %2105 = vmatmul.mubr.f32.gmra.mrb[0].mxu0 %v2036
      %v2106 = vpop.f32.mrb[0].mxu0
      %v2107 = vadd.f32 %v939, %v2106
      %v2108 = vpop.f32.mrb[0].mxu0
      %2109 = vdwg.mxu0
      %v2110 = vsel %vm944, %v2107, -inf
      %2111 = vmax.xlane.f32.xlu0 %v2110
      %v2112 = vpop.xlane.xlu0 %2111
      %v2113 = vsub.f32 %v2107, %v2112
      %v2114 = vmul.f32 %v2113, 1.442695
      %v2115 = vpow.pop %v2114
      %v2116 = vsel %vm944, %v2115, 0.0
      %2117 = vadd.xlane.f32.xlu0 %v2116
      %v2118 = vpop.xlane.xlu0 %2117
      %v2119 = vrcp.pop %v2118
      %v2120 = vmul.f32 %v2115, %v2119
      %2121 = vrot.lane.b32.xlu0 %v2028, 64
      %v2122 = vpop.permute.xlu0 %2121
      %v2125 = vsel %vm944, %v2120, 0
      %2127 = vmatprep.subr.mxu0 0.0
      %2128 = vmatpush1.msra.mxu0 %v2122
      %2129 = vmatprep.subr.mxu0 0.0
      %2130 = vmatpush1.msra.mxu0 0.0
      %2131 = vmatprep.subr.mxu0 0.0
      %2132 = vmatpush1.msra.mxu0 0.0
      %2133 = vmatprep.subr.mxu0 0.0
      %2134 = vmatpush1.msra.mxu0 0.0
      %2135 = vmatprep.subr.mxu0 0.0
      %2136 = vmatpush1.msra.mxu0 0.0
      %2137 = vmatprep.subr.mxu0 0.0
      %2138 = vmatpush1.msra.mxu0 0.0
      %2139 = vmatprep.subr.mxu0 0.0
      %2140 = vmatpush1.msra.mxu0 0.0
      %2141 = vmatprep.subr.mxu0 0.0
      %2142 = vmatpush1.msra.mxu0 0.0
      %2143 = vmatprep.subr.mxu0 0.0
      %2144 = vmatpush1.msra.mxu0 0.0
      %2145 = vmatprep.subr.mxu0 0.0
      %2146 = vmatpush1.msra.mxu0 0.0
      %2147 = vmatprep.subr.mxu0 0.0
      %2148 = vmatpush1.msra.mxu0 0.0
      %2149 = vmatprep.subr.mxu0 0.0
      %2150 = vmatpush1.msra.mxu0 0.0
      %2151 = vmatprep.subr.mxu0 0.0
      %2152 = vmatpush1.msra.mxu0 0.0
      %2153 = vmatprep.subr.mxu0 0.0
      %2154 = vmatpush1.msra.mxu0 0.0
      %2155 = vmatprep.subr.mxu0 0.0
      %2156 = vmatpush1.msra.mxu0 0.0
      %2157 = vmatprep.subr.mxu0 0.0
      %2158 = vmatpush1.msra.mxu0 0.0
      %2159 = vmatprep.subr.mxu0 0.0
      %2160 = vmatpush1.msra.mxu0 0.0
      %2161 = vmatprep.subr.mxu0 0.0
      %2162 = vmatpush1.msra.mxu0 0.0
      %2163 = vmatprep.subr.mxu0 0.0
      %2164 = vmatpush1.msra.mxu0 0.0
      %2165 = vmatprep.subr.mxu0 0.0
      %2166 = vmatpush1.msra.mxu0 0.0
      %2167 = vmatprep.subr.mxu0 0.0
      %2168 = vmatpush1.msra.mxu0 0.0
      %2169 = vmatprep.subr.mxu0 0.0
      %2170 = vmatpush1.msra.mxu0 0.0
      %2171 = vmatprep.subr.mxu0 0.0
      %2172 = vmatpush1.msra.mxu0 0.0
      %2173 = vmatprep.subr.mxu0 0.0
      %2174 = vmatpush1.msra.mxu0 0.0
      %2175 = vmatprep.subr.mxu0 0.0
      %2176 = vmatpush1.msra.mxu0 0.0
      %2177 = vmatprep.subr.mxu0 0.0
      %2178 = vmatpush1.msra.mxu0 0.0
      %2179 = vmatprep.subr.mxu0 0.0
      %2180 = vmatpush1.msra.mxu0 0.0
      %2181 = vmatprep.subr.mxu0 0.0
      %2182 = vmatpush1.msra.mxu0 0.0
      %2183 = vmatprep.subr.mxu0 0.0
      %2184 = vmatpush1.msra.mxu0 0.0
      %2185 = vmatprep.subr.mxu0 0.0
      %2186 = vmatpush1.msra.mxu0 0.0
      %2187 = vmatprep.subr.mxu0 0.0
      %2188 = vmatpush1.msra.mxu0 0.0
      %2189 = vmatprep.subr.mxu0 0.0
      %2190 = vmatpush1.msra.mxu0 0.0
      %2191 = vmatprep.mubr.f32.mxu0 0.0
      %2192 = vmatmul.mubr.f32.gmra.mrb[0].mxu0 %v2125
      %v2193 = vpop.f32.mrb[0].mxu0
      %v2194 = vadd.f32 0.0, %v2193
      %v2195 = vpop.f32.mrb[0].mxu0
      %2196 = vdwg.mxu0
      %2197 = vrot.lane.b32.xlu0 %v2031, 120
      %v2198 = vpop.permute.xlu0 %2197
      %2199 = vrot.lane.b32.xlu0 %v2028, 88
      %v2200 = vpop.permute.xlu0 %2199
      %v2201 = vsel %vm944, %v2198, 0
      %v2203 = vsel %vm944, %v2200, 0
      %2205 = vmatprep.subr.mxu0 0.0
      %2206 = vmatpush1.xpose.msra.mxu0 %v2203
      %2207 = vmatprep.subr.mxu0 0.0
      %2208 = vmatpush1.xpose.msra.mxu0 0.0
      %2209 = vmatprep.subr.mxu0 0.0
      %2210 = vmatpush1.xpose.msra.mxu0 0.0
      %2211 = vmatprep.subr.mxu0 0.0
      %2212 = vmatpush1.xpose.msra.mxu0 0.0
      %2213 = vmatprep.subr.mxu0 0.0
      %2214 = vmatpush1.xpose.msra.mxu0 0.0
      %2215 = vmatprep.subr.mxu0 0.0
      %2216 = vmatpush1.xpose.msra.mxu0 0.0
      %2217 = vmatprep.subr.mxu0 0.0
      %2218 = vmatpush1.xpose.msra.mxu0 0.0
      %2219 = vmatprep.subr.mxu0 0.0
      %2220 = vmatpush1.xpose.msra.mxu0 0.0
      %2221 = vmatprep.subr.mxu0 0.0
      %2222 = vmatpush1.xpose.msra.mxu0 0.0
      %2223 = vmatprep.subr.mxu0 0.0
      %2224 = vmatpush1.xpose.msra.mxu0 0.0
      %2225 = vmatprep.subr.mxu0 0.0
      %2226 = vmatpush1.xpose.msra.mxu0 0.0
      %2227 = vmatprep.subr.mxu0 0.0
      %2228 = vmatpush1.xpose.msra.mxu0 0.0
      %2229 = vmatprep.subr.mxu0 0.0
      %2230 = vmatpush1.xpose.msra.mxu0 0.0
      %2231 = vmatprep.subr.mxu0 0.0
      %2232 = vmatpush1.xpose.msra.mxu0 0.0
      %2233 = vmatprep.subr.mxu0 0.0
      %2234 = vmatpush1.xpose.msra.mxu0 0.0
      %2235 = vmatprep.subr.mxu0 0.0
      %2236 = vmatpush1.xpose.msra.mxu0 0.0
      %2237 = vmatprep.subr.mxu0 0.0
      %2238 = vmatpush1.xpose.msra.mxu0 0.0
      %2239 = vmatprep.subr.mxu0 0.0
      %2240 = vmatpush1.xpose.msra.mxu0 0.0
      %2241 = vmatprep.subr.mxu0 0.0
      %2242 = vmatpush1.xpose.msra.mxu0 0.0
      %2243 = vmatprep.subr.mxu0 0.0
      %2244 = vmatpush1.xpose.msra.mxu0 0.0
      %2245 = vmatprep.subr.mxu0 0.0
      %2246 = vmatpush1.xpose.msra.mxu0 0.0
      %2247 = vmatprep.subr.mxu0 0.0
      %2248 = vmatpush1.xpose.msra.mxu0 0.0
      %2249 = vmatprep.subr.mxu0 0.0
      %2250 = vmatpush1.xpose.msra.mxu0 0.0
      %2251 = vmatprep.subr.mxu0 0.0
      %2252 = vmatpush1.xpose.msra.mxu0 0.0
      %2253 = vmatprep.subr.mxu0 0.0
      %2254 = vmatpush1.xpose.msra.mxu0 0.0
      %2255 = vmatprep.subr.mxu0 0.0
      %2256 = vmatpush1.xpose.msra.mxu0 0.0
      %2257 = vmatprep.subr.mxu0 0.0
      %2258 = vmatpush1.xpose.msra.mxu0 0.0
      %2259 = vmatprep.subr.mxu0 0.0
      %2260 = vmatpush1.xpose.msra.mxu0 0.0
      %2261 = vmatprep.subr.mxu0 0.0
      %2262 = vmatpush1.xpose.msra.mxu0 0.0
      %2263 = vmatprep.subr.mxu0 0.0
      %2264 = vmatpush1.xpose.msra.mxu0 0.0
      %2265 = vmatprep.subr.mxu0 0.0
      %2266 = vmatpush1.xpose.msra.mxu0 0.0
      %2267 = vmatprep.subr.mxu0 0.0
      %2268 = vmatpush1.xpose.msra.mxu0 0.0
      %2269 = vmatprep.mubr.f32.mxu0 0.0
      %2270 = vmatmul.mubr.f32.gmra.mrb[0].mxu0 %v2201
      %v2271 = vpop.f32.mrb[0].mxu0
      %v2272 = vadd.f32 %v939, %v2271
      %v2273 = vpop.f32.mrb[0].mxu0
      %2274 = vdwg.mxu0
      %v2275 = vsel %vm944, %v2272, -inf
      %2276 = vmax.xlane.f32.xlu0 %v2275
      %v2277 = vpop.xlane.xlu0 %2276
      %v2278 = vsub.f32 %v2272, %v2277
      %v2279 = vmul.f32 %v2278, 1.442695
      %v2280 = vpow.pop %v2279
      %v2281 = vsel %vm944, %v2280, 0.0
      %2282 = vadd.xlane.f32.xlu0 %v2281
      %v2283 = vpop.xlane.xlu0 %2282
      %v2284 = vrcp.pop %v2283
      %v2285 = vmul.f32 %v2280, %v2284
      %2286 = vrot.lane.b32.xlu0 %v2028, 56
      %v2287 = vpop.permute.xlu0 %2286
      %v2290 = vsel %vm944, %v2285, 0
      %2292 = vmatprep.subr.mxu0 0.0
      %2293 = vmatpush1.msra.mxu0 %v2287
      %2294 = vmatprep.subr.mxu0 0.0
      %2295 = vmatpush1.msra.mxu0 0.0
      %2296 = vmatprep.subr.mxu0 0.0
      %2297 = vmatpush1.msra.mxu0 0.0
      %2298 = vmatprep.subr.mxu0 0.0
      %2299 = vmatpush1.msra.mxu0 0.0
      %2300 = vmatprep.subr.mxu0 0.0
      %2301 = vmatpush1.msra.mxu0 0.0
      %2302 = vmatprep.subr.mxu0 0.0
      %2303 = vmatpush1.msra.mxu0 0.0
      %2304 = vmatprep.subr.mxu0 0.0
      %2305 = vmatpush1.msra.mxu0 0.0
      %2306 = vmatprep.subr.mxu0 0.0
      %2307 = vmatpush1.msra.mxu0 0.0
      %2308 = vmatprep.subr.mxu0 0.0
      %2309 = vmatpush1.msra.mxu0 0.0
      %2310 = vmatprep.subr.mxu0 0.0
      %2311 = vmatpush1.msra.mxu0 0.0
      %2312 = vmatprep.subr.mxu0 0.0
      %2313 = vmatpush1.msra.mxu0 0.0
      %2314 = vmatprep.subr.mxu0 0.0
      %2315 = vmatpush1.msra.mxu0 0.0
      %2316 = vmatprep.subr.mxu0 0.0
      %2317 = vmatpush1.msra.mxu0 0.0
      %2318 = vmatprep.subr.mxu0 0.0
      %2319 = vmatpush1.msra.mxu0 0.0
      %2320 = vmatprep.subr.mxu0 0.0
      %2321 = vmatpush1.msra.mxu0 0.0
      %2322 = vmatprep.subr.mxu0 0.0
      %2323 = vmatpush1.msra.mxu0 0.0
      %2324 = vmatprep.subr.mxu0 0.0
      %2325 = vmatpush1.msra.mxu0 0.0
      %2326 = vmatprep.subr.mxu0 0.0
      %2327 = vmatpush1.msra.mxu0 0.0
      %2328 = vmatprep.subr.mxu0 0.0
      %2329 = vmatpush1.msra.mxu0 0.0
      %2330 = vmatprep.subr.mxu0 0.0
      %2331 = vmatpush1.msra.mxu0 0.0
      %2332 = vmatprep.subr.mxu0 0.0
      %2333 = vmatpush1.msra.mxu0 0.0
      %2334 = vmatprep.subr.mxu0 0.0
      %2335 = vmatpush1.msra.mxu0 0.0
      %2336 = vmatprep.subr.mxu0 0.0
      %2337 = vmatpush1.msra.mxu0 0.0
      %2338 = vmatprep.subr.mxu0 0.0
      %2339 = vmatpush1.msra.mxu0 0.0
      %2340 = vmatprep.subr.mxu0 0.0
      %2341 = vmatpush1.msra.mxu0 0.0
      %2342 = vmatprep.subr.mxu0 0.0
      %2343 = vmatpush1.msra.mxu0 0.0
      %2344 = vmatprep.subr.mxu0 0.0
      %2345 = vmatpush1.msra.mxu0 0.0
      %2346 = vmatprep.subr.mxu0 0.0
      %2347 = vmatpush1.msra.mxu0 0.0
      %2348 = vmatprep.subr.mxu0 0.0
      %2349 = vmatpush1.msra.mxu0 0.0
      %2350 = vmatprep.subr.mxu0 0.0
      %2351 = vmatpush1.msra.mxu0 0.0
      %2352 = vmatprep.subr.mxu0 0.0
      %2353 = vmatpush1.msra.mxu0 0.0
      %2354 = vmatprep.subr.mxu0 0.0
      %2355 = vmatpush1.msra.mxu0 0.0
      %2356 = vmatprep.mubr.f32.mxu0 0.0
      %2357 = vmatmul.mubr.f32.gmra.mrb[0].mxu0 %v2290
      %v2358 = vpop.f32.mrb[0].mxu0
      %v2359 = vadd.f32 0.0, %v2358
      %v2360 = vpop.f32.mrb[0].mxu0
      %2361 = vdwg.mxu0
      %2362 = vrot.lane.b32.xlu0 %v2031, 112
      %v2363 = vpop.permute.xlu0 %2362
      %2364 = vrot.lane.b32.xlu0 %v2028, 80
      %v2365 = vpop.permute.xlu0 %2364
      %v2366 = vsel %vm944, %v2363, 0
      %v2368 = vsel %vm944, %v2365, 0
      %2370 = vmatprep.subr.mxu0 0.0
      %2371 = vmatpush1.xpose.msra.mxu0 %v2368
      %2372 = vmatprep.subr.mxu0 0.0
      %2373 = vmatpush1.xpose.msra.mxu0 0.0
      %2374 = vmatprep.subr.mxu0 0.0
      %2375 = vmatpush1.xpose.msra.mxu0 0.0
      %2376 = vmatprep.subr.mxu0 0.0
      %2377 = vmatpush1.xpose.msra.mxu0 0.0
      %2378 = vmatprep.subr.mxu0 0.0
      %2379 = vmatpush1.xpose.msra.mxu0 0.0
      %2380 = vmatprep.subr.mxu0 0.0
      %2381 = vmatpush1.xpose.msra.mxu0 0.0
      %2382 = vmatprep.subr.mxu0 0.0
      %2383 = vmatpush1.xpose.msra.mxu0 0.0
      %2384 = vmatprep.subr.mxu0 0.0
      %2385 = vmatpush1.xpose.msra.mxu0 0.0
      %2386 = vmatprep.subr.mxu0 0.0
      %2387 = vmatpush1.xpose.msra.mxu0 0.0
      %2388 = vmatprep.subr.mxu0 0.0
      %2389 = vmatpush1.xpose.msra.mxu0 0.0
      %2390 = vmatprep.subr.mxu0 0.0
      %2391 = vmatpush1.xpose.msra.mxu0 0.0
      %2392 = vmatprep.subr.mxu0 0.0
      %2393 = vmatpush1.xpose.msra.mxu0 0.0
      %2394 = vmatprep.subr.mxu0 0.0
      %2395 = vmatpush1.xpose.msra.mxu0 0.0
      %2396 = vmatprep.subr.mxu0 0.0
      %2397 = vmatpush1.xpose.msra.mxu0 0.0
      %2398 = vmatprep.subr.mxu0 0.0
      %2399 = vmatpush1.xpose.msra.mxu0 0.0
      %2400 = vmatprep.subr.mxu0 0.0
      %2401 = vmatpush1.xpose.msra.mxu0 0.0
      %2402 = vmatprep.subr.mxu0 0.0
      %2403 = vmatpush1.xpose.msra.mxu0 0.0
      %2404 = vmatprep.subr.mxu0 0.0
      %2405 = vmatpush1.xpose.msra.mxu0 0.0
      %2406 = vmatprep.subr.mxu0 0.0
      %2407 = vmatpush1.xpose.msra.mxu0 0.0
      %2408 = vmatprep.subr.mxu0 0.0
      %2409 = vmatpush1.xpose.msra.mxu0 0.0
      %2410 = vmatprep.subr.mxu0 0.0
      %2411 = vmatpush1.xpose.msra.mxu0 0.0
      %2412 = vmatprep.subr.mxu0 0.0
      %2413 = vmatpush1.xpose.msra.mxu0 0.0
      %2414 = vmatprep.subr.mxu0 0.0
      %2415 = vmatpush1.xpose.msra.mxu0 0.0
      %2416 = vmatprep.subr.mxu0 0.0
      %2417 = vmatpush1.xpose.msra.mxu0 0.0
      %2418 = vmatprep.subr.mxu0 0.0
      %2419 = vmatpush1.xpose.msra.mxu0 0.0
      %2420 = vmatprep.subr.mxu0 0.0
      %2421 = vmatpush1.xpose.msra.mxu0 0.0
      %2422 = vmatprep.subr.mxu0 0.0
      %2423 = vmatpush1.xpose.msra.mxu0 0.0
      %2424 = vmatprep.subr.mxu0 0.0
      %2425 = vmatpush1.xpose.msra.mxu0 0.0
      %2426 = vmatprep.subr.mxu0 0.0
      %2427 = vmatpush1.xpose.msra.mxu0 0.0
      %2428 = vmatprep.subr.mxu0 0.0
      %2429 = vmatpush1.xpose.msra.mxu0 0.0
      %2430 = vmatprep.subr.mxu0 0.0
      %2431 = vmatpush1.xpose.msra.mxu0 0.0
      %2432 = vmatprep.subr.mxu0 0.0
      %2433 = vmatpush1.xpose.msra.mxu0 0.0
      %2434 = vmatprep.mubr.f32.mxu0 0.0
      %2435 = vmatmul.mubr.f32.gmra.mrb[0].mxu0 %v2366
      %v2436 = vpop.f32.mrb[0].mxu0
      %v2437 = vadd.f32 %v939, %v2436
      %v2438 = vpop.f32.mrb[0].mxu0
      %2439 = vdwg.mxu0
      %v2440 = vsel %vm944, %v2437, -inf
      %2441 = vmax.xlane.f32.xlu0 %v2440
      %v2442 = vpop.xlane.xlu0 %2441
      %v2443 = vsub.f32 %v2437, %v2442
      %v2444 = vmul.f32 %v2443, 1.442695
      %v2445 = vpow.pop %v2444
      %v2446 = vsel %vm944, %v2445, 0.0
      %2447 = vadd.xlane.f32.xlu0 %v2446
      %v2448 = vpop.xlane.xlu0 %2447
      %v2449 = vrcp.pop %v2448
      %v2450 = vmul.f32 %v2445, %v2449
      %2451 = vrot.lane.b32.xlu0 %v2028, 48
      %v2452 = vpop.permute.xlu0 %2451
      %v2455 = vsel %vm944, %v2450, 0
      %2457 = vmatprep.subr.mxu0 0.0
      %2458 = vmatpush1.msra.mxu0 %v2452
      %2459 = vmatprep.subr.mxu0 0.0
      %2460 = vmatpush1.msra.mxu0 0.0
      %2461 = vmatprep.subr.mxu0 0.0
      %2462 = vmatpush1.msra.mxu0 0.0
      %2463 = vmatprep.subr.mxu0 0.0
      %2464 = vmatpush1.msra.mxu0 0.0
      %2465 = vmatprep.subr.mxu0 0.0
      %2466 = vmatpush1.msra.mxu0 0.0
      %2467 = vmatprep.subr.mxu0 0.0
      %2468 = vmatpush1.msra.mxu0 0.0
      %2469 = vmatprep.subr.mxu0 0.0
      %2470 = vmatpush1.msra.mxu0 0.0
      %2471 = vmatprep.subr.mxu0 0.0
      %2472 = vmatpush1.msra.mxu0 0.0
      %2473 = vmatprep.subr.mxu0 0.0
      %2474 = vmatpush1.msra.mxu0 0.0
      %2475 = vmatprep.subr.mxu0 0.0
      %2476 = vmatpush1.msra.mxu0 0.0
      %2477 = vmatprep.subr.mxu0 0.0
      %2478 = vmatpush1.msra.mxu0 0.0
      %2479 = vmatprep.subr.mxu0 0.0
      %2480 = vmatpush1.msra.mxu0 0.0
      %2481 = vmatprep.subr.mxu0 0.0
      %2482 = vmatpush1.msra.mxu0 0.0
      %2483 = vmatprep.subr.mxu0 0.0
      %2484 = vmatpush1.msra.mxu0 0.0
      %2485 = vmatprep.subr.mxu0 0.0
      %2486 = vmatpush1.msra.mxu0 0.0
      %2487 = vmatprep.subr.mxu0 0.0
      %2488 = vmatpush1.msra.mxu0 0.0
      %2489 = vmatprep.subr.mxu0 0.0
      %2490 = vmatpush1.msra.mxu0 0.0
      %2491 = vmatprep.subr.mxu0 0.0
      %2492 = vmatpush1.msra.mxu0 0.0
      %2493 = vmatprep.subr.mxu0 0.0
      %2494 = vmatpush1.msra.mxu0 0.0
      %2495 = vmatprep.subr.mxu0 0.0
      %2496 = vmatpush1.msra.mxu0 0.0
      %2497 = vmatprep.subr.mxu0 0.0
      %2498 = vmatpush1.msra.mxu0 0.0
      %2499 = vmatprep.subr.mxu0 0.0
      %2500 = vmatpush1.msra.mxu0 0.0
      %2501 = vmatprep.subr.mxu0 0.0
      %2502 = vmatpush1.msra.mxu0 0.0
      %2503 = vmatprep.subr.mxu0 0.0
      %2504 = vmatpush1.msra.mxu0 0.0
      %2505 = vmatprep.subr.mxu0 0.0
      %2506 = vmatpush1.msra.mxu0 0.0
      %2507 = vmatprep.subr.mxu0 0.0
      %2508 = vmatpush1.msra.mxu0 0.0
      %2509 = vmatprep.subr.mxu0 0.0
      %2510 = vmatpush1.msra.mxu0 0.0
      %2511 = vmatprep.subr.mxu0 0.0
      %2512 = vmatpush1.msra.mxu0 0.0
      %2513 = vmatprep.subr.mxu0 0.0
      %2514 = vmatpush1.msra.mxu0 0.0
      %2515 = vmatprep.subr.mxu0 0.0
      %2516 = vmatpush1.msra.mxu0 0.0
      %2517 = vmatprep.subr.mxu0 0.0
      %2518 = vmatpush1.msra.mxu0 0.0
      %2519 = vmatprep.subr.mxu0 0.0
      %2520 = vmatpush1.msra.mxu0 0.0
      %2521 = vmatprep.mubr.f32.mxu0 0.0
      %2522 = vmatmul.mubr.f32.gmra.mrb[0].mxu0 %v2455
      %v2523 = vpop.f32.mrb[0].mxu0
      %v2524 = vadd.f32 0.0, %v2523
      %v2525 = vpop.f32.mrb[0].mxu0
      %2526 = vdwg.mxu0
      %2527 = vrot.lane.b32.xlu0 %v2031, 104
      %v2528 = vpop.permute.xlu0 %2527
      %2529 = vrot.lane.b32.xlu0 %v2028, 72
      %v2530 = vpop.permute.xlu0 %2529
      %v2531 = vsel %vm944, %v2528, 0
      %v2533 = vsel %vm944, %v2530, 0
      %2535 = vmatprep.subr.mxu0 0.0
      %2536 = vmatpush1.xpose.msra.mxu0 %v2533
      %2537 = vmatprep.subr.mxu0 0.0
      %2538 = vmatpush1.xpose.msra.mxu0 0.0
      %2539 = vmatprep.subr.mxu0 0.0
      %2540 = vmatpush1.xpose.msra.mxu0 0.0
      %2541 = vmatprep.subr.mxu0 0.0
      %2542 = vmatpush1.xpose.msra.mxu0 0.0
      %2543 = vmatprep.subr.mxu0 0.0
      %2544 = vmatpush1.xpose.msra.mxu0 0.0
      %2545 = vmatprep.subr.mxu0 0.0
      %2546 = vmatpush1.xpose.msra.mxu0 0.0
      %2547 = vmatprep.subr.mxu0 0.0
      %2548 = vmatpush1.xpose.msra.mxu0 0.0
      %2549 = vmatprep.subr.mxu0 0.0
      %2550 = vmatpush1.xpose.msra.mxu0 0.0
      %2551 = vmatprep.subr.mxu0 0.0
      %2552 = vmatpush1.xpose.msra.mxu0 0.0
      %2553 = vmatprep.subr.mxu0 0.0
      %2554 = vmatpush1.xpose.msra.mxu0 0.0
      %2555 = vmatprep.subr.mxu0 0.0
      %2556 = vmatpush1.xpose.msra.mxu0 0.0
      %2557 = vmatprep.subr.mxu0 0.0
      %2558 = vmatpush1.xpose.msra.mxu0 0.0
      %2559 = vmatprep.subr.mxu0 0.0
      %2560 = vmatpush1.xpose.msra.mxu0 0.0
      %2561 = vmatprep.subr.mxu0 0.0
      %2562 = vmatpush1.xpose.msra.mxu0 0.0
      %2563 = vmatprep.subr.mxu0 0.0
      %2564 = vmatpush1.xpose.msra.mxu0 0.0
      %2565 = vmatprep.subr.mxu0 0.0
      %2566 = vmatpush1.xpose.msra.mxu0 0.0
      %2567 = vmatprep.subr.mxu0 0.0
      %2568 = vmatpush1.xpose.msra.mxu0 0.0
      %2569 = vmatprep.subr.mxu0 0.0
      %2570 = vmatpush1.xpose.msra.mxu0 0.0
      %2571 = vmatprep.subr.mxu0 0.0
      %2572 = vmatpush1.xpose.msra.mxu0 0.0
      %2573 = vmatprep.subr.mxu0 0.0
      %2574 = vmatpush1.xpose.msra.mxu0 0.0
      %2575 = vmatprep.subr.mxu0 0.0
      %2576 = vmatpush1.xpose.msra.mxu0 0.0
      %2577 = vmatprep.subr.mxu0 0.0
      %2578 = vmatpush1.xpose.msra.mxu0 0.0
      %2579 = vmatprep.subr.mxu0 0.0
      %2580 = vmatpush1.xpose.msra.mxu0 0.0
      %2581 = vmatprep.subr.mxu0 0.0
      %2582 = vmatpush1.xpose.msra.mxu0 0.0
      %2583 = vmatprep.subr.mxu0 0.0
      %2584 = vmatpush1.xpose.msra.mxu0 0.0
      %2585 = vmatprep.subr.mxu0 0.0
      %2586 = vmatpush1.xpose.msra.mxu0 0.0
      %2587 = vmatprep.subr.mxu0 0.0
      %2588 = vmatpush1.xpose.msra.mxu0 0.0
      %2589 = vmatprep.subr.mxu0 0.0
      %2590 = vmatpush1.xpose.msra.mxu0 0.0
      %2591 = vmatprep.subr.mxu0 0.0
      %2592 = vmatpush1.xpose.msra.mxu0 0.0
      %2593 = vmatprep.subr.mxu0 0.0
      %2594 = vmatpush1.xpose.msra.mxu0 0.0
      %2595 = vmatprep.subr.mxu0 0.0
      %2596 = vmatpush1.xpose.msra.mxu0 0.0
      %2597 = vmatprep.subr.mxu0 0.0
      %2598 = vmatpush1.xpose.msra.mxu0 0.0
      %2599 = vmatprep.mubr.f32.mxu0 0.0
      %2600 = vmatmul.mubr.f32.gmra.mrb[0].mxu0 %v2531
      %v2601 = vpop.f32.mrb[0].mxu0
      %v2602 = vadd.f32 %v939, %v2601
      %v2603 = vpop.f32.mrb[0].mxu0
      %2604 = vdwg.mxu0
      %v2605 = vsel %vm944, %v2602, -inf
      %2606 = vmax.xlane.f32.xlu0 %v2605
      %v2607 = vpop.xlane.xlu0 %2606
      %v2608 = vsub.f32 %v2602, %v2607
      %v2609 = vmul.f32 %v2608, 1.442695
      %v2610 = vpow.pop %v2609
      %v2611 = vsel %vm944, %v2610, 0.0
      %2612 = vadd.xlane.f32.xlu0 %v2611
      %v2613 = vpop.xlane.xlu0 %2612
      %v2614 = vrcp.pop %v2613
      %v2615 = vmul.f32 %v2610, %v2614
      %2616 = vrot.lane.b32.xlu0 %v2028, 40
      %v2617 = vpop.permute.xlu0 %2616
      %v2620 = vsel %vm944, %v2615, 0
      %2622 = vmatprep.subr.mxu0 0.0
      %2623 = vmatpush1.msra.mxu0 %v2617
      %2624 = vmatprep.subr.mxu0 0.0
      %2625 = vmatpush1.msra.mxu0 0.0
      %2626 = vmatprep.subr.mxu0 0.0
      %2627 = vmatpush1.msra.mxu0 0.0
      %2628 = vmatprep.subr.mxu0 0.0
      %2629 = vmatpush1.msra.mxu0 0.0
      %2630 = vmatprep.subr.mxu0 0.0
      %2631 = vmatpush1.msra.mxu0 0.0
      %2632 = vmatprep.subr.mxu0 0.0
      %2633 = vmatpush1.msra.mxu0 0.0
      %2634 = vmatprep.subr.mxu0 0.0
      %2635 = vmatpush1.msra.mxu0 0.0
      %2636 = vmatprep.subr.mxu0 0.0
      %2637 = vmatpush1.msra.mxu0 0.0
      %2638 = vmatprep.subr.mxu0 0.0
      %2639 = vmatpush1.msra.mxu0 0.0
      %2640 = vmatprep.subr.mxu0 0.0
      %2641 = vmatpush1.msra.mxu0 0.0
      %2642 = vmatprep.subr.mxu0 0.0
      %2643 = vmatpush1.msra.mxu0 0.0
      %2644 = vmatprep.subr.mxu0 0.0
      %2645 = vmatpush1.msra.mxu0 0.0
      %2646 = vmatprep.subr.mxu0 0.0
      %2647 = vmatpush1.msra.mxu0 0.0
      %2648 = vmatprep.subr.mxu0 0.0
      %2649 = vmatpush1.msra.mxu0 0.0
      %2650 = vmatprep.subr.mxu0 0.0
      %2651 = vmatpush1.msra.mxu0 0.0
      %2652 = vmatprep.subr.mxu0 0.0
      %2653 = vmatpush1.msra.mxu0 0.0
      %2654 = vmatprep.subr.mxu0 0.0
      %2655 = vmatpush1.msra.mxu0 0.0
      %2656 = vmatprep.subr.mxu0 0.0
      %2657 = vmatpush1.msra.mxu0 0.0
      %2658 = vmatprep.subr.mxu0 0.0
      %2659 = vmatpush1.msra.mxu0 0.0
      %2660 = vmatprep.subr.mxu0 0.0
      %2661 = vmatpush1.msra.mxu0 0.0
      %2662 = vmatprep.subr.mxu0 0.0
      %2663 = vmatpush1.msra.mxu0 0.0
      %2664 = vmatprep.subr.mxu0 0.0
      %2665 = vmatpush1.msra.mxu0 0.0
      %2666 = vmatprep.subr.mxu0 0.0
      %2667 = vmatpush1.msra.mxu0 0.0
      %2668 = vmatprep.subr.mxu0 0.0
      %2669 = vmatpush1.msra.mxu0 0.0
      %2670 = vmatprep.subr.mxu0 0.0
      %2671 = vmatpush1.msra.mxu0 0.0
      %2672 = vmatprep.subr.mxu0 0.0
      %2673 = vmatpush1.msra.mxu0 0.0
      %2674 = vmatprep.subr.mxu0 0.0
      %2675 = vmatpush1.msra.mxu0 0.0
      %2676 = vmatprep.subr.mxu0 0.0
      %2677 = vmatpush1.msra.mxu0 0.0
      %2678 = vmatprep.subr.mxu0 0.0
      %2679 = vmatpush1.msra.mxu0 0.0
      %2680 = vmatprep.subr.mxu0 0.0
      %2681 = vmatpush1.msra.mxu0 0.0
      %2682 = vmatprep.subr.mxu0 0.0
      %2683 = vmatpush1.msra.mxu0 0.0
      %2684 = vmatprep.subr.mxu0 0.0
      %2685 = vmatpush1.msra.mxu0 0.0
      %2686 = vmatprep.mubr.f32.mxu0 0.0
      %2687 = vmatmul.mubr.f32.gmra.mrb[0].mxu0 %v2620
      %v2688 = vpop.f32.mrb[0].mxu0
      %v2689 = vadd.f32 0.0, %v2688
      %v2690 = vpop.f32.mrb[0].mxu0
      %2691 = vdwg.mxu0
      %2693 = vrot.lane.b32.xlu0 %v2359, 8
      %v2694 = vpop.permute.xlu0 %2693
      %2697 = vrot.lane.b32.xlu0 %v2524, 16
      %v2698 = vpop.permute.xlu0 %2697
      %2701 = vrot.lane.b32.xlu0 %v2689, 24
      %v2702 = vpop.permute.xlu0 %2701
      %v2704 = vsel %vm944, %v2194, %v2694
      %v2705 = vsel %vm1615, %v2704, %v2698
      %v2706 = vsel %vm1617, %v2705, %v2702
      %s2707 = scalar_lea.vmem %s7, 32
      %v2708 = vld [vmem:[%s2707] sm:$0xff]
      %v2709 = vld [vmem:[%s2707 + $0x8] sm:$0xff]
      %v2710 = vld [vmem:[%s2707 + $0x10] sm:$0xff]
      %v2711 = vld [vmem:[%s2707 + $0x18] sm:$0xff]
      %s2712 = scalar_lea.vmem %s8, 1
      %v2713 = vld [vmem:[%s2712] sm:$0x1]
      %v2715 = vlaneseq
      %v2716 = vshrl.u32 %v2715, 7
      %v2717 = vsub.s32 0, %v2716
      %v2718 = vrot.slane %v2713, %v2717
      %v2721 = vsel %vm820, %v2706, 0
      %2723 = vmatprep.subr.mxu0 0.0
      %2724 = vmatpush1.msra.mxu0 %v2708
      %2725 = vmatprep.subr.mxu0 0.0
      %2726 = vmatpush1.msra.mxu0 %v2709
      %2727 = vmatprep.subr.mxu0 0.0
      %2728 = vmatpush1.msra.mxu0 %v2710
      %2729 = vmatprep.subr.mxu0 0.0
      %2730 = vmatpush1.msra.mxu0 %v2711
      %2731 = vmatprep.subr.mxu0 0.0
      %2732 = vmatpush1.msra.mxu0 0.0
      %2733 = vmatprep.subr.mxu0 0.0
      %2734 = vmatpush1.msra.mxu0 0.0
      %2735 = vmatprep.subr.mxu0 0.0
      %2736 = vmatpush1.msra.mxu0 0.0
      %2737 = vmatprep.subr.mxu0 0.0
      %2738 = vmatpush1.msra.mxu0 0.0
      %2739 = vmatprep.subr.mxu0 0.0
      %2740 = vmatpush1.msra.mxu0 0.0
      %2741 = vmatprep.subr.mxu0 0.0
      %2742 = vmatpush1.msra.mxu0 0.0
      %2743 = vmatprep.subr.mxu0 0.0
      %2744 = vmatpush1.msra.mxu0 0.0
      %2745 = vmatprep.subr.mxu0 0.0
      %2746 = vmatpush1.msra.mxu0 0.0
      %2747 = vmatprep.subr.mxu0 0.0
      %2748 = vmatpush1.msra.mxu0 0.0
      %2749 = vmatprep.subr.mxu0 0.0
      %2750 = vmatpush1.msra.mxu0 0.0
      %2751 = vmatprep.subr.mxu0 0.0
      %2752 = vmatpush1.msra.mxu0 0.0
      %2753 = vmatprep.subr.mxu0 0.0
      %2754 = vmatpush1.msra.mxu0 0.0
      %2755 = vmatprep.subr.mxu0 0.0
      %2756 = vmatpush1.msra.mxu0 0.0
      %2757 = vmatprep.subr.mxu0 0.0
      %2758 = vmatpush1.msra.mxu0 0.0
      %2759 = vmatprep.subr.mxu0 0.0
      %2760 = vmatpush1.msra.mxu0 0.0
      %2761 = vmatprep.subr.mxu0 0.0
      %2762 = vmatpush1.msra.mxu0 0.0
      %2763 = vmatprep.subr.mxu0 0.0
      %2764 = vmatpush1.msra.mxu0 0.0
      %2765 = vmatprep.subr.mxu0 0.0
      %2766 = vmatpush1.msra.mxu0 0.0
      %2767 = vmatprep.subr.mxu0 0.0
      %2768 = vmatpush1.msra.mxu0 0.0
      %2769 = vmatprep.subr.mxu0 0.0
      %2770 = vmatpush1.msra.mxu0 0.0
      %2771 = vmatprep.subr.mxu0 0.0
      %2772 = vmatpush1.msra.mxu0 0.0
      %2773 = vmatprep.subr.mxu0 0.0
      %2774 = vmatpush1.msra.mxu0 0.0
      %2775 = vmatprep.subr.mxu0 0.0
      %2776 = vmatpush1.msra.mxu0 0.0
      %2777 = vmatprep.subr.mxu0 0.0
      %2778 = vmatpush1.msra.mxu0 0.0
      %2779 = vmatprep.subr.mxu0 0.0
      %2780 = vmatpush1.msra.mxu0 0.0
      %2781 = vmatprep.subr.mxu0 0.0
      %2782 = vmatpush1.msra.mxu0 0.0
      %2783 = vmatprep.subr.mxu0 0.0
      %2784 = vmatpush1.msra.mxu0 0.0
      %2785 = vmatprep.subr.mxu0 0.0
      %2786 = vmatpush1.msra.mxu0 0.0
      %2787 = vmatprep.mubr.f32.mxu0 0.0
      %2788 = vmatmul.mubr.f32.gmra.mrb[0].mxu0 %v2721
      %v2789 = vpop.f32.mrb[0].mxu0
      %v2790 = vadd.f32 %v2718, %v2789
      %v2791 = vpop.f32.mrb[0].mxu0
      %2792 = vdwg.mxu0
      %v2793 = vadd.f32 %v2790, %v1944
      %s2794 = scalar_lea.vmem %s9, 1
      %v2795 = vld [vmem:[%s2794] sm:$0x1]
      %s2796 = scalar_lea.vmem %s10, 1
      %v2797 = vld [vmem:[%s2796] sm:$0x1]
      %v2798 = vsel %vm820, %v2793, 0.0
      %2799 = vadd.xlane.f32.xlu0 %v2798
      %v2800 = vpop.xlane.xlu0 %2799
      %v2801 = vmul.f32 %v2800, %v824
      %v2802 = vsub.f32 %v2793, %v2801
      %v2803 = vmul.f32 %v2802, %v2802
      %v2804 = vsel %vm820, %v2803, 0.0
      %2805 = vadd.xlane.f32.xlu0 %v2804
      %v2806 = vpop.xlane.xlu0 %2805
      %v2807 = vmul.f32 %v2806, %v824
      %v2808 = vadd.f32 %v2807, 1e-12
      %v2809 = vrsqrt.pop %v2808
      %v2810 = vmul.f32 %v2802, %v2809
      %v2812 = vlaneseq
      %v2813 = vshrl.u32 %v2812, 7
      %v2814 = vsub.s32 0, %v2813
      %v2815 = vrot.slane %v2795, %v2814
      %v2817 = vmul.f32 %v2810, %v2815
      %v2819 = vlaneseq
      %v2820 = vshrl.u32 %v2819, 7
      %v2821 = vsub.s32 0, %v2820
      %v2822 = vrot.slane %v2797, %v2821
      %v2824 = vadd.f32 %v2817, %v2822
      %s2825 = scalar_lea.vmem %s11, 32
      %v2826 = vld [vmem:[%s2825] sm:$0xff]
      %v2827 = vld [vmem:[%s2825 + $0x8] sm:$0xff]
      %v2828 = vld [vmem:[%s2825 + $0x10] sm:$0xff]
      %v2829 = vld [vmem:[%s2825 + $0x18] sm:$0xff]
      %s2830 = scalar_lea.vmem %s12, 1
      %v2831 = vld [vmem:[%s2830] sm:$0x1]
      %v2833 = vlaneseq
      %v2834 = vshrl.u32 %v2833, 7
      %v2835 = vsub.s32 0, %v2834
      %v2836 = vrot.slane %v2831, %v2835
      %v2839 = vsel %vm820, %v2824, 0
      %2841 = vmatprep.subr.mxu0 0.0
      %2842 = vmatpush1.msra.mxu0 %v2826
      %2843 = vmatprep.subr.mxu0 0.0
      %2844 = vmatpush1.msra.mxu0 %v2827
      %2845 = vmatprep.subr.mxu0 0.0
      %2846 = vmatpush1.msra.mxu0 %v2828
      %2847 = vmatprep.subr.mxu0 0.0
      %2848 = vmatpush1.msra.mxu0 %v2829
      %2849 = vmatprep.subr.mxu0 0.0
      %2850 = vmatpush1.msra.mxu0 0.0
      %2851 = vmatprep.subr.mxu0 0.0
      %2852 = vmatpush1.msra.mxu0 0.0
      %2853 = vmatprep.subr.mxu0 0.0
      %2854 = vmatpush1.msra.mxu0 0.0
      %2855 = vmatprep.subr.mxu0 0.0
      %2856 = vmatpush1.msra.mxu0 0.0
      %2857 = vmatprep.subr.mxu0 0.0
      %2858 = vmatpush1.msra.mxu0 0.0
      %2859 = vmatprep.subr.mxu0 0.0
      %2860 = vmatpush1.msra.mxu0 0.0
      %2861 = vmatprep.subr.mxu0 0.0
      %2862 = vmatpush1.msra.mxu0 0.0
      %2863 = vmatprep.subr.mxu0 0.0
      %2864 = vmatpush1.msra.mxu0 0.0
      %2865 = vmatprep.subr.mxu0 0.0
      %2866 = vmatpush1.msra.mxu0 0.0
      %2867 = vmatprep.subr.mxu0 0.0
      %2868 = vmatpush1.msra.mxu0 0.0
      %2869 = vmatprep.subr.mxu0 0.0
      %2870 = vmatpush1.msra.mxu0 0.0
      %2871 = vmatprep.subr.mxu0 0.0
      %2872 = vmatpush1.msra.mxu0 0.0
      %2873 = vmatprep.subr.mxu0 0.0
      %2874 = vmatpush1.msra.mxu0 0.0
      %2875 = vmatprep.subr.mxu0 0.0
      %2876 = vmatpush1.msra.mxu0 0.0
      %2877 = vmatprep.subr.mxu0 0.0
      %2878 = vmatpush1.msra.mxu0 0.0
      %2879 = vmatprep.subr.mxu0 0.0
      %2880 = vmatpush1.msra.mxu0 0.0
      %2881 = vmatprep.subr.mxu0 0.0
      %2882 = vmatpush1.msra.mxu0 0.0
      %2883 = vmatprep.subr.mxu0 0.0
      %2884 = vmatpush1.msra.mxu0 0.0
      %2885 = vmatprep.subr.mxu0 0.0
      %2886 = vmatpush1.msra.mxu0 0.0
      %2887 = vmatprep.subr.mxu0 0.0
      %2888 = vmatpush1.msra.mxu0 0.0
      %2889 = vmatprep.subr.mxu0 0.0
      %2890 = vmatpush1.msra.mxu0 0.0
      %2891 = vmatprep.subr.mxu0 0.0
      %2892 = vmatpush1.msra.mxu0 0.0
      %2893 = vmatprep.subr.mxu0 0.0
      %2894 = vmatpush1.msra.mxu0 0.0
      %2895 = vmatprep.subr.mxu0 0.0
      %2896 = vmatpush1.msra.mxu0 0.0
      %2897 = vmatprep.subr.mxu0 0.0
      %2898 = vmatpush1.msra.mxu0 0.0
      %2899 = vmatprep.subr.mxu0 0.0
      %2900 = vmatpush1.msra.mxu0 0.0
      %2901 = vmatprep.subr.mxu0 0.0
      %2902 = vmatpush1.msra.mxu0 0.0
      %2903 = vmatprep.subr.mxu0 0.0
      %2904 = vmatpush1.msra.mxu0 0.0
      %2905 = vmatprep.mubr.f32.mxu0 0.0
      %2906 = vmatmul.mubr.f32.gmra.mrb[0].mxu0 %v2839
      %v2907 = vpop.f32.mrb[0].mxu0
      %v2908 = vadd.f32 %v2836, %v2907
      %v2909 = vpop.f32.mrb[0].mxu0
      %2910 = vdwg.mxu0
      %v2911 = vmul.f32 %v2908, 0.5
      %v2912 = vmul.f32 %v2908, 0.044715
      %v2913 = vmul.f32 %v2912, %v2908
      %v2914 = vmul.f32 %v2913, %v2908
      %v2915 = vadd.f32 %v2908, %v2914
      %v2916 = vmul.f32 %v2915, 0.7978846
      %v2917 = vtanh.pop %v2916
      %v2918 = vadd.f32 %v2917, 1.0
      %v2919 = vmul.f32 %v2911, %v2918
      %s2920 = scalar_lea.vmem %s13, 64
      %v2921 = vld [vmem:[%s2920] sm:$0xff]
      %v2922 = vld [vmem:[%s2920 + $0x8] sm:$0xff]
      %v2923 = vld [vmem:[%s2920 + $0x10] sm:$0xff]
      %v2924 = vld [vmem:[%s2920 + $0x18] sm:$0xff]
      %v2925 = vld [vmem:[%s2920 + $0x20] sm:$0xff]
      %v2926 = vld [vmem:[%s2920 + $0x28] sm:$0xff]
      %v2927 = vld [vmem:[%s2920 + $0x30] sm:$0xff]
      %v2928 = vld [vmem:[%s2920 + $0x38] sm:$0xff]
      %s2929 = scalar_lea.vmem %s14, 1
      %v2930 = vld [vmem:[%s2929] sm:$0x1]
      %v2932 = vlaneseq
      %v2933 = vshrl.u32 %v2932, 7
      %v2934 = vsub.s32 0, %v2933
      %v2935 = vrot.slane %v2930, %v2934
      %v2938 = vsel %vm1841, %v2919, 0
      %2940 = vmatprep.subr.mxu0 0.0
      %2941 = vmatpush1.msra.mxu0 %v2921
      %2942 = vmatprep.subr.mxu0 0.0
      %2943 = vmatpush1.msra.mxu0 %v2922
      %2944 = vmatprep.subr.mxu0 0.0
      %2945 = vmatpush1.msra.mxu0 %v2923
      %2946 = vmatprep.subr.mxu0 0.0
      %2947 = vmatpush1.msra.mxu0 %v2924
      %2948 = vmatprep.subr.mxu0 0.0
      %2949 = vmatpush1.msra.mxu0 %v2925
      %2950 = vmatprep.subr.mxu0 0.0
      %2951 = vmatpush1.msra.mxu0 %v2926
      %2952 = vmatprep.subr.mxu0 0.0
      %2953 = vmatpush1.msra.mxu0 %v2927
      %2954 = vmatprep.subr.mxu0 0.0
      %2955 = vmatpush1.msra.mxu0 %v2928
      %2956 = vmatprep.subr.mxu0 0.0
      %2957 = vmatpush1.msra.mxu0 0.0
      %2958 = vmatprep.subr.mxu0 0.0
      %2959 = vmatpush1.msra.mxu0 0.0
      %2960 = vmatprep.subr.mxu0 0.0
      %2961 = vmatpush1.msra.mxu0 0.0
      %2962 = vmatprep.subr.mxu0 0.0
      %2963 = vmatpush1.msra.mxu0 0.0
      %2964 = vmatprep.subr.mxu0 0.0
      %2965 = vmatpush1.msra.mxu0 0.0
      %2966 = vmatprep.subr.mxu0 0.0
      %2967 = vmatpush1.msra.mxu0 0.0
      %2968 = vmatprep.subr.mxu0 0.0
      %2969 = vmatpush1.msra.mxu0 0.0
      %2970 = vmatprep.subr.mxu0 0.0
      %2971 = vmatpush1.msra.mxu0 0.0
      %2972 = vmatprep.subr.mxu0 0.0
      %2973 = vmatpush1.msra.mxu0 0.0
      %2974 = vmatprep.subr.mxu0 0.0
      %2975 = vmatpush1.msra.mxu0 0.0
      %2976 = vmatprep.subr.mxu0 0.0
      %2977 = vmatpush1.msra.mxu0 0.0
      %2978 = vmatprep.subr.mxu0 0.0
      %2979 = vmatpush1.msra.mxu0 0.0
      %2980 = vmatprep.subr.mxu0 0.0
      %2981 = vmatpush1.msra.mxu0 0.0
      %2982 = vmatprep.subr.mxu0 0.0
      %2983 = vmatpush1.msra.mxu0 0.0
      %2984 = vmatprep.subr.mxu0 0.0
      %2985 = vmatpush1.msra.mxu0 0.0
      %2986 = vmatprep.subr.mxu0 0.0
      %2987 = vmatpush1.msra.mxu0 0.0
      %2988 = vmatprep.subr.mxu0 0.0
      %2989 = vmatpush1.msra.mxu0 0.0
      %2990 = vmatprep.subr.mxu0 0.0
      %2991 = vmatpush1.msra.mxu0 0.0
      %2992 = vmatprep.subr.mxu0 0.0
      %2993 = vmatpush1.msra.mxu0 0.0
      %2994 = vmatprep.subr.mxu0 0.0
      %2995 = vmatpush1.msra.mxu0 0.0
      %2996 = vmatprep.subr.mxu0 0.0
      %2997 = vmatpush1.msra.mxu0 0.0
      %2998 = vmatprep.subr.mxu0 0.0
      %2999 = vmatpush1.msra.mxu0 0.0
      %3000 = vmatprep.subr.mxu0 0.0
      %3001 = vmatpush1.msra.mxu0 0.0
      %3002 = vmatprep.subr.mxu0 0.0
      %3003 = vmatpush1.msra.mxu0 0.0
      %3004 = vmatprep.mubr.f32.mxu0 0.0
      %3005 = vmatmul.mubr.f32.gmra.mrb[0].mxu0 %v2938
      %v3006 = vpop.f32.mrb[0].mxu0
      %v3007 = vadd.f32 %v2935, %v3006
      %v3008 = vpop.f32.mrb[0].mxu0
      %3009 = vdwg.mxu0
      %v3010 = vadd.f32 %v3007, %v2824
      %s3011 = scalar_lea.vmem %s15, 1
      %v3012 = vld [vmem:[%s3011] sm:$0x1]
      %s3013 = scalar_lea.vmem %s16, 1
      %v3014 = vld [vmem:[%s3013] sm:$0x1]
      %v3015 = vsel %vm820, %v3010, 0.0
      %3016 = vadd.xlane.f32.xlu0 %v3015
      %v3017 = vpop.xlane.xlu0 %3016
      %v3018 = vmul.f32 %v3017, %v824
      %v3019 = vsub.f32 %v3010, %v3018
      %v3020 = vmul.f32 %v3019, %v3019
      %v3021 = vsel %vm820, %v3020, 0.0
      %3022 = vadd.xlane.f32.xlu0 %v3021
      %v3023 = vpop.xlane.xlu0 %3022
      %v3024 = vmul.f32 %v3023, %v824
      %v3025 = vadd.f32 %v3024, 1e-12
      %v3026 = vrsqrt.pop %v3025
      %v3027 = vmul.f32 %v3019, %v3026
      %v3029 = vlaneseq
      %v3030 = vshrl.u32 %v3029, 7
      %v3031 = vsub.s32 0, %v3030
      %v3032 = vrot.slane %v3012, %v3031
      %v3034 = vmul.f32 %v3027, %v3032
      %v3036 = vlaneseq
      %v3037 = vshrl.u32 %v3036, 7
      %v3038 = vsub.s32 0, %v3037
      %v3039 = vrot.slane %v3014, %v3038
      %v3041 = vadd.f32 %v3034, %v3039
      %v3042 = vld [vmem:[%s17] sm:$0xff]
      %v3043 = vld [vmem:[%s17 + $0x8] sm:$0xff]
      %v3044 = vld [vmem:[%s17 + $0x10] sm:$0xff]
      %v3045 = vld [vmem:[%s17 + $0x18] sm:$0xff]
      %v3046 = vld [vmem:[%s20] sm:$0x1]
      %v3048 = vlaneseq
      %v3049 = vshrl.u32 %v3048, 7
      %v3050 = vsub.s32 0, %v3049
      %v3051 = vrot.slane %v3046, %v3050
      %v3054 = vsel %vm820, %v3041, 0
      %3056 = vmatprep.subr.mxu0 0.0
      %3057 = vmatpush1.msra.mxu0 %v3042
      %3058 = vmatprep.subr.mxu0 0.0
      %3059 = vmatpush1.msra.mxu0 %v3043
      %3060 = vmatprep.subr.mxu0 0.0
      %3061 = vmatpush1.msra.mxu0 %v3044
      %3062 = vmatprep.subr.mxu0 0.0
      %3063 = vmatpush1.msra.mxu0 %v3045
      %3064 = vmatprep.subr.mxu0 0.0
      %3065 = vmatpush1.msra.mxu0 0.0
      %3066 = vmatprep.subr.mxu0 0.0
      %3067 = vmatpush1.msra.mxu0 0.0
      %3068 = vmatprep.subr.mxu0 0.0
      %3069 = vmatpush1.msra.mxu0 0.0
      %3070 = vmatprep.subr.mxu0 0.0
      %3071 = vmatpush1.msra.mxu0 0.0
      %3072 = vmatprep.subr.mxu0 0.0
      %3073 = vmatpush1.msra.mxu0 0.0
      %3074 = vmatprep.subr.mxu0 0.0
      %3075 = vmatpush1.msra.mxu0 0.0
      %3076 = vmatprep.subr.mxu0 0.0
      %3077 = vmatpush1.msra.mxu0 0.0
      %3078 = vmatprep.subr.mxu0 0.0
      %3079 = vmatpush1.msra.mxu0 0.0
      %3080 = vmatprep.subr.mxu0 0.0
      %3081 = vmatpush1.msra.mxu0 0.0
      %3082 = vmatprep.subr.mxu0 0.0
      %3083 = vmatpush1.msra.mxu0 0.0
      %3084 = vmatprep.subr.mxu0 0.0
      %3085 = vmatpush1.msra.mxu0 0.0
      %3086 = vmatprep.subr.mxu0 0.0
      %3087 = vmatpush1.msra.mxu0 0.0
      %3088 = vmatprep.subr.mxu0 0.0
      %3089 = vmatpush1.msra.mxu0 0.0
      %3090 = vmatprep.subr.mxu0 0.0
      %3091 = vmatpush1.msra.mxu0 0.0
      %3092 = vmatprep.subr.mxu0 0.0
      %3093 = vmatpush1.msra.mxu0 0.0
      %3094 = vmatprep.subr.mxu0 0.0
      %3095 = vmatpush1.msra.mxu0 0.0
      %3096 = vmatprep.subr.mxu0 0.0
      %3097 = vmatpush1.msra.mxu0 0.0
      %3098 = vmatprep.subr.mxu0 0.0
      %3099 = vmatpush1.msra.mxu0 0.0
      %3100 = vmatprep.subr.mxu0 0.0
      %3101 = vmatpush1.msra.mxu0 0.0
      %3102 = vmatprep.subr.mxu0 0.0
      %3103 = vmatpush1.msra.mxu0 0.0
      %3104 = vmatprep.subr.mxu0 0.0
      %3105 = vmatpush1.msra.mxu0 0.0
      %3106 = vmatprep.subr.mxu0 0.0
      %3107 = vmatpush1.msra.mxu0 0.0
      %3108 = vmatprep.subr.mxu0 0.0
      %3109 = vmatpush1.msra.mxu0 0.0
      %3110 = vmatprep.subr.mxu0 0.0
      %3111 = vmatpush1.msra.mxu0 0.0
      %3112 = vmatprep.subr.mxu0 0.0
      %3113 = vmatpush1.msra.mxu0 0.0
      %3114 = vmatprep.subr.mxu0 0.0
      %3115 = vmatpush1.msra.mxu0 0.0
      %3116 = vmatprep.subr.mxu0 0.0
      %3117 = vmatpush1.msra.mxu0 0.0
      %3118 = vmatprep.subr.mxu0 0.0
      %3119 = vmatpush1.msra.mxu0 0.0
      %3120 = vmatprep.mubr.f32.mxu0 0.0
      %3121 = vmatmul.mubr.f32.gmra.mrb[0].mxu0 %v3054
      %v3122 = vpop.f32.mrb[0].mxu0
      %v3123 = vadd.f32 %v3051, %v3122
      %v3124 = vpop.f32.mrb[0].mxu0
      %3125 = vdwg.mxu0
      %3126 = vst [vmem:[#allocation2] sm:$0xff] %v3123
      %v3127 = vld [vmem:[%s18] sm:$0xff]
      %v3128 = vld [vmem:[%s18 + $0x8] sm:$0xff]
      %v3129 = vld [vmem:[%s19] sm:$0xff]
      %v3130 = vld [vmem:[%s19 + $0x8] sm:$0xff]
      loop: start=0, step=1, limit=8
      $region121: #{forward.1} parent=119 // loop_pre_header
        _
      $region122: #{forward.1} parent=119 // loop_header
        %s3132 = sphi 0, %s3136
        %p3133 = scmp.ge.s32.totalorder %s3132, 8
        %v3137 = vphi 0.0, %v3241
        %v3138 = vphi 0.0, %v3235
        %v3139 = vphi 0.0, %v3354
        %v3140 = vphi 0.0, %v3348
      $region123: #{forward.1} parent=119 // loop_header_branch
        %3135 = sbr.rel (%p3133) target = $region127
      $region124: #{forward.1} parent=119 // loop_body
        %s3141 = scalar_lea.vmem [#allocation2], %s3132
        %v3142 = vld [vmem:[%s3141] sm:$0x1]
        %3144 = vrot.lane.b32.xlu0 %v3137, 80
        %v3145 = vpop.permute.xlu0 %3144
        %v3146 = vsel %vm1615, %v3145, 0
        %3148 = vmatprep.subr.mxu0 0.0
        %3149 = vmatpush1.msra.mxu0 %v3127
        %3150 = vmatprep.subr.mxu0 0.0
        %3151 = vmatpush1.msra.mxu0 %v3128
        %3152 = vmatprep.subr.mxu0 0.0
        %3153 = vmatpush1.msra.mxu0 0.0
        %3154 = vmatprep.subr.mxu0 0.0
        %3155 = vmatpush1.msra.mxu0 0.0
        %3156 = vmatprep.subr.mxu0 0.0
        %3157 = vmatpush1.msra.mxu0 0.0
        %3158 = vmatprep.subr.mxu0 0.0
        %3159 = vmatpush1.msra.mxu0 0.0
        %3160 = vmatprep.subr.mxu0 0.0
        %3161 = vmatpush1.msra.mxu0 0.0
        %3162 = vmatprep.subr.mxu0 0.0
        %3163 = vmatpush1.msra.mxu0 0.0
        %3164 = vmatprep.subr.mxu0 0.0
        %3165 = vmatpush1.msra.mxu0 0.0
        %3166 = vmatprep.subr.mxu0 0.0
        %3167 = vmatpush1.msra.mxu0 0.0
        %3168 = vmatprep.subr.mxu0 0.0
        %3169 = vmatpush1.msra.mxu0 0.0
        %3170 = vmatprep.subr.mxu0 0.0
        %3171 = vmatpush1.msra.mxu0 0.0
        %3172 = vmatprep.subr.mxu0 0.0
        %3173 = vmatpush1.msra.mxu0 0.0
        %3174 = vmatprep.subr.mxu0 0.0
        %3175 = vmatpush1.msra.mxu0 0.0
        %3176 = vmatprep.subr.mxu0 0.0
        %3177 = vmatpush1.msra.mxu0 0.0
        %3178 = vmatprep.subr.mxu0 0.0
        %3179 = vmatpush1.msra.mxu0 0.0
        %3180 = vmatprep.subr.mxu0 0.0
        %3181 = vmatpush1.msra.mxu0 0.0
        %3182 = vmatprep.subr.mxu0 0.0
        %3183 = vmatpush1.msra.mxu0 0.0
        %3184 = vmatprep.subr.mxu0 0.0
        %3185 = vmatpush1.msra.mxu0 0.0
        %3186 = vmatprep.subr.mxu0 0.0
        %3187 = vmatpush1.msra.mxu0 0.0
        %3188 = vmatprep.subr.mxu0 0.0
        %3189 = vmatpush1.msra.mxu0 0.0
        %3190 = vmatprep.subr.mxu0 0.0
        %3191 = vmatpush1.msra.mxu0 0.0
        %3192 = vmatprep.subr.mxu0 0.0
        %3193 = vmatpush1.msra.mxu0 0.0
        %3194 = vmatprep.subr.mxu0 0.0
        %3195 = vmatpush1.msra.mxu0 0.0
        %3196 = vmatprep.subr.mxu0 0.0
        %3197 = vmatpush1.msra.mxu0 0.0
        %3198 = vmatprep.subr.mxu0 0.0
        %3199 = vmatpush1.msra.mxu0 0.0
        %3200 = vmatprep.subr.mxu0 0.0
        %3201 = vmatpush1.msra.mxu0 0.0
        %3202 = vmatprep.subr.mxu0 0.0
        %3203 = vmatpush1.msra.mxu0 0.0
        %3204 = vmatprep.subr.mxu0 0.0
        %3205 = vmatpush1.msra.mxu0 0.0
        %3206 = vmatprep.subr.mxu0 0.0
        %3207 = vmatpush1.msra.mxu0 0.0
        %3208 = vmatprep.subr.mxu0 0.0
        %3209 = vmatpush1.msra.mxu0 0.0
        %3210 = vmatprep.subr.mxu0 0.0
        %3211 = vmatpush1.msra.mxu0 0.0
        %3212 = vmatprep.mubr.f32.mxu0 0.0
        %3213 = vmatmul.mubr.f32.gmra.mrb[0].mxu0 %v3146
        %v3214 = vpop.f32.mrb[0].mxu0
        %v3215 = vadd.f32 0.0, %v3214
        %v3216 = vpop.f32.mrb[0].mxu0
        %3217 = vdwg.mxu0
        %v3218 = vadd.f32 %v3142, %v3215
        %v3219 = vsub.f32 0.0, %v3218
        %v3220 = vmul.f32 %v3219, 1.442695
        %v3221 = vpow.pop %v3220
        %v3222 = vadd.f32 %v3221, 1.0
        %v3223 = vrcp.pop %v3222
        %v3224 = vtanh.pop %v3218
        %v3225 = vmul.f32 %v3223, %v3138
        %3227 = vrot.lane.b32.xlu0 %v3224, 96
        %v3228 = vpop.permute.xlu0 %3227
        %v3230 = vmul.f32 %v3223, %v3228
        %3232 = vrot.lane.b32.xlu0 %v3230, 16
        %v3233 = vpop.permute.xlu0 %3232
        %v3235 = vadd.f32 %v3225, %v3233
        %v3236 = vtanh.pop %v3235
        %3238 = vrot.lane.b32.xlu0 %v3236, 32
        %v3239 = vpop.permute.xlu0 %3238
        %v3241 = vmul.f32 %v3223, %v3239
        %3243 = vrot.lane.b32.xlu0 %v3241, 80
        %v3244 = vpop.permute.xlu0 %3243
        %s3246 = scalar_lea.vmem [#allocation4], %s3132
        %vm3247 = vcmask 122880
        %3248 = vst.msk [vmem:[%s3246] sm:$0x1] %vm3247, %v3244
        %s3249 = ssub.s32 7, %s3132
        %s3250 = scalar_lea.vmem [#allocation2], %s3249
        %v3251 = vld [vmem:[%s3250] sm:$0x1]
        %3253 = vrot.lane.b32.xlu0 %v3139, 16
        %v3254 = vpop.permute.xlu0 %3253
        %v3255 = vsel %vm1615, %v3254, 0
        %3257 = vmatprep.subr.mxu0 0.0
        %3258 = vmatpush1.msra.mxu0 %v3129
        %3259 = vmatprep.subr.mxu0 0.0
        %3260 = vmatpush1.msra.mxu0 %v3130
        %3261 = vmatprep.subr.mxu0 0.0
        %3262 = vmatpush1.msra.mxu0 0.0
        %3263 = vmatprep.subr.mxu0 0.0
        %3264 = vmatpush1.msra.mxu0 0.0
        %3265 = vmatprep.subr.mxu0 0.0
        %3266 = vmatpush1.msra.mxu0 0.0
        %3267 = vmatprep.subr.mxu0 0.0
        %3268 = vmatpush1.msra.mxu0 0.0
        %3269 = vmatprep.subr.mxu0 0.0
        %3270 = vmatpush1.msra.mxu0 0.0
        %3271 = vmatprep.subr.mxu0 0.0
        %3272 = vmatpush1.msra.mxu0 0.0
        %3273 = vmatprep.subr.mxu0 0.0
        %3274 = vmatpush1.msra.mxu0 0.0
        %3275 = vmatprep.subr.mxu0 0.0
        %3276 = vmatpush1.msra.mxu0 0.0
        %3277 = vmatprep.subr.mxu0 0.0
        %3278 = vmatpush1.msra.mxu0 0.0
        %3279 = vmatprep.subr.mxu0 0.0
        %3280 = vmatpush1.msra.mxu0 0.0
        %3281 = vmatprep.subr.mxu0 0.0
        %3282 = vmatpush1.msra.mxu0 0.0
        %3283 = vmatprep.subr.mxu0 0.0
        %3284 = vmatpush1.msra.mxu0 0.0
        %3285 = vmatprep.subr.mxu0 0.0
        %3286 = vmatpush1.msra.mxu0 0.0
        %3287 = vmatprep.subr.mxu0 0.0
        %3288 = vmatpush1.msra.mxu0 0.0
        %3289 = vmatprep.subr.mxu0 0.0
        %3290 = vmatpush1.msra.mxu0 0.0
        %3291 = vmatprep.subr.mxu0 0.0
        %3292 = vmatpush1.msra.mxu0 0.0
        %3293 = vmatprep.subr.mxu0 0.0
        %3294 = vmatpush1.msra.mxu0 0.0
        %3295 = vmatprep.subr.mxu0 0.0
        %3296 = vmatpush1.msra.mxu0 0.0
        %3297 = vmatprep.subr.mxu0 0.0
        %3298 = vmatpush1.msra.mxu0 0.0
        %3299 = vmatprep.subr.mxu0 0.0
        %3300 = vmatpush1.msra.mxu0 0.0
        %3301 = vmatprep.subr.mxu0 0.0
        %3302 = vmatpush1.msra.mxu0 0.0
        %3303 = vmatprep.subr.mxu0 0.0
        %3304 = vmatpush1.msra.mxu0 0.0
        %3305 = vmatprep.subr.mxu0 0.0
        %3306 = vmatpush1.msra.mxu0 0.0
        %3307 = vmatprep.subr.mxu0 0.0
        %3308 = vmatpush1.msra.mxu0 0.0
        %3309 = vmatprep.subr.mxu0 0.0
        %3310 = vmatpush1.msra.mxu0 0.0
        %3311 = vmatprep.subr.mxu0 0.0
        %3312 = vmatpush1.msra.mxu0 0.0
        %3313 = vmatprep.subr.mxu0 0.0
        %3314 = vmatpush1.msra.mxu0 0.0
        %3315 = vmatprep.subr.mxu0 0.0
        %3316 = vmatpush1.msra.mxu0 0.0
        %3317 = vmatprep.subr.mxu0 0.0
        %3318 = vmatpush1.msra.mxu0 0.0
        %3319 = vmatprep.subr.mxu0 0.0
        %3320 = vmatpush1.msra.mxu0 0.0
        %3321 = vmatprep.mubr.f32.mxu0 0.0
        %3322 = vmatmul.mubr.f32.gmra.mrb[0].mxu0 %v3255
        %v3323 = vpop.f32.mrb[0].mxu0
        %v3324 = vadd.f32 0.0, %v3323
        %v3325 = vpop.f32.mrb[0].mxu0
        %3326 = vdwg.mxu0
        %3328 = vrot.lane.b32.xlu0 %v3324, 64
        %v3329 = vpop.permute.xlu0 %3328
        %v3331 = vadd.f32 %v3251, %v3329
        %v3332 = vsub.f32 0.0, %v3331
        %v3333 = vmul.f32 %v3332, 1.442695
        %v3334 = vpow.pop %v3333
        %v3335 = vadd.f32 %v3334, 1.0
        %v3336 = vrcp.pop %v3335
        %v3337 = vtanh.pop %v3331
        %v3338 = vmul.f32 %v3336, %v3140
        %3340 = vrot.lane.b32.xlu0 %v3337, 96
        %v3341 = vpop.permute.xlu0 %3340
        %v3343 = vmul.f32 %v3336, %v3341
        %3345 = vrot.lane.b32.xlu0 %v3343, 16
        %v3346 = vpop.permute.xlu0 %3345
        %v3348 = vadd.f32 %v3338, %v3346
        %v3349 = vtanh.pop %v3348
        %3351 = vrot.lane.b32.xlu0 %v3349, 32
        %v3352 = vpop.permute.xlu0 %3351
        %v3354 = vmul.f32 %v3336, %v3352
        %3356 = vrot.lane.b32.xlu0 %v3354, 16
        %v3357 = vpop.permute.xlu0 %3356
        %s3359 = scalar_lea.vmem [#allocation5], %s3249
        %3360 = vst.msk [vmem:[%s3359] sm:$0x1] %vm3247, %v3357
      $region125: #{forward.1} parent=119 // loop_footer
        %s3136 = sadd.s32 1, %s3132
      $region126: #{forward.1} parent=119 // loop_footer_branch
        %3131 = sbr.rel target = $region122
      $region127: #{forward.1} parent=119 // loop_exit
        _
      %v3361 = vld [vmem:[#allocation4] sm:$0xff]
      %v3362 = vld [vmem:[#allocation5] sm:$0xff]
      %3364 = vrot.lane.b32.xlu0 %v3362, 16
      %v3365 = vpop.permute.xlu0 %3364
      %v3367 = vsel %vm1615, %v3361, %v3365
      %s3368 = scalar_lea.vmem %s17, 32
      %v3369 = vld [vmem:[%s3368] sm:$0xff]
      %v3370 = vld [vmem:[%s3368 + $0x8] sm:$0xff]
      %v3371 = vld [vmem:[%s3368 + $0x10] sm:$0xff]
      %v3372 = vld [vmem:[%s3368 + $0x18] sm:$0xff]
      %s3373 = scalar_lea.vmem %s20, 1
      %v3374 = vld [vmem:[%s3373] sm:$0x1]
      %v3376 = vlaneseq
      %v3377 = vshrl.u32 %v3376, 7
      %v3378 = vsub.s32 0, %v3377
      %v3379 = vrot.slane %v3374, %v3378
      %v3382 = vsel %vm820, %v3367, 0
      %3384 = vmatprep.subr.mxu0 0.0
      %3385 = vmatpush1.msra.mxu0 %v3369
      %3386 = vmatprep.subr.mxu0 0.0
      %3387 = vmatpush1.msra.mxu0 %v3370
      %3388 = vmatprep.subr.mxu0 0.0
      %3389 = vmatpush1.msra.mxu0 %v3371
      %3390 = vmatprep.subr.mxu0 0.0
      %3391 = vmatpush1.msra.mxu0 %v3372
      %3392 = vmatprep.subr.mxu0 0.0
      %3393 = vmatpush1.msra.mxu0 0.0
      %3394 = vmatprep.subr.mxu0 0.0
      %3395 = vmatpush1.msra.mxu0 0.0
      %3396 = vmatprep.subr.mxu0 0.0
      %3397 = vmatpush1.msra.mxu0 0.0
      %3398 = vmatprep.subr.mxu0 0.0
      %3399 = vmatpush1.msra.mxu0 0.0
      %3400 = vmatprep.subr.mxu0 0.0
      %3401 = vmatpush1.msra.mxu0 0.0
      %3402 = vmatprep.subr.mxu0 0.0
      %3403 = vmatpush1.msra.mxu0 0.0
      %3404 = vmatprep.subr.mxu0 0.0
      %3405 = vmatpush1.msra.mxu0 0.0
      %3406 = vmatprep.subr.mxu0 0.0
      %3407 = vmatpush1.msra.mxu0 0.0
      %3408 = vmatprep.subr.mxu0 0.0
      %3409 = vmatpush1.msra.mxu0 0.0
      %3410 = vmatprep.subr.mxu0 0.0
      %3411 = vmatpush1.msra.mxu0 0.0
      %3412 = vmatprep.subr.mxu0 0.0
      %3413 = vmatpush1.msra.mxu0 0.0
      %3414 = vmatprep.subr.mxu0 0.0
      %3415 = vmatpush1.msra.mxu0 0.0
      %3416 = vmatprep.subr.mxu0 0.0
      %3417 = vmatpush1.msra.mxu0 0.0
      %3418 = vmatprep.subr.mxu0 0.0
      %3419 = vmatpush1.msra.mxu0 0.0
      %3420 = vmatprep.subr.mxu0 0.0
      %3421 = vmatpush1.msra.mxu0 0.0
      %3422 = vmatprep.subr.mxu0 0.0
      %3423 = vmatpush1.msra.mxu0 0.0
      %3424 = vmatprep.subr.mxu0 0.0
      %3425 = vmatpush1.msra.mxu0 0.0
      %3426 = vmatprep.subr.mxu0 0.0
      %3427 = vmatpush1.msra.mxu0 0.0
      %3428 = vmatprep.subr.mxu0 0.0
      %3429 = vmatpush1.msra.mxu0 0.0
      %3430 = vmatprep.subr.mxu0 0.0
      %3431 = vmatpush1.msra.mxu0 0.0
      %3432 = vmatprep.subr.mxu0 0.0
      %3433 = vmatpush1.msra.mxu0 0.0
      %3434 = vmatprep.subr.mxu0 0.0
      %3435 = vmatpush1.msra.mxu0 0.0
      %3436 = vmatprep.subr.mxu0 0.0
      %3437 = vmatpush1.msra.mxu0 0.0
      %3438 = vmatprep.subr.mxu0 0.0
      %3439 = vmatpush1.msra.mxu0 0.0
      %3440 = vmatprep.subr.mxu0 0.0
      %3441 = vmatpush1.msra.mxu0 0.0
      %3442 = vmatprep.subr.mxu0 0.0
      %3443 = vmatpush1.msra.mxu0 0.0
      %3444 = vmatprep.subr.mxu0 0.0
      %3445 = vmatpush1.msra.mxu0 0.0
      %3446 = vmatprep.subr.mxu0 0.0
      %3447 = vmatpush1.msra.mxu0 0.0
      %3448 = vmatprep.mubr.f32.mxu0 0.0
      %3449 = vmatmul.mubr.f32.gmra.mrb[0].mxu0 %v3382
      %v3450 = vpop.f32.mrb[0].mxu0
      %v3451 = vadd.f32 %v3379, %v3450
      %v3452 = vpop.f32.mrb[0].mxu0
      %3453 = vdwg.mxu0
      %3454 = vst [vmem:[#allocation3] sm:$0xff] %v3451
      %s3455 = scalar_lea.vmem %s18, 16
      %v3456 = vld [vmem:[%s3455] sm:$0xff]
      %v3457 = vld [vmem:[%s3455 + $0x8] sm:$0xff]
      %s3458 = scalar_lea.vmem %s19, 16
      %v3459 = vld [vmem:[%s3458] sm:$0xff]
      %v3460 = vld [vmem:[%s3458 + $0x8] sm:$0xff]
      loop: start=0, step=1, limit=8
      $region128: #{forward.1} parent=119 // loop_pre_header
        _
      $region129: #{forward.1} parent=119 // loop_header
        %s3462 = sphi 0, %s3466
        %p3463 = scmp.ge.s32.totalorder %s3462, 8
        %v3467 = vphi 0.0, %v3571
        %v3468 = vphi 0.0, %v3565
        %v3469 = vphi 0.0, %v3684
        %v3470 = vphi 0.0, %v3678
      $region130: #{forward.1} parent=119 // loop_header_branch
        %3465 = sbr.rel (%p3463) target = $region134
      $region131: #{forward.1} parent=119 // loop_body
        %s3471 = scalar_lea.vmem [#allocation3], %s3462
        %v3472 = vld [vmem:[%s3471] sm:$0x1]
        %3474 = vrot.lane.b32.xlu0 %v3467, 80
        %v3475 = vpop.permute.xlu0 %3474
        %v3476 = vsel %vm1615, %v3475, 0
        %3478 = vmatprep.subr.mxu0 0.0
        %3479 = vmatpush1.msra.mxu0 %v3456
        %3480 = vmatprep.subr.mxu0 0.0
        %3481 = vmatpush1.msra.mxu0 %v3457
        %3482 = vmatprep.subr.mxu0 0.0
        %3483 = vmatpush1.msra.mxu0 0.0
        %3484 = vmatprep.subr.mxu0 0.0
        %3485 = vmatpush1.msra.mxu0 0.0
        %3486 = vmatprep.subr.mxu0 0.0
        %3487 = vmatpush1.msra.mxu0 0.0
        %3488 = vmatprep.subr.mxu0 0.0
        %3489 = vmatpush1.msra.mxu0 0.0
        %3490 = vmatprep.subr.mxu0 0.0
        %3491 = vmatpush1.msra.mxu0 0.0
        %3492 = vmatprep.subr.mxu0 0.0
        %3493 = vmatpush1.msra.mxu0 0.0
        %3494 = vmatprep.subr.mxu0 0.0
        %3495 = vmatpush1.msra.mxu0 0.0
        %3496 = vmatprep.subr.mxu0 0.0
        %3497 = vmatpush1.msra.mxu0 0.0
        %3498 = vmatprep.subr.mxu0 0.0
        %3499 = vmatpush1.msra.mxu0 0.0
        %3500 = vmatprep.subr.mxu0 0.0
        %3501 = vmatpush1.msra.mxu0 0.0
        %3502 = vmatprep.subr.mxu0 0.0
        %3503 = vmatpush1.msra.mxu0 0.0
        %3504 = vmatprep.subr.mxu0 0.0
        %3505 = vmatpush1.msra.mxu0 0.0
        %3506 = vmatprep.subr.mxu0 0.0
        %3507 = vmatpush1.msra.mxu0 0.0
        %3508 = vmatprep.subr.mxu0 0.0
        %3509 = vmatpush1.msra.mxu0 0.0
        %3510 = vmatprep.subr.mxu0 0.0
        %3511 = vmatpush1.msra.mxu0 0.0
        %3512 = vmatprep.subr.mxu0 0.0
        %3513 = vmatpush1.msra.mxu0 0.0
        %3514 = vmatprep.subr.mxu0 0.0
        %3515 = vmatpush1.msra.mxu0 0.0
        %3516 = vmatprep.subr.mxu0 0.0
        %3517 = vmatpush1.msra.mxu0 0.0
        %3518 = vmatprep.subr.mxu0 0.0
        %3519 = vmatpush1.msra.mxu0 0.0
        %3520 = vmatprep.subr.mxu0 0.0
        %3521 = vmatpush1.msra.mxu0 0.0
        %3522 = vmatprep.subr.mxu0 0.0
        %3523 = vmatpush1.msra.mxu0 0.0
        %3524 = vmatprep.subr.mxu0 0.0
        %3525 = vmatpush1.msra.mxu0 0.0
        %3526 = vmatprep.subr.mxu0 0.0
        %3527 = vmatpush1.msra.mxu0 0.0
        %3528 = vmatprep.subr.mxu0 0.0
        %3529 = vmatpush1.msra.mxu0 0.0
        %3530 = vmatprep.subr.mxu0 0.0
        %3531 = vmatpush1.msra.mxu0 0.0
        %3532 = vmatprep.subr.mxu0 0.0
        %3533 = vmatpush1.msra.mxu0 0.0
        %3534 = vmatprep.subr.mxu0 0.0
        %3535 = vmatpush1.msra.mxu0 0.0
        %3536 = vmatprep.subr.mxu0 0.0
        %3537 = vmatpush1.msra.mxu0 0.0
        %3538 = vmatprep.subr.mxu0 0.0
        %3539 = vmatpush1.msra.mxu0 0.0
        %3540 = vmatprep.subr.mxu0 0.0
        %3541 = vmatpush1.msra.mxu0 0.0
        %3542 = vmatprep.mubr.f32.mxu0 0.0
        %3543 = vmatmul.mubr.f32.gmra.mrb[0].mxu0 %v3476
        %v3544 = vpop.f32.mrb[0].mxu0
        %v3545 = vadd.f32 0.0, %v3544
        %v3546 = vpop.f32.mrb[0].mxu0
        %3547 = vdwg.mxu0
        %v3548 = vadd.f32 %v3472, %v3545
        %v3549 = vsub.f32 0.0, %v3548
        %v3550 = vmul.f32 %v3549, 1.442695
        %v3551 = vpow.pop %v3550
        %v3552 = vadd.f32 %v3551, 1.0
        %v3553 = vrcp.pop %v3552
        %v3554 = vtanh.pop %v3548
        %v3555 = vmul.f32 %v3553, %v3468
        %3557 = vrot.lane.b32.xlu0 %v3554, 96
        %v3558 = vpop.permute.xlu0 %3557
        %v3560 = vmul.f32 %v3553, %v3558
        %3562 = vrot.lane.b32.xlu0 %v3560, 16
        %v3563 = vpop.permute.xlu0 %3562
        %v3565 = vadd.f32 %v3555, %v3563
        %v3566 = vtanh.pop %v3565
        %3568 = vrot.lane.b32.xlu0 %v3566, 32
        %v3569 = vpop.permute.xlu0 %3568
        %v3571 = vmul.f32 %v3553, %v3569
        %3573 = vrot.lane.b32.xlu0 %v3571, 80
        %v3574 = vpop.permute.xlu0 %3573
        %s3576 = scalar_lea.vmem [#allocation6], %s3462
        %vm3577 = vcmask 122880
        %3578 = vst.msk [vmem:[%s3576] sm:$0x1] %vm3577, %v3574
        %s3579 = ssub.s32 7, %s3462
        %s3580 = scalar_lea.vmem [#allocation3], %s3579
        %v3581 = vld [vmem:[%s3580] sm:$0x1]
        %3583 = vrot.lane.b32.xlu0 %v3469, 16
        %v3584 = vpop.permute.xlu0 %3583
        %v3585 = vsel %vm1615, %v3584, 0
        %3587 = vmatprep.subr.mxu0 0.0
        %3588 = vmatpush1.msra.mxu0 %v3459
        %3589 = vmatprep.subr.mxu0 0.0
        %3590 = vmatpush1.msra.mxu0 %v3460
        %3591 = vmatprep.subr.mxu0 0.0
        %3592 = vmatpush1.msra.mxu0 0.0
        %3593 = vmatprep.subr.mxu0 0.0
        %3594 = vmatpush1.msra.mxu0 0.0
        %3595 = vmatprep.subr.mxu0 0.0
        %3596 = vmatpush1.msra.mxu0 0.0
        %3597 = vmatprep.subr.mxu0 0.0
        %3598 = vmatpush1.msra.mxu0 0.0
        %3599 = vmatprep.subr.mxu0 0.0
        %3600 = vmatpush1.msra.mxu0 0.0
        %3601 = vmatprep.subr.mxu0 0.0
        %3602 = vmatpush1.msra.mxu0 0.0
        %3603 = vmatprep.subr.mxu0 0.0
        %3604 = vmatpush1.msra.mxu0 0.0
        %3605 = vmatprep.subr.mxu0 0.0
        %3606 = vmatpush1.msra.mxu0 0.0
        %3607 = vmatprep.subr.mxu0 0.0
        %3608 = vmatpush1.msra.mxu0 0.0
        %3609 = vmatprep.subr.mxu0 0.0
        %3610 = vmatpush1.msra.mxu0 0.0
        %3611 = vmatprep.subr.mxu0 0.0
        %3612 = vmatpush1.msra.mxu0 0.0
        %3613 = vmatprep.subr.mxu0 0.0
        %3614 = vmatpush1.msra.mxu0 0.0
        %3615 = vmatprep.subr.mxu0 0.0
        %3616 = vmatpush1.msra.mxu0 0.0
        %3617 = vmatprep.subr.mxu0 0.0
        %3618 = vmatpush1.msra.mxu0 0.0
        %3619 = vmatprep.subr.mxu0 0.0
        %3620 = vmatpush1.msra.mxu0 0.0
        %3621 = vmatprep.subr.mxu0 0.0
        %3622 = vmatpush1.msra.mxu0 0.0
        %3623 = vmatprep.subr.mxu0 0.0
        %3624 = vmatpush1.msra.mxu0 0.0
        %3625 = vmatprep.subr.mxu0 0.0
        %3626 = vmatpush1.msra.mxu0 0.0
        %3627 = vmatprep.subr.mxu0 0.0
        %3628 = vmatpush1.msra.mxu0 0.0
        %3629 = vmatprep.subr.mxu0 0.0
        %3630 = vmatpush1.msra.mxu0 0.0
        %3631 = vmatprep.subr.mxu0 0.0
        %3632 = vmatpush1.msra.mxu0 0.0
        %3633 = vmatprep.subr.mxu0 0.0
        %3634 = vmatpush1.msra.mxu0 0.0
        %3635 = vmatprep.subr.mxu0 0.0
        %3636 = vmatpush1.msra.mxu0 0.0
        %3637 = vmatprep.subr.mxu0 0.0
        %3638 = vmatpush1.msra.mxu0 0.0
        %3639 = vmatprep.subr.mxu0 0.0
        %3640 = vmatpush1.msra.mxu0 0.0
        %3641 = vmatprep.subr.mxu0 0.0
        %3642 = vmatpush1.msra.mxu0 0.0
        %3643 = vmatprep.subr.mxu0 0.0
        %3644 = vmatpush1.msra.mxu0 0.0
        %3645 = vmatprep.subr.mxu0 0.0
        %3646 = vmatpush1.msra.mxu0 0.0
        %3647 = vmatprep.subr.mxu0 0.0
        %3648 = vmatpush1.msra.mxu0 0.0
        %3649 = vmatprep.subr.mxu0 0.0
        %3650 = vmatpush1.msra.mxu0 0.0
        %3651 = vmatprep.mubr.f32.mxu0 0.0
        %3652 = vmatmul.mubr.f32.gmra.mrb[0].mxu0 %v3585
        %v3653 = vpop.f32.mrb[0].mxu0
        %v3654 = vadd.f32 0.0, %v3653
        %v3655 = vpop.f32.mrb[0].mxu0
        %3656 = vdwg.mxu0
        %3658 = vrot.lane.b32.xlu0 %v3654, 64
        %v3659 = vpop.permute.xlu0 %3658
        %v3661 = vadd.f32 %v3581, %v3659
        %v3662 = vsub.f32 0.0, %v3661
        %v3663 = vmul.f32 %v3662, 1.442695
        %v3664 = vpow.pop %v3663
        %v3665 = vadd.f32 %v3664, 1.0
        %v3666 = vrcp.pop %v3665
        %v3667 = vtanh.pop %v3661
        %v3668 = vmul.f32 %v3666, %v3470
        %3670 = vrot.lane.b32.xlu0 %v3667, 96
        %v3671 = vpop.permute.xlu0 %3670
        %v3673 = vmul.f32 %v3666, %v3671
        %3675 = vrot.lane.b32.xlu0 %v3673, 16
        %v3676 = vpop.permute.xlu0 %3675
        %v3678 = vadd.f32 %v3668, %v3676
        %v3679 = vtanh.pop %v3678
        %3681 = vrot.lane.b32.xlu0 %v3679, 32
        %v3682 = vpop.permute.xlu0 %3681
        %v3684 = vmul.f32 %v3666, %v3682
        %3686 = vrot.lane.b32.xlu0 %v3684, 16
        %v3687 = vpop.permute.xlu0 %3686
        %s3689 = scalar_lea.vmem [#allocation7], %s3579
        %3690 = vst.msk [vmem:[%s3689] sm:$0x1] %vm3577, %v3687
      $region132: #{forward.1} parent=119 // loop_footer
        %s3466 = sadd.s32 1, %s3462
      $region133: #{forward.1} parent=119 // loop_footer_branch
        %3461 = sbr.rel target = $region129
      $region134: #{forward.1} parent=119 // loop_exit
        _
      %v3691 = vld [vmem:[#allocation6] sm:$0xff]
      %v3692 = vld [vmem:[#allocation7] sm:$0xff]
      %3694 = vrot.lane.b32.xlu0 %v3692, 16
      %v3695 = vpop.permute.xlu0 %3694
      %v3697 = vsel %vm1615, %v3691, %v3695
      %v3698 = vld [vmem:[%s21] sm:$0xff]
      %v3699 = vld [vmem:[%s21 + $0x8] sm:$0xff]
      %v3700 = vld [vmem:[%s21 + $0x10] sm:$0xff]
      %v3701 = vld [vmem:[%s21 + $0x18] sm:$0xff]
      %v3702 = vld [vmem:[%s22] sm:$0x1]
      %v3704 = vlaneseq
      %v3705 = vshrl.u32 %v3704, 7
      %v3706 = vsub.s32 0, %v3705
      %v3707 = vrot.slane %v3702, %v3706
      %v3710 = vsel %vm820, %v3697, 0
      %3712 = vmatprep.subr.mxu0 0.0
      %3713 = vmatpush1.msra.mxu0 %v3698
      %3714 = vmatprep.subr.mxu0 0.0
      %3715 = vmatpush1.msra.mxu0 %v3699
      %3716 = vmatprep.subr.mxu0 0.0
      %3717 = vmatpush1.msra.mxu0 %v3700
      %3718 = vmatprep.subr.mxu0 0.0
      %3719 = vmatpush1.msra.mxu0 %v3701
      %3720 = vmatprep.subr.mxu0 0.0
      %3721 = vmatpush1.msra.mxu0 0.0
      %3722 = vmatprep.subr.mxu0 0.0
      %3723 = vmatpush1.msra.mxu0 0.0
      %3724 = vmatprep.subr.mxu0 0.0
      %3725 = vmatpush1.msra.mxu0 0.0
      %3726 = vmatprep.subr.mxu0 0.0
      %3727 = vmatpush1.msra.mxu0 0.0
      %3728 = vmatprep.subr.mxu0 0.0
      %3729 = vmatpush1.msra.mxu0 0.0
      %3730 = vmatprep.subr.mxu0 0.0
      %3731 = vmatpush1.msra.mxu0 0.0
      %3732 = vmatprep.subr.mxu0 0.0
      %3733 = vmatpush1.msra.mxu0 0.0
      %3734 = vmatprep.subr.mxu0 0.0
      %3735 = vmatpush1.msra.mxu0 0.0
      %3736 = vmatprep.subr.mxu0 0.0
      %3737 = vmatpush1.msra.mxu0 0.0
      %3738 = vmatprep.subr.mxu0 0.0
      %3739 = vmatpush1.msra.mxu0 0.0
      %3740 = vmatprep.subr.mxu0 0.0
      %3741 = vmatpush1.msra.mxu0 0.0
      %3742 = vmatprep.subr.mxu0 0.0
      %3743 = vmatpush1.msra.mxu0 0.0
      %3744 = vmatprep.subr.mxu0 0.0
      %3745 = vmatpush1.msra.mxu0 0.0
      %3746 = vmatprep.subr.mxu0 0.0
      %3747 = vmatpush1.msra.mxu0 0.0
      %3748 = vmatprep.subr.mxu0 0.0
      %3749 = vmatpush1.msra.mxu0 0.0
      %3750 = vmatprep.subr.mxu0 0.0
      %3751 = vmatpush1.msra.mxu0 0.0
      %3752 = vmatprep.subr.mxu0 0.0
      %3753 = vmatpush1.msra.mxu0 0.0
      %3754 = vmatprep.subr.mxu0 0.0
      %3755 = vmatpush1.msra.mxu0 0.0
      %3756 = vmatprep.subr.mxu0 0.0
      %3757 = vmatpush1.msra.mxu0 0.0
      %3758 = vmatprep.subr.mxu0 0.0
      %3759 = vmatpush1.msra.mxu0 0.0
      %3760 = vmatprep.subr.mxu0 0.0
      %3761 = vmatpush1.msra.mxu0 0.0
      %3762 = vmatprep.subr.mxu0 0.0
      %3763 = vmatpush1.msra.mxu0 0.0
      %3764 = vmatprep.subr.mxu0 0.0
      %3765 = vmatpush1.msra.mxu0 0.0
      %3766 = vmatprep.subr.mxu0 0.0
      %3767 = vmatpush1.msra.mxu0 0.0
      %3768 = vmatprep.subr.mxu0 0.0
      %3769 = vmatpush1.msra.mxu0 0.0
      %3770 = vmatprep.subr.mxu0 0.0
      %3771 = vmatpush1.msra.mxu0 0.0
      %3772 = vmatprep.subr.mxu0 0.0
      %3773 = vmatpush1.msra.mxu0 0.0
      %3774 = vmatprep.subr.mxu0 0.0
      %3775 = vmatpush1.msra.mxu0 0.0
      %3776 = vmatprep.mubr.f32.mxu0 0.0
      %3777 = vmatmul.mubr.f32.gmra.mrb[0].mxu0 %v3710
      %v3778 = vpop.f32.mrb[0].mxu0
      %v3779 = vadd.f32 %v3707, %v3778
      %v3780 = vpop.f32.mrb[0].mxu0
      %3781 = vdwg.mxu0
      %3782 = vst.msk [vmem:[%s813] sm:$0xff] %vm944, %v3779
      %v3783 = vld [vmem:[%s23] sm:$0xff]
      %v3784 = vlaneseq
      %v3785 = vshrl.u32 %v3784, 7
      %v3786 = vlaneseq
      %v3787 = vand.u32 %v3786, 127
      %vm3788 = vcmp.eq.s32.totalorder %v3785, %v3787
      %v3789 = vsel %vm3788, 1, 0
      %v3790 = vcvt.s32.f32 %v3789
      %v3791 = vld [vmem:[%s24] sm:$0x1]
      %v3792 = vadd.f32 %v3791, %v3779
      loop: start=1, step=1, limit=8
      $region135: #{forward.1} parent=119 // loop_pre_header
        _
      $region136: #{forward.1} parent=119 // loop_header
        %s3794 = sphi 1, %s3798
        %p3795 = scmp.ge.s32.totalorder %s3794, 8
        %v3799 = vphi %v3792, %v3844
      $region137: #{forward.1} parent=119 // loop_header_branch
        %3797 = sbr.rel (%p3795) target = $region141
      $region138: #{forward.1} parent=119 // loop_body
        %v3800 = vlaneseq
        %v3801 = vshrl.u32 %v3800, 7
        %v3802 = vsub.s32 0, %v3801
        %v3803 = vrot.slane %v3799, %v3802
        %v3804 = vmul.f32 %v3790, %v3803
        %v3805 = vsel %vm944, %v3804, 0.0
        %3806 = vadd.xlane.f32.xlu0 %v3805
        %v3807 = vpop.xlane.xlu0 %3806
        %v3808 = vadd.f32 %v3807, %v3783
        %v3809 = vsel %vm944, %v3808, -inf
        %v3810 = vrot.slane %v3809, 4
        %v3811 = vmax.f32 %v3809, %v3810
        %v3812 = vrot.slane %v3811, 2
        %v3813 = vmax.f32 %v3811, %v3812
        %v3814 = vrot.slane %v3813, 1
        %v3815 = vmax.f32 %v3813, %v3814
        %v3816 = vsub.f32 %v3808, %v3815
        %v3817 = vmul.f32 %v3816, 1.442695
        %v3818 = vpow.pop %v3817
        %v3819 = vsel %vm944, %v3818, 0.0
        %v3820 = vrot.slane %v3819, 4
        %v3821 = vadd.f32 %v3819, %v3820
        %v3822 = vrot.slane %v3821, 2
        %v3823 = vadd.f32 %v3821, %v3822
        %v3824 = vrot.slane %v3823, 1
        %v3825 = vadd.f32 %v3823, %v3824
        %v3826 = vlog2.pop %v3825
        %v3827 = vmul.f32 %v3826, 0.6931472
        %v3828 = vadd.f32 %v3815, %v3827
        %s3829 = scalar_lea.vmem %s813, %s3794
        %v3830 = vld [vmem:[%s3829] sm:$0x1]
        %v3831 = vadd.f32 %v3828, %v3830
        %s3832 = sshra.s32 %s3794, 7
        %s3833 = sand.u32 %s3794, 127
        %s3834 = sadd.s32 %s3832, %s45
        %s3835 = smul.u32 %s3834, 128
        %s3836 = sshra.s32 %s3794, 7
        %s3837 = sand.u32 %s3794, 127
        %s3838 = sadd.s32 %s3835, %s3837
        %s3839 = sld [smem:[#allocation9 + %s3838]]
        %p3840 = scmp.gt.s32.totalorder %s3839, 0
        %s3841 = scalar_select %p3840, 1, 0
        %v3842 = vstv %s3841
        %vm3843 = vcmp.eq.s32.totalorder %v3842, 1
        %v3844 = vsel %vm3843, %v3831, %v3799
      $region139: #{forward.1} parent=119 // loop_footer
        %s3798 = sadd.s32 1, %s3794
      $region140: #{forward.1} parent=119 // loop_footer_branch
        %3793 = sbr.rel target = $region136
      $region141: #{forward.1} parent=119 // loop_exit
        _
      %v3845 = vld [vmem:[%s25] sm:$0x1]
      %v3846 = vadd.f32 %v3799, %v3845
      %vm3847 = vcmask 57344
      %v3848 = vsel %vm3847, %v3846, -inf
      %3849 = vmax.xlane.f32.xlu0 %v3848
      %v3850 = vpop.xlane.xlu0 %3849
      %v3851 = vrot.slane %v3850, 4
      %v3852 = vmax.f32 %v3850, %v3851
      %v3853 = vrot.slane %v3852, 2
      %v3854 = vmax.f32 %v3852, %v3853
      %v3855 = vrot.slane %v3854, 1
      %v3856 = vmax.f32 %v3854, %v3855
      %s3857 = vtos %v3856
      %v3858 = vstv %s3857
      %v3859 = vsub.f32 %v3846, %v3858
      %v3860 = vmul.f32 %v3859, 1.442695
      %v3861 = vpow.pop %v3860
      %v3862 = vsel %vm3847, %v3861, 0.0
      %3863 = vadd.xlane.f32.xlu0 %v3862
      %v3864 = vpop.xlane.xlu0 %3863
      %v3865 = vrot.slane %v3864, 4
      %v3866 = vadd.f32 %v3864, %v3865
      %v3867 = vrot.slane %v3866, 2
      %v3868 = vadd.f32 %v3866, %v3867
      %v3869 = vrot.slane %v3868, 1
      %v3870 = vadd.f32 %v3868, %v3869
      %s3871 = vtos %v3870
      %v3872 = vstv %s3871
      %v3873 = vlog2.pop %v3872
      %v3874 = vmul.f32 %v3873, 0.6931472
      %s3875 = vtos %v3874
      %s3876 = sadd.f32 %s3857, %s3875
      %vm3877 = vcmp.eq.s32.totalorder %v3787, 0
      %v3878 = vstv %s3876
      %v3879 = vsel %vm3877, %v3878, 0.0
      %3880 = vst.msk [vmem:[%s816] sm:$0x1] %vm3847, %v3879
      %p3881 = scmp.lt.s32.totalorder %s45, 1
      %s3882 = scalar_select %p3881, %s45, 1
      %s3883 = smul.addr %s3882, 8
      %s3884 = scalar_lea.vmem %s26, %s3883
      %p3885 = scmp.lt.s32.totalorder %s45, 1
      %s3886 = scalar_select %p3885, %s45, 1
      %s3887 = scalar_lea.vmem %s27, %s3886
      // Predicated region
      $region142: #{forward.1} parent=119 // pred_check
        %p3888 = pneg %p598
      $region143: #{forward.1} parent=119 // pred_check_branch
        %3890 = sbr.rel (%p3888) target = $region145
      $region144: #{forward.1} parent=119 // pred_region
        _
      $region145: #{forward.1} parent=119 // pred_fallthru
        _
      // Predicated region
      $region146: #{forward.1} parent=119 // pred_check
        %p3891 = pneg %p624
      $region147: #{forward.1} parent=119 // pred_check_branch
        %3893 = sbr.rel (%p3891) target = $region149
      $region148: #{forward.1} parent=119 // pred_region
        _
      $region149: #{forward.1} parent=119 // pred_fallthru
        _
    $region120: #{forward.1} parent=5 // pred_fallthru
      _
    %p3894 = scmp.le.s32.totalorder 2, %s40
    // Predicated region
    $region150: #{forward.1} parent=5 // pred_check
      %p3895 = pneg %p3894
    $region151: #{forward.1} parent=5 // pred_check_branch
      %3897 = sbr.rel (%p3895) target = $region153
    $region152: #{forward.1} parent=5 // pred_region
      %s3898 = ssub.s32 %s40, 2
      // Predicated region
      $region154: #{forward.1} parent=152 // pred_check
        %p3899 = pneg %p604
      $region155: #{forward.1} parent=152 // pred_check_branch
        %3901 = sbr.rel (%p3899) target = $region157
      $region156: #{forward.1} parent=152 // pred_region
        %p3902 = scmp.lt.s32.totalorder %s46, 1
        %s3903 = scalar_select %p3902, %s46, 1
        %s3904 = smul.addr %s3903, 8
        %s3905 = scalar_lea.vmem %s26, %s3904
      $region157: #{forward.1} parent=152 // pred_fallthru
        _
      // Predicated region
      $region158: #{forward.1} parent=152 // pred_check
        %p3906 = pneg %p630
      $region159: #{forward.1} parent=152 // pred_check_branch
        %3908 = sbr.rel (%p3906) target = $region161
      $region160: #{forward.1} parent=152 // pred_region
        %p3909 = scmp.lt.s32.totalorder %s46, 1
        %s3910 = scalar_select %p3909, %s46, 1
        %s3911 = scalar_lea.vmem %s27, %s3910
      $region161: #{forward.1} parent=152 // pred_fallthru
        _
    $region153: #{forward.1} parent=5 // pred_fallthru
      _
  $region6: #{forward.1} parent=0 // loop_footer
    %s44 = sadd.s32 1, %s40
  $region7: #{forward.1} parent=0 // loop_footer_branch
    %39 = sbr.rel target = $region3
  $region8: #{forward.1} parent=0 // loop_exit
    _

</llo_original>
